<compile_context>
chip_gen: v5e
topology: v5e:2x2
jax: 0.10.0
libtpu: 0.0.40
codegen_flags: <defaults>
</compile_context>

<pallas_src>
import functools

import jax
import jax.numpy as jnp
from jax.experimental import pallas as pl
from jax.experimental.pallas import tpu as pltpu

EPS = 1e-5  # PyTorch BatchNorm2d default


def _round_up(x, m):
    return ((x + m - 1) // m) * m


# ----------------------------------------------------------------------------
# Pallas kernels: tiled  act( (A @ B) * scale + shift )
# ----------------------------------------------------------------------------
def _fused_matmul_kernel_single(*refs, activation, has_scale):
    """Single K step: whole contraction in one block -> no accumulator scratch."""
    if has_scale:
        a_ref, b_ref, scale_ref, shift_ref, o_ref = refs
    else:
        a_ref, b_ref, shift_ref, o_ref = refs

    y = jnp.dot(a_ref[...], b_ref[...], preferred_element_type=jnp.float32)
    if has_scale:
        y = y * scale_ref[...]
    y = y + shift_ref[...]
    if activation == "relu":
        y = jnp.maximum(y, 0.0)
    elif activation == "sigmoid":
        y = jax.nn.sigmoid(y)
    o_ref[...] = y.astype(o_ref.dtype)


def _fused_matmul_kernel_multi(*refs, activation, has_scale):
    """Multi K step: f32 VMEM accumulator, epilogue only at k == last."""
    if has_scale:
        a_ref, b_ref, scale_ref, shift_ref, o_ref, acc_ref = refs
    else:
        a_ref, b_ref, shift_ref, o_ref, acc_ref = refs

    k = pl.program_id(2)

    @pl.when(k == 0)
    def _():
        acc_ref[...] = jnp.zeros_like(acc_ref)

    acc_ref[...] += jnp.dot(a_ref[...], b_ref[...],
                            preferred_element_type=jnp.float32)

    @pl.when(k == pl.num_programs(2) - 1)
    def _():
        y = acc_ref[...]
        if has_scale:
            y = y * scale_ref[...]
        y = y + shift_ref[...]
        if activation == "relu":
            y = jnp.maximum(y, 0.0)
        elif activation == "sigmoid":
            y = jax.nn.sigmoid(y)
        o_ref[...] = y.astype(o_ref.dtype)


def fused_matmul(a, b, shift, *, scale=None, activation="none",
                 out_dtype=jnp.bfloat16, tm=256, tn=512, tk=2048):
    """out[m, n] = act( sum_k a[m,k] b[k,n] * scale[n] + shift[n] ).

    Operands go to the MXU as bf16; accumulation and the epilogue run in f32.
    If tk >= K (resp. tn >= N) the full dimension is used as a single block
    (BlockSpec full-dim exemption), so no zero-padding / padded writeback on
    that axis. Otherwise dims are padded to tile multiples and sliced after.
    """
    M, K = a.shape
    K2, N = b.shape
    assert K == K2
    has_scale = scale is not None

    # Tile selection (bf16 native sublane tile is (16,128) -> round tm to 16).
    tm = min(_round_up(M, 16), tm)
    if tk >= K:
        tk, Kp = K, K
    else:
        tk = _round_up(tk, 128)
        Kp = _round_up(K, tk)
    if tn >= N:
        tn, Np = N, N
    else:
        tn = _round_up(tn, 128)
        Np = _round_up(N, tn)
    Mp = _round_up(M, tm)

    a_p = a.astype(jnp.bfloat16)
    if (Mp, Kp) != (M, K):
        a_p = jnp.pad(a_p, ((0, Mp - M), (0, Kp - K)))
    b_p = b.astype(jnp.bfloat16)
    if (Kp, Np) != (K, N):
        b_p = jnp.pad(b_p, ((0, Kp - K), (0, Np - N)))
    shift_p = shift.astype(jnp.float32)
    if Np != N:
        shift_p = jnp.pad(shift_p, (0, Np - N))
    shift_p = shift_p.reshape(1, Np)
    if has_scale:
        scale_p = scale.astype(jnp.float32)
        if Np != N:
            scale_p = jnp.pad(scale_p, (0, Np - N))
        scale_p = scale_p.reshape(1, Np)

    nm, nn, nk = Mp // tm, Np // tn, Kp // tk

    # Generation-safe VMEM budget from the actual double-buffered tile footprint.
    out_item = jnp.dtype(out_dtype).itemsize
    footprint = (2 * (tm * tk + tk * tn) * 2        # double-buffered bf16 inputs
                 + 2 * tm * tn * out_item           # double-buffered output
                 + (tm * tn * 4 if nk > 1 else 0)   # f32 accumulator
                 + 8 * Np * 4)                      # scale/shift rows
    vmem_limit = int(min(64 * 1024 * 1024, max(32 * 1024 * 1024, 2 * footprint)))

    if nk == 1:
        operands = [a_p, b_p]
        in_specs = [
            pl.BlockSpec((tm, Kp), lambda i, j: (i, 0)),
            pl.BlockSpec((Kp, tn), lambda i, j: (0, j)),
        ]
        if has_scale:
            operands.append(scale_p)
            in_specs.append(pl.BlockSpec((1, tn), lambda i, j: (0, j)))
        operands.append(shift_p)
        in_specs.append(pl.BlockSpec((1, tn), lambda i, j: (0, j)))

        kernel = functools.partial(_fused_matmul_kernel_single,
                                   activation=activation, has_scale=has_scale)
        out = pl.pallas_call(
            kernel,
            out_shape=jax.ShapeDtypeStruct((Mp, Np), out_dtype),
            grid=(nm, nn),
            in_specs=in_specs,
            out_specs=pl.BlockSpec((tm, tn), lambda i, j: (i, j)),
            compiler_params=pltpu.CompilerParams(
                dimension_semantics=("parallel", "parallel"),
                vmem_limit_bytes=vmem_limit,
            ),
        )(*operands)
    else:
        operands = [a_p, b_p]
        in_specs = [
            pl.BlockSpec((tm, tk), lambda i, j, k: (i, k)),
            pl.BlockSpec((tk, tn), lambda i, j, k: (k, j)),
        ]
        if has_scale:
            operands.append(scale_p)
            in_specs.append(pl.BlockSpec((1, tn), lambda i, j, k: (0, j)))
        operands.append(shift_p)
        in_specs.append(pl.BlockSpec((1, tn), lambda i, j, k: (0, j)))

        kernel = functools.partial(_fused_matmul_kernel_multi,
                                   activation=activation, has_scale=has_scale)
        out = pl.pallas_call(
            kernel,
            out_shape=jax.ShapeDtypeStruct((Mp, Np), out_dtype),
            grid=(nm, nn, nk),
            in_specs=in_specs,
            out_specs=pl.BlockSpec((tm, tn), lambda i, j, k: (i, j)),
            scratch_shapes=[pltpu.VMEM((tm, tn), jnp.float32)],
            compiler_params=pltpu.CompilerParams(
                dimension_semantics=("parallel", "parallel", "arbitrary"),
                vmem_limit_bytes=vmem_limit,
            ),
        )(*operands)

    if (Mp, Np) != (M, N):
        out = out[:M, :N]
    return out


# ----------------------------------------------------------------------------
# Glue: im2col for 3x3 convolution (NHWC, bf16), K ordering = (kh, kw, in_c)
# ----------------------------------------------------------------------------
# TODO(synk): fuse the 3x3 tap gather into the matmul kernel (row-band DMA of
# the padded input + 9 shifted static slices accumulated into the same f32 acc)
# to remove the 9x im2col HBM materialization entirely.
def im2col3x3(x_nhwc, stride, pad=1):
    N, H, W, C = x_nhwc.shape
    xp = jnp.pad(x_nhwc, ((0, 0), (pad, pad), (pad, pad), (0, 0)))
    Ho = (H + 2 * pad - 3) // stride + 1
    Wo = (W + 2 * pad - 3) // stride + 1
    cols = []
    for dh in range(3):
        for dw in range(3):
            cols.append(xp[:, dh:dh + stride * Ho:stride,
                           dw:dw + stride * Wo:stride, :])
    cols = jnp.concatenate(cols, axis=-1)          # (N, Ho, Wo, 9*C)
    return cols.reshape(N * Ho * Wo, 9 * C), Ho, Wo


def conv_bn_relu(x_nhwc, w_mat, scale, shift, stride):
    """Conv2d(3x3, pad=1) + BatchNorm2d(eval) + ReLU, NHWC in/out, bf16.

    w_mat is the prefolded (9*in_c, out_c) weight; scale/shift are the
    prefolded BN affine terms (computed once, outside the jitted forward).
    """
    N = x_nhwc.shape[0]
    out_c = w_mat.shape[1]
    cols, Ho, Wo = im2col3x3(x_nhwc, stride=stride)
    out = fused_matmul(cols, w_mat, shift, scale=scale, activation="relu",
                       out_dtype=jnp.bfloat16,
                       tm=1024, tn=out_c, tk=cols.shape[1])
    return out.reshape(N, Ho, Wo, out_c)


# ----------------------------------------------------------------------------
# One-time parameter preprocessing (OUTSIDE the jitted forward)
# ----------------------------------------------------------------------------
def preprocess_params(p, h2, w2):
    def bn_fold(b, gamma, beta, mean, var):
        scale = gamma / jnp.sqrt(var + EPS)
        shift = beta + (b - mean) * scale
        return scale.astype(jnp.float32), shift.astype(jnp.float32)

    scale1, shift1 = bn_fold(p["b1"], p["g1"], p["be1"], p["m1"], p["v1"])
    scale2, shift2 = bn_fold(p["b2"], p["g2"], p["be2"], p["m2"], p["v2"])

    # PyTorch conv weight (out_c, in_c, kh, kw) -> (kh, kw, in_c) x out_c matrix.
    w1_mat = (jnp.transpose(p["w1"], (2, 3, 1, 0))
              .reshape(-1, p["w1"].shape[0]).astype(jnp.bfloat16))
    w2_mat = (jnp.transpose(p["w2"], (2, 3, 1, 0))
              .reshape(-1, p["w2"].shape[0]).astype(jnp.bfloat16))

    # PyTorch flattens NCHW; fold the (c,h,w)->(h,w,c) permutation into fc1's
    # weight rows once so the NHWC activation can be flattened directly.
    n_hidden = p["fc1_w"].shape[0]
    c2 = p["w2"].shape[0]
    fc1_w = (p["fc1_w"].reshape(n_hidden, c2, h2, w2)
             .transpose(2, 3, 1, 0)
             .reshape(h2 * w2 * c2, n_hidden)
             .astype(jnp.bfloat16))
    fc2_w = jnp.transpose(p["fc2_w"]).astype(jnp.bfloat16)

    # TODO(synk): optionally store fc1_w as int8 (v5e/v6e) / fp8 (v7x) with
    # per-column scales folded into the epilogue to halve the weight stream.
    return {
        "w1_mat": w1_mat, "scale1": scale1, "shift1": shift1,
        "w2_mat": w2_mat, "scale2": scale2, "shift2": shift2,
        "fc1_w": fc1_w, "fc1_b": p["fc1_b"].astype(jnp.float32),
        "fc2_w": fc2_w, "fc2_b": p["fc2_b"].astype(jnp.float32),
    }


# ----------------------------------------------------------------------------
# Full forward pass (inference) — consumes preprocessed params only.
# ----------------------------------------------------------------------------
def cnn_classifier_forward(x_nchw, pp):
    x = jnp.transpose(x_nchw, (0, 2, 3, 1)).astype(jnp.bfloat16)   # NCHW -> NHWC
    x = conv_bn_relu(x, pp["w1_mat"], pp["scale1"], pp["shift1"], stride=1)
    x = conv_bn_relu(x, pp["w2_mat"], pp["scale2"], pp["shift2"], stride=2)
    N, H2, W2, C2 = x.shape
    flat = x.reshape(N, H2 * W2 * C2)
    # Dropout (eval) = identity.
    # fc1: huge weight stream -> big K tiles (2 MB B blocks), >=2 N blocks for v7x.
    h = fused_matmul(flat, pp["fc1_w"], pp["fc1_b"], activation="none",
                     out_dtype=jnp.bfloat16, tm=256, tn=512, tk=2048)
    # Dropout (eval) = identity.
    out = fused_matmul(h, pp["fc2_w"], pp["fc2_b"], activation="sigmoid",
                       out_dtype=jnp.float32, tm=256, tn=512, tk=2048)
    return out


def init_params(key, in_c, n_classes, h2, w2):
    ks = jax.random.split(key, 12)
    flat_dim = 64 * h2 * w2
    return {
        # conv_block1: Conv2d(in_c, 32, 3, 1, 1) + BN(32)
        "w1": 0.1 * jax.random.normal(ks[0], (32, in_c, 3, 3), jnp.float32),
        "b1": 0.1 * jax.random.normal(ks[1], (32,), jnp.float32),
        "g1": 1.0 + 0.1 * jax.random.normal(ks[2], (32,), jnp.float32),
        "be1": 0.1 * jax.random.normal(ks[3], (32,), jnp.float32),
        "m1": 0.1 * jax.random.normal(ks[4], (32,), jnp.float32),
        "v1": jnp.abs(1.0 + 0.1 * jax.random.normal(ks[5], (32,), jnp.float32)),
        # conv_block2: Conv2d(32, 64, 3, 2, 1) + BN(64)
        "w2": 0.05 * jax.random.normal(ks[6], (64, 32, 3, 3), jnp.float32),
        "b2": 0.1 * jax.random.normal(ks[7], (64,), jnp.float32),
        "g2": 1.0 + 0.1 * jax.random.normal(ks[8], (64,), jnp.float32),
        "be2": 0.1 * jax.random.normal(ks[9], (64,), jnp.float32),
        "m2": 0.1 * jax.random.normal(ks[10], (64,), jnp.float32),
        "v2": jnp.abs(1.0 + 0.1 * jax.random.normal(ks[11], (64,), jnp.float32)),
        # classifier: Linear(64*h2*w2, 1024), Linear(1024, n_classes)
        "fc1_w": 0.01 * jax.random.normal(jax.random.fold_in(key, 100),
                                          (1024, flat_dim), jnp.float32),
        "fc1_b": 0.01 * jax.random.normal(jax.random.fold_in(key, 101),
                                          (1024,), jnp.float32),
        "fc2_w": 0.01 * jax.random.normal(jax.random.fold_in(key, 102),
                                          (n_classes, 1024), jnp.float32),
        "fc2_b": 0.01 * jax.random.normal(jax.random.fold_in(key, 103),
                                          (n_classes,), jnp.float32),
    }


if __name__ == "__main__":
    # Small shapes consistent with the module: the original Linear(64*112*112, ...)
    # implies 224x224 input; here 16x16 input -> conv2 output 8x8, so the first
    # Linear has in_features = 64*8*8 = 4096.
    N, in_c, H, W = 2, 4, 16, 16
    n_classes = 10
    H2, W2 = H // 2, W // 2

    key = jax.random.PRNGKey(0)
    kx, kp = jax.random.split(key)
    x = jax.random.normal(kx, (N, in_c, H, W), jnp.float32)   # NCHW like PyTorch
    params = init_params(kp, in_c, n_classes, H2, W2)

    # One-time weight preprocessing (folded BN, permuted/bf16 weights) — kept
    # OUT of the jitted forward so it never runs per call.
    pparams = jax.tree_util.tree_map(jax.block_until_ready,
                                     preprocess_params(params, H2, W2))

    forward = jax.jit(cnn_classifier_forward)
    out = forward(x, pparams)
    jax.block_until_ready(out)
    assert out.shape == (N, n_classes)
    assert bool(jnp.all((out >= 0.0) & (out <= 1.0)))
    assert bool(jnp.all(jnp.isfinite(out)))
    print("KERNEL_OK")
</pallas_src>

<mosaic_0001>
module attributes {stable_mosaic.version = 11 : i64} {
  func.func @_fused_matmul_kernel_single(%arg0: i32, %arg1: i32, %arg2: memref<512x36xbf16, #tpu.memory_space<vmem>>, %arg3: memref<36x32xbf16, #tpu.memory_space<vmem>>, %arg4: memref<1x32xf32, #tpu.memory_space<vmem>>, %arg5: memref<1x32xf32, #tpu.memory_space<vmem>>, %arg6: memref<512x32xbf16, #tpu.memory_space<vmem>>) attributes {dimension_semantics = [#tpu.dimension_semantics<parallel>, #tpu.dimension_semantics<parallel>], iteration_bounds = array<i64: 1, 1>, scalar_prefetch = 0 : i64, scratch_operands = 0 : i64, tpu.core_type = #tpu.core_type<tc>, window_params = [{transform_indices = @transform_0, window_bounds = array<i64: 512, 36>}, {transform_indices = @transform_1, window_bounds = array<i64: 36, 32>}, {transform_indices = @transform_2, window_bounds = array<i64: 1, 32>}, {transform_indices = @transform_3, window_bounds = array<i64: 1, 32>}, {transform_indices = @transform_4, window_bounds = array<i64: 512, 32>}]} {
    %c0 = arith.constant 0 : index
    %c0_0 = arith.constant 0 : index
    %0 = vector.load %arg2[%c0, %c0_0] : memref<512x36xbf16, #tpu.memory_space<vmem>>, vector<512x36xbf16>
    %c0_1 = arith.constant 0 : index
    %c0_2 = arith.constant 0 : index
    %1 = vector.load %arg3[%c0_1, %c0_2] : memref<36x32xbf16, #tpu.memory_space<vmem>>, vector<36x32xbf16>
    %cst = arith.constant dense<0.000000e+00> : vector<512x32xf32>
    %2 = tpu.matmul %0, %1, %cst {dimension_numbers = #tpu.dot_dimension_numbers<[1], [0], [0], [1], [0, 0, 1, 1], [], []>} : vector<512x36xbf16>, vector<36x32xbf16>, vector<512x32xf32> -> vector<512x32xf32>
    %c0_3 = arith.constant 0 : index
    %c0_4 = arith.constant 0 : index
    %3 = vector.load %arg4[%c0_3, %c0_4] : memref<1x32xf32, #tpu.memory_space<vmem>>, vector<1x32xf32>
    %4 = vector.broadcast %3 : vector<1x32xf32> to vector<512x32xf32>
    %5 = arith.mulf %2, %4 : vector<512x32xf32>
    %c0_5 = arith.constant 0 : index
    %c0_6 = arith.constant 0 : index
    %6 = vector.load %arg5[%c0_5, %c0_6] : memref<1x32xf32, #tpu.memory_space<vmem>>, vector<1x32xf32>
    %7 = vector.broadcast %6 : vector<1x32xf32> to vector<512x32xf32>
    %8 = arith.addf %5, %7 : vector<512x32xf32>
    %cst_7 = arith.constant 0.000000e+00 : f32
    %9 = vector.broadcast %cst_7 : f32 to vector<512x32xf32>
    %10 = arith.maximumf %8, %9 : vector<512x32xf32>
    %11 = arith.truncf %10 : vector<512x32xf32> to vector<512x32xbf16>
    %c0_8 = arith.constant 0 : index
    %c0_9 = arith.constant 0 : index
    %12 = vector.load %arg6[%c0_8, %c0_9] : memref<512x32xbf16, #tpu.memory_space<vmem>>, vector<512x32xbf16>
    tpu.vector_store %arg6[%c0_8, %c0_9], %11 {strides = array<i32>} : memref<512x32xbf16, #tpu.memory_space<vmem>>, vector<512x32xbf16>,
    return
  }
  func.func @transform_0(%arg0: i32, %arg1: i32) -> (i32, i32) {
    %c0_i32 = arith.constant 0 : i32
    %c0_i32_0 = arith.constant 0 : i32
    return %arg0, %c0_i32 : i32, i32
  }
  func.func @transform_1(%arg0: i32, %arg1: i32) -> (i32, i32) {
    %c0_i32 = arith.constant 0 : i32
    %c0_i32_0 = arith.constant 0 : i32
    return %c0_i32, %arg1 : i32, i32
  }
  func.func @transform_2(%arg0: i32, %arg1: i32) -> (i32, i32) {
    %c0_i32 = arith.constant 0 : i32
    %c0_i32_0 = arith.constant 0 : i32
    return %c0_i32, %arg1 : i32, i32
  }
  func.func @transform_3(%arg0: i32, %arg1: i32) -> (i32, i32) {
    %c0_i32 = arith.constant 0 : i32
    %c0_i32_0 = arith.constant 0 : i32
    return %c0_i32, %arg1 : i32, i32
  }
  func.func @transform_4(%arg0: i32, %arg1: i32) -> (i32, i32) {
    %c0_i32 = arith.constant 0 : i32
    return %arg0, %arg1 : i32, i32
  }
}

module attributes {stable_mosaic.version = 11 : i64} {
  func.func @_fused_matmul_kernel_single(%arg0: i32, %arg1: i32, %arg2: memref<128x288xbf16, #tpu.memory_space<vmem>>, %arg3: memref<288x64xbf16, #tpu.memory_space<vmem>>, %arg4: memref<1x64xf32, #tpu.memory_space<vmem>>, %arg5: memref<1x64xf32, #tpu.memory_space<vmem>>, %arg6: memref<128x64xbf16, #tpu.memory_space<vmem>>) attributes {dimension_semantics = [#tpu.dimension_semantics<parallel>, #tpu.dimension_semantics<parallel>], iteration_bounds = array<i64: 1, 1>, scalar_prefetch = 0 : i64, scratch_operands = 0 : i64, tpu.core_type = #tpu.core_type<tc>, window_params = [{transform_indices = @transform_0, window_bounds = array<i64: 128, 288>}, {transform_indices = @transform_1, window_bounds = array<i64: 288, 64>}, {transform_indices = @transform_2, window_bounds = array<i64: 1, 64>}, {transform_indices = @transform_3, window_bounds = array<i64: 1, 64>}, {transform_indices = @transform_4, window_bounds = array<i64: 128, 64>}]} {
    %c0 = arith.constant 0 : index
    %c0_0 = arith.constant 0 : index
    %0 = vector.load %arg2[%c0, %c0_0] : memref<128x288xbf16, #tpu.memory_space<vmem>>, vector<128x288xbf16>
    %c0_1 = arith.constant 0 : index
    %c0_2 = arith.constant 0 : index
    %1 = vector.load %arg3[%c0_1, %c0_2] : memref<288x64xbf16, #tpu.memory_space<vmem>>, vector<288x64xbf16>
    %cst = arith.constant dense<0.000000e+00> : vector<128x64xf32>
    %2 = tpu.matmul %0, %1, %cst {dimension_numbers = #tpu.dot_dimension_numbers<[1], [0], [0], [1], [0, 0, 1, 1], [], []>} : vector<128x288xbf16>, vector<288x64xbf16>, vector<128x64xf32> -> vector<128x64xf32>
    %c0_3 = arith.constant 0 : index
    %c0_4 = arith.constant 0 : index
    %3 = vector.load %arg4[%c0_3, %c0_4] : memref<1x64xf32, #tpu.memory_space<vmem>>, vector<1x64xf32>
    %4 = vector.broadcast %3 : vector<1x64xf32> to vector<128x64xf32>
    %5 = arith.mulf %2, %4 : vector<128x64xf32>
    %c0_5 = arith.constant 0 : index
    %c0_6 = arith.constant 0 : index
    %6 = vector.load %arg5[%c0_5, %c0_6] : memref<1x64xf32, #tpu.memory_space<vmem>>, vector<1x64xf32>
    %7 = vector.broadcast %6 : vector<1x64xf32> to vector<128x64xf32>
    %8 = arith.addf %5, %7 : vector<128x64xf32>
    %cst_7 = arith.constant 0.000000e+00 : f32
    %9 = vector.broadcast %cst_7 : f32 to vector<128x64xf32>
    %10 = arith.maximumf %8, %9 : vector<128x64xf32>
    %11 = arith.truncf %10 : vector<128x64xf32> to vector<128x64xbf16>
    %c0_8 = arith.constant 0 : index
    %c0_9 = arith.constant 0 : index
    %12 = vector.load %arg6[%c0_8, %c0_9] : memref<128x64xbf16, #tpu.memory_space<vmem>>, vector<128x64xbf16>
    tpu.vector_store %arg6[%c0_8, %c0_9], %11 {strides = array<i32>} : memref<128x64xbf16, #tpu.memory_space<vmem>>, vector<128x64xbf16>,
    return
  }
  func.func @transform_0(%arg0: i32, %arg1: i32) -> (i32, i32) {
    %c0_i32 = arith.constant 0 : i32
    %c0_i32_0 = arith.constant 0 : i32
    return %arg0, %c0_i32 : i32, i32
  }
  func.func @transform_1(%arg0: i32, %arg1: i32) -> (i32, i32) {
    %c0_i32 = arith.constant 0 : i32
    %c0_i32_0 = arith.constant 0 : i32
    return %c0_i32, %arg1 : i32, i32
  }
  func.func @transform_2(%arg0: i32, %arg1: i32) -> (i32, i32) {
    %c0_i32 = arith.constant 0 : i32
    %c0_i32_0 = arith.constant 0 : i32
    return %c0_i32, %arg1 : i32, i32
  }
  func.func @transform_3(%arg0: i32, %arg1: i32) -> (i32, i32) {
    %c0_i32 = arith.constant 0 : i32
    %c0_i32_0 = arith.constant 0 : i32
    return %c0_i32, %arg1 : i32, i32
  }
  func.func @transform_4(%arg0: i32, %arg1: i32) -> (i32, i32) {
    %c0_i32 = arith.constant 0 : i32
    return %arg0, %arg1 : i32, i32
  }
}

module attributes {stable_mosaic.version = 11 : i64} {
  func.func @_fused_matmul_kernel_multi(%arg0: i32, %arg1: i32, %arg2: i32, %arg3: memref<16x2048xbf16, #tpu.memory_space<vmem>>, %arg4: memref<2048x512xbf16, #tpu.memory_space<vmem>>, %arg5: memref<1x512xf32, #tpu.memory_space<vmem>>, %arg6: memref<16x512xbf16, #tpu.memory_space<vmem>>, %arg7: memref<16x512xf32, #tpu.memory_space<vmem>>) attributes {dimension_semantics = [#tpu.dimension_semantics<parallel>, #tpu.dimension_semantics<parallel>, #tpu.dimension_semantics<arbitrary>], iteration_bounds = array<i64: 1, 2, 2>, scalar_prefetch = 0 : i64, scratch_operands = 1 : i64, tpu.core_type = #tpu.core_type<tc>, window_params = [{transform_indices = @transform_0, window_bounds = array<i64: 16, 2048>}, {transform_indices = @transform_1, window_bounds = array<i64: 2048, 512>}, {transform_indices = @transform_2, window_bounds = array<i64: 1, 512>}, {transform_indices = @transform_3, window_bounds = array<i64: 16, 512>}]} {
    %c0_i32 = arith.constant 0 : i32
    %0 = arith.cmpi eq, %arg2, %c0_i32 : i32
    %1 = arith.extui %0 : i1 to i32
    %c0_i32_0 = arith.constant 0 : i32
    %2 = arith.cmpi ne, %1, %c0_i32_0 : i32
    scf.if %2 {
      %cst_9 = arith.constant 0.000000e+00 : f32
      %12 = vector.broadcast %cst_9 : f32 to vector<16x512xf32>
      %c0_10 = arith.constant 0 : index
      %c0_11 = arith.constant 0 : index
      %13 = vector.load %arg7[%c0_10, %c0_11] : memref<16x512xf32, #tpu.memory_space<vmem>>, vector<16x512xf32>
      tpu.vector_store %arg7[%c0_10, %c0_11], %12 {strides = array<i32>} : memref<16x512xf32, #tpu.memory_space<vmem>>, vector<16x512xf32>,
    } else {
    }
    %c0 = arith.constant 0 : index
    %c0_1 = arith.constant 0 : index
    %3 = vector.load %arg7[%c0, %c0_1] : memref<16x512xf32, #tpu.memory_space<vmem>>, vector<16x512xf32>
    %c0_2 = arith.constant 0 : index
    %c0_3 = arith.constant 0 : index
    %4 = vector.load %arg3[%c0_2, %c0_3] : memref<16x2048xbf16, #tpu.memory_space<vmem>>, vector<16x2048xbf16>
    %c0_4 = arith.constant 0 : index
    %c0_5 = arith.constant 0 : index
    %5 = vector.load %arg4[%c0_4, %c0_5] : memref<2048x512xbf16, #tpu.memory_space<vmem>>, vector<2048x512xbf16>
    %cst = arith.constant dense<0.000000e+00> : vector<16x512xf32>
    %6 = tpu.matmul %4, %5, %cst {dimension_numbers = #tpu.dot_dimension_numbers<[1], [0], [0], [1], [0, 0, 1, 1], [], []>} : vector<16x2048xbf16>, vector<2048x512xbf16>, vector<16x512xf32> -> vector<16x512xf32>
    %7 = arith.addf %3, %6 : vector<16x512xf32>
    %c0_6 = arith.constant 0 : index
    %c0_7 = arith.constant 0 : index
    %8 = vector.load %arg7[%c0_6, %c0_7] : memref<16x512xf32, #tpu.memory_space<vmem>>, vector<16x512xf32>
    tpu.vector_store %arg7[%c0_6, %c0_7], %7 {strides = array<i32>} : memref<16x512xf32, #tpu.memory_space<vmem>>, vector<16x512xf32>,
    %c1_i32 = arith.constant 1 : i32
    %9 = arith.cmpi eq, %arg2, %c1_i32 : i32
    %10 = arith.extui %9 : i1 to i32
    %c0_i32_8 = arith.constant 0 : i32
    %11 = arith.cmpi ne, %10, %c0_i32_8 : i32
    scf.if %11 {
      %c0_9 = arith.constant 0 : index
      %c0_10 = arith.constant 0 : index
      %12 = vector.load %arg7[%c0_9, %c0_10] : memref<16x512xf32, #tpu.memory_space<vmem>>, vector<16x512xf32>
      %c0_11 = arith.constant 0 : index
      %c0_12 = arith.constant 0 : index
      %13 = vector.load %arg5[%c0_11, %c0_12] : memref<1x512xf32, #tpu.memory_space<vmem>>, vector<1x512xf32>
      %14 = vector.broadcast %13 : vector<1x512xf32> to vector<16x512xf32>
      %15 = arith.addf %12, %14 : vector<16x512xf32>
      %16 = arith.truncf %15 : vector<16x512xf32> to vector<16x512xbf16>
      %c0_13 = arith.constant 0 : index
      %c0_14 = arith.constant 0 : index
      %17 = vector.load %arg6[%c0_13, %c0_14] : memref<16x512xbf16, #tpu.memory_space<vmem>>, vector<16x512xbf16>
      tpu.vector_store %arg6[%c0_13, %c0_14], %16 {strides = array<i32>} : memref<16x512xbf16, #tpu.memory_space<vmem>>, vector<16x512xbf16>,
    } else {
    }
    return
  }
  func.func @transform_0(%arg0: i32, %arg1: i32, %arg2: i32) -> (i32, i32) {
    %c0_i32 = arith.constant 0 : i32
    return %arg0, %arg2 : i32, i32
  }
  func.func @transform_1(%arg0: i32, %arg1: i32, %arg2: i32) -> (i32, i32) {
    %c0_i32 = arith.constant 0 : i32
    return %arg2, %arg1 : i32, i32
  }
  func.func @transform_2(%arg0: i32, %arg1: i32, %arg2: i32) -> (i32, i32) {
    %c0_i32 = arith.constant 0 : i32
    %c0_i32_0 = arith.constant 0 : i32
    return %c0_i32, %arg1 : i32, i32
  }
  func.func @transform_3(%arg0: i32, %arg1: i32, %arg2: i32) -> (i32, i32) {
    %c0_i32 = arith.constant 0 : i32
    return %arg0, %arg1 : i32, i32
  }
}

module attributes {stable_mosaic.version = 11 : i64} {
  func.func @_fused_matmul_kernel_single(%arg0: i32, %arg1: i32, %arg2: memref<16x1024xbf16, #tpu.memory_space<vmem>>, %arg3: memref<1024x10xbf16, #tpu.memory_space<vmem>>, %arg4: memref<1x10xf32, #tpu.memory_space<vmem>>, %arg5: memref<16x10xf32, #tpu.memory_space<vmem>>) attributes {dimension_semantics = [#tpu.dimension_semantics<parallel>, #tpu.dimension_semantics<parallel>], iteration_bounds = array<i64: 1, 1>, scalar_prefetch = 0 : i64, scratch_operands = 0 : i64, tpu.core_type = #tpu.core_type<tc>, window_params = [{transform_indices = @transform_0, window_bounds = array<i64: 16, 1024>}, {transform_indices = @transform_1, window_bounds = array<i64: 1024, 10>}, {transform_indices = @transform_2, window_bounds = array<i64: 1, 10>}, {transform_indices = @transform_3, window_bounds = array<i64: 16, 10>}]} {
    %c0 = arith.constant 0 : index
    %c0_0 = arith.constant 0 : index
    %0 = vector.load %arg2[%c0, %c0_0] : memref<16x1024xbf16, #tpu.memory_space<vmem>>, vector<16x1024xbf16>
    %c0_1 = arith.constant 0 : index
    %c0_2 = arith.constant 0 : index
    %1 = vector.load %arg3[%c0_1, %c0_2] : memref<1024x10xbf16, #tpu.memory_space<vmem>>, vector<1024x10xbf16>
    %cst = arith.constant dense<0.000000e+00> : vector<16x10xf32>
    %2 = tpu.matmul %0, %1, %cst {dimension_numbers = #tpu.dot_dimension_numbers<[1], [0], [0], [1], [0, 0, 1, 1], [], []>} : vector<16x1024xbf16>, vector<1024x10xbf16>, vector<16x10xf32> -> vector<16x10xf32>
    %c0_3 = arith.constant 0 : index
    %c0_4 = arith.constant 0 : index
    %3 = vector.load %arg4[%c0_3, %c0_4] : memref<1x10xf32, #tpu.memory_space<vmem>>, vector<1x10xf32>
    %4 = vector.broadcast %3 : vector<1x10xf32> to vector<16x10xf32>
    %5 = arith.addf %2, %4 : vector<16x10xf32>
    %6 = arith.negf %5 : vector<16x10xf32>
    %7 = math.exp %6 : vector<16x10xf32>
    %cst_5 = arith.constant 1.000000e+00 : f32
    %8 = vector.broadcast %cst_5 : f32 to vector<16x10xf32>
    %9 = arith.addf %8, %7 : vector<16x10xf32>
    %10 = arith.divf %8, %9 : vector<16x10xf32>
    %c0_6 = arith.constant 0 : index
    %c0_7 = arith.constant 0 : index
    %11 = vector.load %arg5[%c0_6, %c0_7] : memref<16x10xf32, #tpu.memory_space<vmem>>, vector<16x10xf32>
    tpu.vector_store %arg5[%c0_6, %c0_7], %10 {strides = array<i32>} : memref<16x10xf32, #tpu.memory_space<vmem>>, vector<16x10xf32>,
    return
  }
  func.func @transform_0(%arg0: i32, %arg1: i32) -> (i32, i32) {
    %c0_i32 = arith.constant 0 : i32
    %c0_i32_0 = arith.constant 0 : i32
    return %arg0, %c0_i32 : i32, i32
  }
  func.func @transform_1(%arg0: i32, %arg1: i32) -> (i32, i32) {
    %c0_i32 = arith.constant 0 : i32
    %c0_i32_0 = arith.constant 0 : i32
    return %c0_i32, %arg1 : i32, i32
  }
  func.func @transform_2(%arg0: i32, %arg1: i32) -> (i32, i32) {
    %c0_i32 = arith.constant 0 : i32
    %c0_i32_0 = arith.constant 0 : i32
    return %c0_i32, %arg1 : i32, i32
  }
  func.func @transform_3(%arg0: i32, %arg1: i32) -> (i32, i32) {
    %c0_i32 = arith.constant 0 : i32
    return %arg0, %arg1 : i32, i32
  }
}

</mosaic_0001>

<llo_original>
// kernel: cnn_classifier_forward.4
$region0: #{cnn_classifier_forward.4}
  #allocation0 [shape = 'u32[]', space=smem, size = 0x4, offset = 0x4, fixed_abs, tag = 'smem constant byte address 0x4 - core index']
  #allocation1 [shape = 'u32[72,128]{1,0:T(1,128)}', space=vmem, size = 0x9000, scoped, tag = 'internal scratch']
  %s0 = inlined_call_operand.vmem [shape: bf16[512,36], index: 0, kind: input, shape index: {}]
  %s1 = inlined_call_operand.vmem [shape: bf16[36,32], index: 1, kind: input, shape index: {}]
  %s2 = inlined_call_operand.hbm [shape: f32[1,32], index: 2, kind: input, shape index: {}]
  %s3 = inlined_call_operand.hbm [shape: f32[1,32], index: 3, kind: input, shape index: {}]
  %s4 = inlined_call_operand.vmem [shape: bf16[512,32], index: 4, kind: output, shape index: {}]
  %s5 = sld [smem:[#allocation0]]
  $region34: #{cnn_classifier_forward.4} parent=0
    _
  %s7 = ssub.s32 1, %s5
  %s8 = scalar_select 0, %s7, %s5
  $region1: #{cnn_classifier_forward.4} parent=0
    #allocation2 [shape = 'u8[512]{0}', space=vmem, size = 0x400, scoped, tag = 'input window, operand 2, single buffered']
    #allocation3 [shape = 's32[1]{0}', space=sflag, size = 0x4, scoped, tag = 'scoped memory for cnn_classifier_forward.4']
    #allocation4 [shape = 'u8[512]{0}', space=vmem, size = 0x400, scoped, tag = 'input window, operand 3, single buffered']
    #allocation5 [shape = 's32[1]{0}', space=sflag, size = 0x4, scoped, tag = 'scoped memory for cnn_classifier_forward.4']
    %9 = vsyncpa [#allocation3], 0
    %10 = vsyncpa [#allocation5], 0
    // Predicated region
    $region2: #{cnn_classifier_forward.4} parent=1 // pred_check
      _
    $region3: #{cnn_classifier_forward.4} parent=1 // pred_check_branch
      %12 = sbr.rel (0) target = $region5
    $region4: #{cnn_classifier_forward.4} parent=1 // pred_region
      _
    $region5: #{cnn_classifier_forward.4} parent=1 // pred_fallthru
      _
    // Predicated region
    $region6: #{cnn_classifier_forward.4} parent=1 // pred_check
      _
    $region7: #{cnn_classifier_forward.4} parent=1 // pred_check_branch
      %14 = sbr.rel (0) target = $region9
    $region8: #{cnn_classifier_forward.4} parent=1 // pred_region
      _
    $region9: #{cnn_classifier_forward.4} parent=1 // pred_fallthru
      _
    // Predicated region
    $region10: #{cnn_classifier_forward.4} parent=1 // pred_check
      _
    $region11: #{cnn_classifier_forward.4} parent=1 // pred_check_branch
      %16 = sbr.rel (0) target = $region13
    $region12: #{cnn_classifier_forward.4} parent=1 // pred_region
      %18 = vsyncadd [#allocation3], 0
      %s20 = sshll.u32 %s2, 4
      %s21 = int_to_ptr.hbm [resolvable:$true] %s20
      %s22 = sshll.u32 [#allocation2], 4
      %s23 = int_to_ptr.vmem [resolvable:$true] %s22
      %25 = dma.hbm_to_vmem [thread:$0]  %s21, 16, %s23, [#allocation3]
    $region13: #{cnn_classifier_forward.4} parent=1 // pred_fallthru
      _
    // Predicated region
    $region14: #{cnn_classifier_forward.4} parent=1 // pred_check
      _
    $region15: #{cnn_classifier_forward.4} parent=1 // pred_check_branch
      %27 = sbr.rel (0) target = $region17
    $region16: #{cnn_classifier_forward.4} parent=1 // pred_region
      %29 = vsyncadd [#allocation5], 0
      %s31 = sshll.u32 %s3, 4
      %s32 = int_to_ptr.hbm [resolvable:$true] %s31
      %s33 = sshll.u32 [#allocation4], 4
      %s34 = int_to_ptr.vmem [resolvable:$true] %s33
      %36 = dma.hbm_to_vmem [thread:$0]  %s32, 16, %s34, [#allocation5]
    $region17: #{cnn_classifier_forward.4} parent=1 // pred_fallthru
      _
    // Predicated region
    $region18: #{cnn_classifier_forward.4} parent=1 // pred_check
      _
    $region19: #{cnn_classifier_forward.4} parent=1 // pred_check_branch
      %38 = sbr.rel (0) target = $region21
    $region20: #{cnn_classifier_forward.4} parent=1 // pred_region
      %40 = dma.done [#allocation3], 16
    $region21: #{cnn_classifier_forward.4} parent=1 // pred_fallthru
      _
    // Predicated region
    $region22: #{cnn_classifier_forward.4} parent=1 // pred_check
      _
    $region23: #{cnn_classifier_forward.4} parent=1 // pred_check_branch
      %42 = sbr.rel (0) target = $region25
    $region24: #{cnn_classifier_forward.4} parent=1 // pred_region
      %44 = dma.done [#allocation5], 16
    $region25: #{cnn_classifier_forward.4} parent=1 // pred_fallthru
      _
    %v46 = vld [vmem:[%s0] sm:$0xf]
    %v47 = vld [vmem:[%s0 + $0x4] sm:$0xf]
    %v48 = vld [vmem:[%s0 + $0x8] sm:$0xf]
    %v49 = vld [vmem:[%s0 + $0xc] sm:$0xf]
    %v50 = vld [vmem:[%s0 + $0x10] sm:$0xf]
    %v51 = vld [vmem:[%s0 + $0x14] sm:$0xf]
    %v52 = vld [vmem:[%s0 + $0x18] sm:$0xf]
    %v53 = vld [vmem:[%s0 + $0x1c] sm:$0xf]
    %v54 = vld [vmem:[%s0 + $0x20] sm:$0xf]
    %v55 = vld [vmem:[%s0 + $0x24] sm:$0xf]
    %v56 = vld [vmem:[%s0 + $0x28] sm:$0xf]
    %v57 = vld [vmem:[%s0 + $0x2c] sm:$0xf]
    %v58 = vld [vmem:[%s0 + $0x30] sm:$0xf]
    %v59 = vld [vmem:[%s0 + $0x34] sm:$0xf]
    %v60 = vld [vmem:[%s0 + $0x38] sm:$0xf]
    %v61 = vld [vmem:[%s0 + $0x3c] sm:$0xf]
    %v62 = vld [vmem:[%s0 + $0x40] sm:$0xf]
    %v63 = vld [vmem:[%s0 + $0x44] sm:$0xf]
    %v64 = vld [vmem:[%s0 + $0x48] sm:$0xf]
    %v65 = vld [vmem:[%s0 + $0x4c] sm:$0xf]
    %v66 = vld [vmem:[%s0 + $0x50] sm:$0xf]
    %v67 = vld [vmem:[%s0 + $0x54] sm:$0xf]
    %v68 = vld [vmem:[%s0 + $0x58] sm:$0xf]
    %v69 = vld [vmem:[%s0 + $0x5c] sm:$0xf]
    %v70 = vld [vmem:[%s0 + $0x60] sm:$0xf]
    %v71 = vld [vmem:[%s0 + $0x64] sm:$0xf]
    %v72 = vld [vmem:[%s0 + $0x68] sm:$0xf]
    %v73 = vld [vmem:[%s0 + $0x6c] sm:$0xf]
    %v74 = vld [vmem:[%s0 + $0x70] sm:$0xf]
    %v75 = vld [vmem:[%s0 + $0x74] sm:$0xf]
    %v76 = vld [vmem:[%s0 + $0x78] sm:$0xf]
    %v77 = vld [vmem:[%s0 + $0x7c] sm:$0xf]
    %v78 = vld [vmem:[%s0 + $0x80] sm:$0xf]
    %v79 = vld [vmem:[%s0 + $0x84] sm:$0xf]
    %v80 = vld [vmem:[%s0 + $0x88] sm:$0xf]
    %v81 = vld [vmem:[%s0 + $0x8c] sm:$0xf]
    %v82 = vld [vmem:[%s0 + $0x90] sm:$0xf]
    %v83 = vld [vmem:[%s0 + $0x94] sm:$0xf]
    %v84 = vld [vmem:[%s0 + $0x98] sm:$0xf]
    %v85 = vld [vmem:[%s0 + $0x9c] sm:$0xf]
    %v86 = vld [vmem:[%s0 + $0xa0] sm:$0xf]
    %v87 = vld [vmem:[%s0 + $0xa4] sm:$0xf]
    %v88 = vld [vmem:[%s0 + $0xa8] sm:$0xf]
    %v89 = vld [vmem:[%s0 + $0xac] sm:$0xf]
    %v90 = vld [vmem:[%s0 + $0xb0] sm:$0xf]
    %v91 = vld [vmem:[%s0 + $0xb4] sm:$0xf]
    %v92 = vld [vmem:[%s0 + $0xb8] sm:$0xf]
    %v93 = vld [vmem:[%s0 + $0xbc] sm:$0xf]
    %v94 = vld [vmem:[%s0 + $0xc0] sm:$0xf]
    %v95 = vld [vmem:[%s0 + $0xc4] sm:$0xf]
    %v96 = vld [vmem:[%s0 + $0xc8] sm:$0xf]
    %v97 = vld [vmem:[%s0 + $0xcc] sm:$0xf]
    %v98 = vld [vmem:[%s0 + $0xd0] sm:$0xf]
    %v99 = vld [vmem:[%s0 + $0xd4] sm:$0xf]
    %v100 = vld [vmem:[%s0 + $0xd8] sm:$0xf]
    %v101 = vld [vmem:[%s0 + $0xdc] sm:$0xf]
    %v102 = vld [vmem:[%s0 + $0xe0] sm:$0xf]
    %v103 = vld [vmem:[%s0 + $0xe4] sm:$0xf]
    %v104 = vld [vmem:[%s0 + $0xe8] sm:$0xf]
    %v105 = vld [vmem:[%s0 + $0xec] sm:$0xf]
    %v106 = vld [vmem:[%s0 + $0xf0] sm:$0xf]
    %v107 = vld [vmem:[%s0 + $0xf4] sm:$0xf]
    %v108 = vld [vmem:[%s0 + $0xf8] sm:$0xf]
    %v109 = vld [vmem:[%s0 + $0xfc] sm:$0xf]
    %v110 = vld [vmem:[%s1] sm:$0xf]
    %v111 = vld [vmem:[%s1 + $0x4] sm:$0xf]
    %v112 = vld [vmem:[%s1 + $0x8] sm:$0xf]
    %v113 = vld [vmem:[%s1 + $0xc] sm:$0xf]
    %v114 = vld [vmem:[%s1 + $0x10] sm:$0x3]
    %v179 = vunpack.c.l.b16 %v46
    %v180 = vunpack.c.l.b16 %v47
    %v181 = vunpack.c.l.b16 %v48
    %v182 = vunpack.c.l.b16 %v49
    %v183 = vunpack.c.l.b16 %v50
    %v184 = vunpack.c.l.b16 %v51
    %v185 = vunpack.c.l.b16 %v52
    %v186 = vunpack.c.l.b16 %v53
    %v187 = vunpack.c.l.b16 %v54
    %v188 = vunpack.c.l.b16 %v55
    %v189 = vunpack.c.l.b16 %v56
    %v190 = vunpack.c.l.b16 %v57
    %v191 = vunpack.c.l.b16 %v58
    %v192 = vunpack.c.l.b16 %v59
    %v193 = vunpack.c.l.b16 %v60
    %v194 = vunpack.c.l.b16 %v61
    %v195 = vunpack.c.l.b16 %v62
    %v196 = vunpack.c.l.b16 %v63
    %v197 = vunpack.c.l.b16 %v64
    %v198 = vunpack.c.l.b16 %v65
    %v199 = vunpack.c.l.b16 %v66
    %v200 = vunpack.c.l.b16 %v67
    %v201 = vunpack.c.l.b16 %v68
    %v202 = vunpack.c.l.b16 %v69
    %v203 = vunpack.c.l.b16 %v70
    %v204 = vunpack.c.l.b16 %v71
    %v205 = vunpack.c.l.b16 %v72
    %v206 = vunpack.c.l.b16 %v73
    %v207 = vunpack.c.l.b16 %v74
    %v208 = vunpack.c.l.b16 %v75
    %v209 = vunpack.c.l.b16 %v76
    %v210 = vunpack.c.l.b16 %v77
    %v211 = vunpack.c.l.b16 %v78
    %v212 = vunpack.c.l.b16 %v79
    %v213 = vunpack.c.l.b16 %v80
    %v214 = vunpack.c.l.b16 %v81
    %v215 = vunpack.c.l.b16 %v82
    %v216 = vunpack.c.l.b16 %v83
    %v217 = vunpack.c.l.b16 %v84
    %v218 = vunpack.c.l.b16 %v85
    %v219 = vunpack.c.l.b16 %v86
    %v220 = vunpack.c.l.b16 %v87
    %v221 = vunpack.c.l.b16 %v88
    %v222 = vunpack.c.l.b16 %v89
    %v223 = vunpack.c.l.b16 %v90
    %v224 = vunpack.c.l.b16 %v91
    %v225 = vunpack.c.l.b16 %v92
    %v226 = vunpack.c.l.b16 %v93
    %v227 = vunpack.c.l.b16 %v94
    %v228 = vunpack.c.l.b16 %v95
    %v229 = vunpack.c.l.b16 %v96
    %v230 = vunpack.c.l.b16 %v97
    %v231 = vunpack.c.l.b16 %v98
    %v232 = vunpack.c.l.b16 %v99
    %v233 = vunpack.c.l.b16 %v100
    %v234 = vunpack.c.l.b16 %v101
    %v235 = vunpack.c.l.b16 %v102
    %v236 = vunpack.c.l.b16 %v103
    %v237 = vunpack.c.l.b16 %v104
    %v238 = vunpack.c.l.b16 %v105
    %v239 = vunpack.c.l.b16 %v106
    %v240 = vunpack.c.l.b16 %v107
    %v241 = vunpack.c.l.b16 %v108
    %v242 = vunpack.c.l.b16 %v109
    %v243 = vpack.c.b16 %v180, %v179
    %v244 = vpack.c.b16 %v182, %v181
    %v245 = vpack.c.b16 %v184, %v183
    %v246 = vpack.c.b16 %v186, %v185
    %v247 = vpack.c.b16 %v188, %v187
    %v248 = vpack.c.b16 %v190, %v189
    %v249 = vpack.c.b16 %v192, %v191
    %v250 = vpack.c.b16 %v194, %v193
    %v251 = vpack.c.b16 %v196, %v195
    %v252 = vpack.c.b16 %v198, %v197
    %v253 = vpack.c.b16 %v200, %v199
    %v254 = vpack.c.b16 %v202, %v201
    %v255 = vpack.c.b16 %v204, %v203
    %v256 = vpack.c.b16 %v206, %v205
    %v257 = vpack.c.b16 %v208, %v207
    %v258 = vpack.c.b16 %v210, %v209
    %v259 = vpack.c.b16 %v212, %v211
    %v260 = vpack.c.b16 %v214, %v213
    %v261 = vpack.c.b16 %v216, %v215
    %v262 = vpack.c.b16 %v218, %v217
    %v263 = vpack.c.b16 %v220, %v219
    %v264 = vpack.c.b16 %v222, %v221
    %v265 = vpack.c.b16 %v224, %v223
    %v266 = vpack.c.b16 %v226, %v225
    %v267 = vpack.c.b16 %v228, %v227
    %v268 = vpack.c.b16 %v230, %v229
    %v269 = vpack.c.b16 %v232, %v231
    %v270 = vpack.c.b16 %v234, %v233
    %v271 = vpack.c.b16 %v236, %v235
    %v272 = vpack.c.b16 %v238, %v237
    %v273 = vpack.c.b16 %v240, %v239
    %v274 = vpack.c.b16 %v242, %v241
    %v280 = vunpack.c.l.b16 %v110
    %v281 = vunpack.c.l.b16 %v111
    %v282 = vunpack.c.l.b16 %v112
    %v283 = vunpack.c.l.b16 %v113
    %v284 = vunpack.c.l.b16 %v114
    %v285 = vpack.c.b16 %v281, %v280
    %v286 = vpack.c.b16 %v283, %v282
    %v287 = vpack.c.b16 %v284, %v284
    %vm290 = vcmask 293888
    %v292 = vsel %vm290, %v243, 0
    %v295 = vsel %vm290, %v244, 0
    %v298 = vsel %vm290, %v245, 0
    %v301 = vsel %vm290, %v246, 0
    %v304 = vsel %vm290, %v247, 0
    %v307 = vsel %vm290, %v248, 0
    %v310 = vsel %vm290, %v249, 0
    %v313 = vsel %vm290, %v250, 0
    %v316 = vsel %vm290, %v251, 0
    %v319 = vsel %vm290, %v252, 0
    %v322 = vsel %vm290, %v253, 0
    %v325 = vsel %vm290, %v254, 0
    %v328 = vsel %vm290, %v255, 0
    %v331 = vsel %vm290, %v256, 0
    %v334 = vsel %vm290, %v257, 0
    %v337 = vsel %vm290, %v258, 0
    %v340 = vsel %vm290, %v259, 0
    %v343 = vsel %vm290, %v260, 0
    %v346 = vsel %vm290, %v261, 0
    %v349 = vsel %vm290, %v262, 0
    %v352 = vsel %vm290, %v263, 0
    %v355 = vsel %vm290, %v264, 0
    %v358 = vsel %vm290, %v265, 0
    %v361 = vsel %vm290, %v266, 0
    %v364 = vsel %vm290, %v267, 0
    %v367 = vsel %vm290, %v268, 0
    %v370 = vsel %vm290, %v269, 0
    %v373 = vsel %vm290, %v270, 0
    %v376 = vsel %vm290, %v271, 0
    %v379 = vsel %vm290, %v272, 0
    %v382 = vsel %vm290, %v273, 0
    %v385 = vsel %vm290, %v274, 0
    %vm387 = vcmask 1041408
    %v389 = vsel %vm387, %v287, 0
    %391 = vmatpush.bf16.msra.mxu0 0
    %392 = vmatpush.bf16.msra.mxu0 0
    %393 = vmatpush.bf16.msra.mxu0 0
    %394 = vmatpush.bf16.msra.mxu0 0
    %395 = vmatpush.bf16.msra.mxu0 0
    %396 = vmatpush.bf16.msra.mxu0 %v389
    %397 = vmatpush.bf16.msra.mxu0 %v286
    %398 = vmatpush.bf16.msra.mxu0 %v285
    %399 = vmatmul.bf16.gmra.mxu0 %v292
    %v400 = vpop.f32.mrf.mxu0
    %v401 = vadd.f32 0.0, %v400
    %v402 = vpop.f32.mrf.mxu0
    %v403 = vadd.f32 0.0, %v402
    %404 = vmatmul.bf16.gmra.mxu0 %v295
    %v405 = vpop.f32.mrf.mxu0
    %v406 = vadd.f32 0.0, %v405
    %v407 = vpop.f32.mrf.mxu0
    %v408 = vadd.f32 0.0, %v407
    %409 = vmatmul.bf16.gmra.mxu0 %v298
    %v410 = vpop.f32.mrf.mxu0
    %v411 = vadd.f32 0.0, %v410
    %v412 = vpop.f32.mrf.mxu0
    %v413 = vadd.f32 0.0, %v412
    %414 = vmatmul.bf16.gmra.mxu0 %v301
    %v415 = vpop.f32.mrf.mxu0
    %v416 = vadd.f32 0.0, %v415
    %v417 = vpop.f32.mrf.mxu0
    %v418 = vadd.f32 0.0, %v417
    %419 = vmatmul.bf16.gmra.mxu0 %v304
    %v420 = vpop.f32.mrf.mxu0
    %v421 = vadd.f32 0.0, %v420
    %v422 = vpop.f32.mrf.mxu0
    %v423 = vadd.f32 0.0, %v422
    %424 = vmatmul.bf16.gmra.mxu0 %v307
    %v425 = vpop.f32.mrf.mxu0
    %v426 = vadd.f32 0.0, %v425
    %v427 = vpop.f32.mrf.mxu0
    %v428 = vadd.f32 0.0, %v427
    %429 = vmatmul.bf16.gmra.mxu0 %v310
    %v430 = vpop.f32.mrf.mxu0
    %v431 = vadd.f32 0.0, %v430
    %v432 = vpop.f32.mrf.mxu0
    %v433 = vadd.f32 0.0, %v432
    %434 = vmatmul.bf16.gmra.mxu0 %v313
    %v435 = vpop.f32.mrf.mxu0
    %v436 = vadd.f32 0.0, %v435
    %v437 = vpop.f32.mrf.mxu0
    %v438 = vadd.f32 0.0, %v437
    %439 = vmatmul.bf16.gmra.mxu0 %v316
    %v440 = vpop.f32.mrf.mxu0
    %v441 = vadd.f32 0.0, %v440
    %v442 = vpop.f32.mrf.mxu0
    %v443 = vadd.f32 0.0, %v442
    %444 = vmatmul.bf16.gmra.mxu0 %v319
    %v445 = vpop.f32.mrf.mxu0
    %v446 = vadd.f32 0.0, %v445
    %v447 = vpop.f32.mrf.mxu0
    %v448 = vadd.f32 0.0, %v447
    %449 = vmatmul.bf16.gmra.mxu0 %v322
    %v450 = vpop.f32.mrf.mxu0
    %v451 = vadd.f32 0.0, %v450
    %v452 = vpop.f32.mrf.mxu0
    %v453 = vadd.f32 0.0, %v452
    %454 = vmatmul.bf16.gmra.mxu0 %v325
    %v455 = vpop.f32.mrf.mxu0
    %v456 = vadd.f32 0.0, %v455
    %v457 = vpop.f32.mrf.mxu0
    %v458 = vadd.f32 0.0, %v457
    %459 = vmatmul.bf16.gmra.mxu0 %v328
    %v460 = vpop.f32.mrf.mxu0
    %v461 = vadd.f32 0.0, %v460
    %v462 = vpop.f32.mrf.mxu0
    %v463 = vadd.f32 0.0, %v462
    %464 = vmatmul.bf16.gmra.mxu0 %v331
    %v465 = vpop.f32.mrf.mxu0
    %v466 = vadd.f32 0.0, %v465
    %v467 = vpop.f32.mrf.mxu0
    %v468 = vadd.f32 0.0, %v467
    %469 = vmatmul.bf16.gmra.mxu0 %v334
    %v470 = vpop.f32.mrf.mxu0
    %v471 = vadd.f32 0.0, %v470
    %v472 = vpop.f32.mrf.mxu0
    %v473 = vadd.f32 0.0, %v472
    %474 = vmatmul.bf16.gmra.mxu0 %v337
    %v475 = vpop.f32.mrf.mxu0
    %v476 = vadd.f32 0.0, %v475
    %v477 = vpop.f32.mrf.mxu0
    %v478 = vadd.f32 0.0, %v477
    %479 = vmatmul.bf16.gmra.mxu0 %v340
    %v480 = vpop.f32.mrf.mxu0
    %v481 = vadd.f32 0.0, %v480
    %v482 = vpop.f32.mrf.mxu0
    %v483 = vadd.f32 0.0, %v482
    %484 = vmatmul.bf16.gmra.mxu0 %v343
    %v485 = vpop.f32.mrf.mxu0
    %v486 = vadd.f32 0.0, %v485
    %v487 = vpop.f32.mrf.mxu0
    %v488 = vadd.f32 0.0, %v487
    %489 = vmatmul.bf16.gmra.mxu0 %v346
    %v490 = vpop.f32.mrf.mxu0
    %v491 = vadd.f32 0.0, %v490
    %v492 = vpop.f32.mrf.mxu0
    %v493 = vadd.f32 0.0, %v492
    %494 = vmatmul.bf16.gmra.mxu0 %v349
    %v495 = vpop.f32.mrf.mxu0
    %v496 = vadd.f32 0.0, %v495
    %v497 = vpop.f32.mrf.mxu0
    %v498 = vadd.f32 0.0, %v497
    %499 = vmatmul.bf16.gmra.mxu0 %v352
    %v500 = vpop.f32.mrf.mxu0
    %v501 = vadd.f32 0.0, %v500
    %v502 = vpop.f32.mrf.mxu0
    %v503 = vadd.f32 0.0, %v502
    %504 = vmatmul.bf16.gmra.mxu0 %v355
    %v505 = vpop.f32.mrf.mxu0
    %v506 = vadd.f32 0.0, %v505
    %v507 = vpop.f32.mrf.mxu0
    %v508 = vadd.f32 0.0, %v507
    %509 = vmatmul.bf16.gmra.mxu0 %v358
    %v510 = vpop.f32.mrf.mxu0
    %v511 = vadd.f32 0.0, %v510
    %v512 = vpop.f32.mrf.mxu0
    %v513 = vadd.f32 0.0, %v512
    %514 = vmatmul.bf16.gmra.mxu0 %v361
    %v515 = vpop.f32.mrf.mxu0
    %v516 = vadd.f32 0.0, %v515
    %v517 = vpop.f32.mrf.mxu0
    %v518 = vadd.f32 0.0, %v517
    %519 = vmatmul.bf16.gmra.mxu0 %v364
    %v520 = vpop.f32.mrf.mxu0
    %v521 = vadd.f32 0.0, %v520
    %v522 = vpop.f32.mrf.mxu0
    %v523 = vadd.f32 0.0, %v522
    %524 = vmatmul.bf16.gmra.mxu0 %v367
    %v525 = vpop.f32.mrf.mxu0
    %v526 = vadd.f32 0.0, %v525
    %v527 = vpop.f32.mrf.mxu0
    %v528 = vadd.f32 0.0, %v527
    %529 = vmatmul.bf16.gmra.mxu0 %v370
    %v530 = vpop.f32.mrf.mxu0
    %v531 = vadd.f32 0.0, %v530
    %v532 = vpop.f32.mrf.mxu0
    %v533 = vadd.f32 0.0, %v532
    %534 = vmatmul.bf16.gmra.mxu0 %v373
    %v535 = vpop.f32.mrf.mxu0
    %v536 = vadd.f32 0.0, %v535
    %v537 = vpop.f32.mrf.mxu0
    %v538 = vadd.f32 0.0, %v537
    %539 = vmatmul.bf16.gmra.mxu0 %v376
    %v540 = vpop.f32.mrf.mxu0
    %v541 = vadd.f32 0.0, %v540
    %v542 = vpop.f32.mrf.mxu0
    %v543 = vadd.f32 0.0, %v542
    %544 = vmatmul.bf16.gmra.mxu0 %v379
    %v545 = vpop.f32.mrf.mxu0
    %v546 = vadd.f32 0.0, %v545
    %v547 = vpop.f32.mrf.mxu0
    %v548 = vadd.f32 0.0, %v547
    %549 = vmatmul.bf16.gmra.mxu0 %v382
    %v550 = vpop.f32.mrf.mxu0
    %v551 = vadd.f32 0.0, %v550
    %v552 = vpop.f32.mrf.mxu0
    %v553 = vadd.f32 0.0, %v552
    %554 = vmatmul.bf16.gmra.mxu0 %v385
    %v555 = vpop.f32.mrf.mxu0
    %v556 = vadd.f32 0.0, %v555
    %v557 = vpop.f32.mrf.mxu0
    %v558 = vadd.f32 0.0, %v557
    %559 = vdwg.mxu0
    %v560 = vld [vmem:[#allocation2] sm:$0x1]
    %v562 = vperm.slane %v560, 0
    %v564 = vmul.f32 %v401, %v562
    %v565 = vmul.f32 %v403, %v562
    %v566 = vmul.f32 %v406, %v562
    %v567 = vmul.f32 %v408, %v562
    %v568 = vmul.f32 %v411, %v562
    %v569 = vmul.f32 %v413, %v562
    %v570 = vmul.f32 %v416, %v562
    %v571 = vmul.f32 %v418, %v562
    %v572 = vmul.f32 %v421, %v562
    %v573 = vmul.f32 %v423, %v562
    %v574 = vmul.f32 %v426, %v562
    %v575 = vmul.f32 %v428, %v562
    %v576 = vmul.f32 %v431, %v562
    %v577 = vmul.f32 %v433, %v562
    %v578 = vmul.f32 %v436, %v562
    %v579 = vmul.f32 %v438, %v562
    %v580 = vmul.f32 %v441, %v562
    %v581 = vmul.f32 %v443, %v562
    %v582 = vmul.f32 %v446, %v562
    %v583 = vmul.f32 %v448, %v562
    %v584 = vmul.f32 %v451, %v562
    %v585 = vmul.f32 %v453, %v562
    %v586 = vmul.f32 %v456, %v562
    %v587 = vmul.f32 %v458, %v562
    %v588 = vmul.f32 %v461, %v562
    %v589 = vmul.f32 %v463, %v562
    %v590 = vmul.f32 %v466, %v562
    %v591 = vmul.f32 %v468, %v562
    %v592 = vmul.f32 %v471, %v562
    %v593 = vmul.f32 %v473, %v562
    %v594 = vmul.f32 %v476, %v562
    %v595 = vmul.f32 %v478, %v562
    %v596 = vmul.f32 %v481, %v562
    %v597 = vmul.f32 %v483, %v562
    %v598 = vmul.f32 %v486, %v562
    %v599 = vmul.f32 %v488, %v562
    %v600 = vmul.f32 %v491, %v562
    %v601 = vmul.f32 %v493, %v562
    %v602 = vmul.f32 %v496, %v562
    %v603 = vmul.f32 %v498, %v562
    %v604 = vmul.f32 %v501, %v562
    %v605 = vmul.f32 %v503, %v562
    %v606 = vmul.f32 %v506, %v562
    %v607 = vmul.f32 %v508, %v562
    %v608 = vmul.f32 %v511, %v562
    %v609 = vmul.f32 %v513, %v562
    %v610 = vmul.f32 %v516, %v562
    %v611 = vmul.f32 %v518, %v562
    %v612 = vmul.f32 %v521, %v562
    %v613 = vmul.f32 %v523, %v562
    %v614 = vmul.f32 %v526, %v562
    %v615 = vmul.f32 %v528, %v562
    %v616 = vmul.f32 %v531, %v562
    %v617 = vmul.f32 %v533, %v562
    %v618 = vmul.f32 %v536, %v562
    %v619 = vmul.f32 %v538, %v562
    %v620 = vmul.f32 %v541, %v562
    %v621 = vmul.f32 %v543, %v562
    %v622 = vmul.f32 %v546, %v562
    %v623 = vmul.f32 %v548, %v562
    %v624 = vmul.f32 %v551, %v562
    %v625 = vmul.f32 %v553, %v562
    %v626 = vmul.f32 %v556, %v562
    %v627 = vmul.f32 %v558, %v562
    %v628 = vld [vmem:[#allocation4] sm:$0x1]
    %v630 = vperm.slane %v628, 0
    %v632 = vadd.f32 %v564, %v630
    %v633 = vadd.f32 %v565, %v630
    %v634 = vadd.f32 %v566, %v630
    %v635 = vadd.f32 %v567, %v630
    %v636 = vadd.f32 %v568, %v630
    %v637 = vadd.f32 %v569, %v630
    %v638 = vadd.f32 %v570, %v630
    %v639 = vadd.f32 %v571, %v630
    %v640 = vadd.f32 %v572, %v630
    %v641 = vadd.f32 %v573, %v630
    %v642 = vadd.f32 %v574, %v630
    %v643 = vadd.f32 %v575, %v630
    %v644 = vadd.f32 %v576, %v630
    %v645 = vadd.f32 %v577, %v630
    %v646 = vadd.f32 %v578, %v630
    %v647 = vadd.f32 %v579, %v630
    %v648 = vadd.f32 %v580, %v630
    %v649 = vadd.f32 %v581, %v630
    %v650 = vadd.f32 %v582, %v630
    %v651 = vadd.f32 %v583, %v630
    %v652 = vadd.f32 %v584, %v630
    %v653 = vadd.f32 %v585, %v630
    %v654 = vadd.f32 %v586, %v630
    %v655 = vadd.f32 %v587, %v630
    %v656 = vadd.f32 %v588, %v630
    %v657 = vadd.f32 %v589, %v630
    %v658 = vadd.f32 %v590, %v630
    %v659 = vadd.f32 %v591, %v630
    %v660 = vadd.f32 %v592, %v630
    %v661 = vadd.f32 %v593, %v630
    %v662 = vadd.f32 %v594, %v630
    %v663 = vadd.f32 %v595, %v630
    %v664 = vadd.f32 %v596, %v630
    %v665 = vadd.f32 %v597, %v630
    %v666 = vadd.f32 %v598, %v630
    %v667 = vadd.f32 %v599, %v630
    %v668 = vadd.f32 %v600, %v630
    %v669 = vadd.f32 %v601, %v630
    %v670 = vadd.f32 %v602, %v630
    %v671 = vadd.f32 %v603, %v630
    %v672 = vadd.f32 %v604, %v630
    %v673 = vadd.f32 %v605, %v630
    %v674 = vadd.f32 %v606, %v630
    %v675 = vadd.f32 %v607, %v630
    %v676 = vadd.f32 %v608, %v630
    %v677 = vadd.f32 %v609, %v630
    %v678 = vadd.f32 %v610, %v630
    %v679 = vadd.f32 %v611, %v630
    %v680 = vadd.f32 %v612, %v630
    %v681 = vadd.f32 %v613, %v630
    %v682 = vadd.f32 %v614, %v630
    %v683 = vadd.f32 %v615, %v630
    %v684 = vadd.f32 %v616, %v630
    %v685 = vadd.f32 %v617, %v630
    %v686 = vadd.f32 %v618, %v630
    %v687 = vadd.f32 %v619, %v630
    %v688 = vadd.f32 %v620, %v630
    %v689 = vadd.f32 %v621, %v630
    %v690 = vadd.f32 %v622, %v630
    %v691 = vadd.f32 %v623, %v630
    %v692 = vadd.f32 %v624, %v630
    %v693 = vadd.f32 %v625, %v630
    %v694 = vadd.f32 %v626, %v630
    %v695 = vadd.f32 %v627, %v630
    %v696 = vmax.f32 %v632, 0.0
    %v697 = vmax.f32 %v633, 0.0
    %v698 = vmax.f32 %v634, 0.0
    %v699 = vmax.f32 %v635, 0.0
    %v700 = vmax.f32 %v636, 0.0
    %v701 = vmax.f32 %v637, 0.0
    %v702 = vmax.f32 %v638, 0.0
    %v703 = vmax.f32 %v639, 0.0
    %v704 = vmax.f32 %v640, 0.0
    %v705 = vmax.f32 %v641, 0.0
    %v706 = vmax.f32 %v642, 0.0
    %v707 = vmax.f32 %v643, 0.0
    %v708 = vmax.f32 %v644, 0.0
    %v709 = vmax.f32 %v645, 0.0
    %v710 = vmax.f32 %v646, 0.0
    %v711 = vmax.f32 %v647, 0.0
    %v712 = vmax.f32 %v648, 0.0
    %v713 = vmax.f32 %v649, 0.0
    %v714 = vmax.f32 %v650, 0.0
    %v715 = vmax.f32 %v651, 0.0
    %v716 = vmax.f32 %v652, 0.0
    %v717 = vmax.f32 %v653, 0.0
    %v718 = vmax.f32 %v654, 0.0
    %v719 = vmax.f32 %v655, 0.0
    %v720 = vmax.f32 %v656, 0.0
    %v721 = vmax.f32 %v657, 0.0
    %v722 = vmax.f32 %v658, 0.0
    %v723 = vmax.f32 %v659, 0.0
    %v724 = vmax.f32 %v660, 0.0
    %v725 = vmax.f32 %v661, 0.0
    %v726 = vmax.f32 %v662, 0.0
    %v727 = vmax.f32 %v663, 0.0
    %v728 = vmax.f32 %v664, 0.0
    %v729 = vmax.f32 %v665, 0.0
    %v730 = vmax.f32 %v666, 0.0
    %v731 = vmax.f32 %v667, 0.0
    %v732 = vmax.f32 %v668, 0.0
    %v733 = vmax.f32 %v669, 0.0
    %v734 = vmax.f32 %v670, 0.0
    %v735 = vmax.f32 %v671, 0.0
    %v736 = vmax.f32 %v672, 0.0
    %v737 = vmax.f32 %v673, 0.0
    %v738 = vmax.f32 %v674, 0.0
    %v739 = vmax.f32 %v675, 0.0
    %v740 = vmax.f32 %v676, 0.0
    %v741 = vmax.f32 %v677, 0.0
    %v742 = vmax.f32 %v678, 0.0
    %v743 = vmax.f32 %v679, 0.0
    %v744 = vmax.f32 %v680, 0.0
    %v745 = vmax.f32 %v681, 0.0
    %v746 = vmax.f32 %v682, 0.0
    %v747 = vmax.f32 %v683, 0.0
    %v748 = vmax.f32 %v684, 0.0
    %v749 = vmax.f32 %v685, 0.0
    %v750 = vmax.f32 %v686, 0.0
    %v751 = vmax.f32 %v687, 0.0
    %v752 = vmax.f32 %v688, 0.0
    %v753 = vmax.f32 %v689, 0.0
    %v754 = vmax.f32 %v690, 0.0
    %v755 = vmax.f32 %v691, 0.0
    %v756 = vmax.f32 %v692, 0.0
    %v757 = vmax.f32 %v693, 0.0
    %v758 = vmax.f32 %v694, 0.0
    %v759 = vmax.f32 %v695, 0.0
    %v760 = vpack.c.bf16 %v696, %v696
    %v761 = vpack.c.bf16 %v697, %v697
    %v762 = vpack.c.bf16 %v698, %v698
    %v763 = vpack.c.bf16 %v699, %v699
    %v764 = vpack.c.bf16 %v700, %v700
    %v765 = vpack.c.bf16 %v701, %v701
    %v766 = vpack.c.bf16 %v702, %v702
    %v767 = vpack.c.bf16 %v703, %v703
    %v768 = vpack.c.bf16 %v704, %v704
    %v769 = vpack.c.bf16 %v705, %v705
    %v770 = vpack.c.bf16 %v706, %v706
    %v771 = vpack.c.bf16 %v707, %v707
    %v772 = vpack.c.bf16 %v708, %v708
    %v773 = vpack.c.bf16 %v709, %v709
    %v774 = vpack.c.bf16 %v710, %v710
    %v775 = vpack.c.bf16 %v711, %v711
    %v776 = vpack.c.bf16 %v712, %v712
    %v777 = vpack.c.bf16 %v713, %v713
    %v778 = vpack.c.bf16 %v714, %v714
    %v779 = vpack.c.bf16 %v715, %v715
    %v780 = vpack.c.bf16 %v716, %v716
    %v781 = vpack.c.bf16 %v717, %v717
    %v782 = vpack.c.bf16 %v718, %v718
    %v783 = vpack.c.bf16 %v719, %v719
    %v784 = vpack.c.bf16 %v720, %v720
    %v785 = vpack.c.bf16 %v721, %v721
    %v786 = vpack.c.bf16 %v722, %v722
    %v787 = vpack.c.bf16 %v723, %v723
    %v788 = vpack.c.bf16 %v724, %v724
    %v789 = vpack.c.bf16 %v725, %v725
    %v790 = vpack.c.bf16 %v726, %v726
    %v791 = vpack.c.bf16 %v727, %v727
    %v792 = vpack.c.bf16 %v728, %v728
    %v793 = vpack.c.bf16 %v729, %v729
    %v794 = vpack.c.bf16 %v730, %v730
    %v795 = vpack.c.bf16 %v731, %v731
    %v796 = vpack.c.bf16 %v732, %v732
    %v797 = vpack.c.bf16 %v733, %v733
    %v798 = vpack.c.bf16 %v734, %v734
    %v799 = vpack.c.bf16 %v735, %v735
    %v800 = vpack.c.bf16 %v736, %v736
    %v801 = vpack.c.bf16 %v737, %v737
    %v802 = vpack.c.bf16 %v738, %v738
    %v803 = vpack.c.bf16 %v739, %v739
    %v804 = vpack.c.bf16 %v740, %v740
    %v805 = vpack.c.bf16 %v741, %v741
    %v806 = vpack.c.bf16 %v742, %v742
    %v807 = vpack.c.bf16 %v743, %v743
    %v808 = vpack.c.bf16 %v744, %v744
    %v809 = vpack.c.bf16 %v745, %v745
    %v810 = vpack.c.bf16 %v746, %v746
    %v811 = vpack.c.bf16 %v747, %v747
    %v812 = vpack.c.bf16 %v748, %v748
    %v813 = vpack.c.bf16 %v749, %v749
    %v814 = vpack.c.bf16 %v750, %v750
    %v815 = vpack.c.bf16 %v751, %v751
    %v816 = vpack.c.bf16 %v752, %v752
    %v817 = vpack.c.bf16 %v753, %v753
    %v818 = vpack.c.bf16 %v754, %v754
    %v819 = vpack.c.bf16 %v755, %v755
    %v820 = vpack.c.bf16 %v756, %v756
    %v821 = vpack.c.bf16 %v757, %v757
    %v822 = vpack.c.bf16 %v758, %v758
    %v823 = vpack.c.bf16 %v759, %v759
    %vm824 = vcmask 257024
    %825 = vst.msk [vmem:[%s4] sm:$0xf] %vm824, %v760
    %826 = vst.msk [vmem:[%s4 + $0x4] sm:$0xf] %vm824, %v761
    %827 = vst.msk [vmem:[%s4 + $0x8] sm:$0xf] %vm824, %v762
    %828 = vst.msk [vmem:[%s4 + $0xc] sm:$0xf] %vm824, %v763
    %829 = vst.msk [vmem:[%s4 + $0x10] sm:$0xf] %vm824, %v764
    %830 = vst.msk [vmem:[%s4 + $0x14] sm:$0xf] %vm824, %v765
    %831 = vst.msk [vmem:[%s4 + $0x18] sm:$0xf] %vm824, %v766
    %832 = vst.msk [vmem:[%s4 + $0x1c] sm:$0xf] %vm824, %v767
    %833 = vst.msk [vmem:[%s4 + $0x20] sm:$0xf] %vm824, %v768
    %834 = vst.msk [vmem:[%s4 + $0x24] sm:$0xf] %vm824, %v769
    %835 = vst.msk [vmem:[%s4 + $0x28] sm:$0xf] %vm824, %v770
    %836 = vst.msk [vmem:[%s4 + $0x2c] sm:$0xf] %vm824, %v771
    %837 = vst.msk [vmem:[%s4 + $0x30] sm:$0xf] %vm824, %v772
    %838 = vst.msk [vmem:[%s4 + $0x34] sm:$0xf] %vm824, %v773
    %839 = vst.msk [vmem:[%s4 + $0x38] sm:$0xf] %vm824, %v774
    %840 = vst.msk [vmem:[%s4 + $0x3c] sm:$0xf] %vm824, %v775
    %841 = vst.msk [vmem:[%s4 + $0x40] sm:$0xf] %vm824, %v776
    %842 = vst.msk [vmem:[%s4 + $0x44] sm:$0xf] %vm824, %v777
    %843 = vst.msk [vmem:[%s4 + $0x48] sm:$0xf] %vm824, %v778
    %844 = vst.msk [vmem:[%s4 + $0x4c] sm:$0xf] %vm824, %v779
    %845 = vst.msk [vmem:[%s4 + $0x50] sm:$0xf] %vm824, %v780
    %846 = vst.msk [vmem:[%s4 + $0x54] sm:$0xf] %vm824, %v781
    %847 = vst.msk [vmem:[%s4 + $0x58] sm:$0xf] %vm824, %v782
    %848 = vst.msk [vmem:[%s4 + $0x5c] sm:$0xf] %vm824, %v783
    %849 = vst.msk [vmem:[%s4 + $0x60] sm:$0xf] %vm824, %v784
    %850 = vst.msk [vmem:[%s4 + $0x64] sm:$0xf] %vm824, %v785
    %851 = vst.msk [vmem:[%s4 + $0x68] sm:$0xf] %vm824, %v786
    %852 = vst.msk [vmem:[%s4 + $0x6c] sm:$0xf] %vm824, %v787
    %853 = vst.msk [vmem:[%s4 + $0x70] sm:$0xf] %vm824, %v788
    %854 = vst.msk [vmem:[%s4 + $0x74] sm:$0xf] %vm824, %v789
    %855 = vst.msk [vmem:[%s4 + $0x78] sm:$0xf] %vm824, %v790
    %856 = vst.msk [vmem:[%s4 + $0x7c] sm:$0xf] %vm824, %v791
    %857 = vst.msk [vmem:[%s4 + $0x80] sm:$0xf] %vm824, %v792
    %858 = vst.msk [vmem:[%s4 + $0x84] sm:$0xf] %vm824, %v793
    %859 = vst.msk [vmem:[%s4 + $0x88] sm:$0xf] %vm824, %v794
    %860 = vst.msk [vmem:[%s4 + $0x8c] sm:$0xf] %vm824, %v795
    %861 = vst.msk [vmem:[%s4 + $0x90] sm:$0xf] %vm824, %v796
    %862 = vst.msk [vmem:[%s4 + $0x94] sm:$0xf] %vm824, %v797
    %863 = vst.msk [vmem:[%s4 + $0x98] sm:$0xf] %vm824, %v798
    %864 = vst.msk [vmem:[%s4 + $0x9c] sm:$0xf] %vm824, %v799
    %865 = vst.msk [vmem:[%s4 + $0xa0] sm:$0xf] %vm824, %v800
    %866 = vst.msk [vmem:[%s4 + $0xa4] sm:$0xf] %vm824, %v801
    %867 = vst.msk [vmem:[%s4 + $0xa8] sm:$0xf] %vm824, %v802
    %868 = vst.msk [vmem:[%s4 + $0xac] sm:$0xf] %vm824, %v803
    %869 = vst.msk [vmem:[%s4 + $0xb0] sm:$0xf] %vm824, %v804
    %870 = vst.msk [vmem:[%s4 + $0xb4] sm:$0xf] %vm824, %v805
    %871 = vst.msk [vmem:[%s4 + $0xb8] sm:$0xf] %vm824, %v806
    %872 = vst.msk [vmem:[%s4 + $0xbc] sm:$0xf] %vm824, %v807
    %873 = vst.msk [vmem:[%s4 + $0xc0] sm:$0xf] %vm824, %v808
    %874 = vst.msk [vmem:[%s4 + $0xc4] sm:$0xf] %vm824, %v809
    %875 = vst.msk [vmem:[%s4 + $0xc8] sm:$0xf] %vm824, %v810
    %876 = vst.msk [vmem:[%s4 + $0xcc] sm:$0xf] %vm824, %v811
    %877 = vst.msk [vmem:[%s4 + $0xd0] sm:$0xf] %vm824, %v812
    %878 = vst.msk [vmem:[%s4 + $0xd4] sm:$0xf] %vm824, %v813
    %879 = vst.msk [vmem:[%s4 + $0xd8] sm:$0xf] %vm824, %v814
    %880 = vst.msk [vmem:[%s4 + $0xdc] sm:$0xf] %vm824, %v815
    %881 = vst.msk [vmem:[%s4 + $0xe0] sm:$0xf] %vm824, %v816
    %882 = vst.msk [vmem:[%s4 + $0xe4] sm:$0xf] %vm824, %v817
    %883 = vst.msk [vmem:[%s4 + $0xe8] sm:$0xf] %vm824, %v818
    %884 = vst.msk [vmem:[%s4 + $0xec] sm:$0xf] %vm824, %v819
    %885 = vst.msk [vmem:[%s4 + $0xf0] sm:$0xf] %vm824, %v820
    %886 = vst.msk [vmem:[%s4 + $0xf4] sm:$0xf] %vm824, %v821
    %887 = vst.msk [vmem:[%s4 + $0xf8] sm:$0xf] %vm824, %v822
    %888 = vst.msk [vmem:[%s4 + $0xfc] sm:$0xf] %vm824, %v823
    // Predicated region
    $region26: #{cnn_classifier_forward.4} parent=1 // pred_check
      _
    $region27: #{cnn_classifier_forward.4} parent=1 // pred_check_branch
      %890 = sbr.rel (0) target = $region29
    $region28: #{cnn_classifier_forward.4} parent=1 // pred_region
      _
    $region29: #{cnn_classifier_forward.4} parent=1 // pred_fallthru
      _
    // Predicated region
    $region30: #{cnn_classifier_forward.4} parent=1 // pred_check
      _
    $region31: #{cnn_classifier_forward.4} parent=1 // pred_check_branch
      %892 = sbr.rel (0) target = $region33
    $region32: #{cnn_classifier_forward.4} parent=1 // pred_region
      _
    $region33: #{cnn_classifier_forward.4} parent=1 // pred_fallthru
      _
    %893 = vsyncpa [#allocation3], 1
    %894 = vsyncpa [#allocation5], 1

// kernel: cnn_classifier_forward.5
$region0: #{cnn_classifier_forward.5}
  #allocation0 [shape = 'u32[]', space=smem, size = 0x4, offset = 0x4, fixed_abs, tag = 'smem constant byte address 0x4 - core index']
  #allocation1 [shape = 'u32[72,128]{1,0:T(1,128)}', space=vmem, size = 0x9000, scoped, tag = 'internal scratch']
  %s0 = inlined_call_operand.vmem [shape: bf16[128,288], index: 0, kind: input, shape index: {}]
  %s1 = inlined_call_operand.vmem [shape: bf16[288,64], index: 1, kind: input, shape index: {}]
  %s2 = inlined_call_operand.hbm [shape: f32[1,64], index: 2, kind: input, shape index: {}]
  %s3 = inlined_call_operand.hbm [shape: f32[1,64], index: 3, kind: input, shape index: {}]
  %s4 = inlined_call_operand.vmem [shape: bf16[128,64], index: 4, kind: output, shape index: {}]
  %s5 = sld [smem:[#allocation0]]
  $region34: #{cnn_classifier_forward.5} parent=0
    _
  %s7 = ssub.s32 1, %s5
  %s8 = scalar_select 0, %s7, %s5
  $region1: #{cnn_classifier_forward.5} parent=0
    #allocation2 [shape = 'u8[512]{0}', space=vmem, size = 0x400, scoped, tag = 'input window, operand 2, single buffered']
    #allocation3 [shape = 's32[1]{0}', space=sflag, size = 0x4, scoped, tag = 'scoped memory for cnn_classifier_forward.5']
    #allocation4 [shape = 'u8[512]{0}', space=vmem, size = 0x400, scoped, tag = 'input window, operand 3, single buffered']
    #allocation5 [shape = 's32[1]{0}', space=sflag, size = 0x4, scoped, tag = 'scoped memory for cnn_classifier_forward.5']
    %9 = vsyncpa [#allocation3], 0
    %10 = vsyncpa [#allocation5], 0
    // Predicated region
    $region2: #{cnn_classifier_forward.5} parent=1 // pred_check
      _
    $region3: #{cnn_classifier_forward.5} parent=1 // pred_check_branch
      %12 = sbr.rel (0) target = $region5
    $region4: #{cnn_classifier_forward.5} parent=1 // pred_region
      _
    $region5: #{cnn_classifier_forward.5} parent=1 // pred_fallthru
      _
    // Predicated region
    $region6: #{cnn_classifier_forward.5} parent=1 // pred_check
      _
    $region7: #{cnn_classifier_forward.5} parent=1 // pred_check_branch
      %14 = sbr.rel (0) target = $region9
    $region8: #{cnn_classifier_forward.5} parent=1 // pred_region
      _
    $region9: #{cnn_classifier_forward.5} parent=1 // pred_fallthru
      _
    // Predicated region
    $region10: #{cnn_classifier_forward.5} parent=1 // pred_check
      _
    $region11: #{cnn_classifier_forward.5} parent=1 // pred_check_branch
      %16 = sbr.rel (0) target = $region13
    $region12: #{cnn_classifier_forward.5} parent=1 // pred_region
      %18 = vsyncadd [#allocation3], 0
      %s20 = sshll.u32 %s2, 4
      %s21 = int_to_ptr.hbm [resolvable:$true] %s20
      %s22 = sshll.u32 [#allocation2], 4
      %s23 = int_to_ptr.vmem [resolvable:$true] %s22
      %25 = dma.hbm_to_vmem [thread:$0]  %s21, 16, %s23, [#allocation3]
    $region13: #{cnn_classifier_forward.5} parent=1 // pred_fallthru
      _
    // Predicated region
    $region14: #{cnn_classifier_forward.5} parent=1 // pred_check
      _
    $region15: #{cnn_classifier_forward.5} parent=1 // pred_check_branch
      %27 = sbr.rel (0) target = $region17
    $region16: #{cnn_classifier_forward.5} parent=1 // pred_region
      %29 = vsyncadd [#allocation5], 0
      %s31 = sshll.u32 %s3, 4
      %s32 = int_to_ptr.hbm [resolvable:$true] %s31
      %s33 = sshll.u32 [#allocation4], 4
      %s34 = int_to_ptr.vmem [resolvable:$true] %s33
      %36 = dma.hbm_to_vmem [thread:$0]  %s32, 16, %s34, [#allocation5]
    $region17: #{cnn_classifier_forward.5} parent=1 // pred_fallthru
      _
    // Predicated region
    $region18: #{cnn_classifier_forward.5} parent=1 // pred_check
      _
    $region19: #{cnn_classifier_forward.5} parent=1 // pred_check_branch
      %38 = sbr.rel (0) target = $region21
    $region20: #{cnn_classifier_forward.5} parent=1 // pred_region
      %40 = dma.done [#allocation3], 16
    $region21: #{cnn_classifier_forward.5} parent=1 // pred_fallthru
      _
    // Predicated region
    $region22: #{cnn_classifier_forward.5} parent=1 // pred_check
      _
    $region23: #{cnn_classifier_forward.5} parent=1 // pred_check_branch
      %42 = sbr.rel (0) target = $region25
    $region24: #{cnn_classifier_forward.5} parent=1 // pred_region
      %44 = dma.done [#allocation5], 16
    $region25: #{cnn_classifier_forward.5} parent=1 // pred_fallthru
      _
    %v46 = vld [vmem:[%s0] sm:$0xff]
    %v47 = vld [vmem:[%s0 + $0x8] sm:$0xf]
    %v48 = vld [vmem:[%s0 + $0xc] sm:$0xff]
    %v49 = vld [vmem:[%s0 + $0x14] sm:$0xf]
    %v50 = vld [vmem:[%s0 + $0x18] sm:$0xff]
    %v51 = vld [vmem:[%s0 + $0x20] sm:$0xf]
    %v52 = vld [vmem:[%s0 + $0x24] sm:$0xff]
    %v53 = vld [vmem:[%s0 + $0x2c] sm:$0xf]
    %v54 = vld [vmem:[%s0 + $0x30] sm:$0xff]
    %v55 = vld [vmem:[%s0 + $0x38] sm:$0xf]
    %v56 = vld [vmem:[%s0 + $0x3c] sm:$0xff]
    %v57 = vld [vmem:[%s0 + $0x44] sm:$0xf]
    %v58 = vld [vmem:[%s0 + $0x48] sm:$0xff]
    %v59 = vld [vmem:[%s0 + $0x50] sm:$0xf]
    %v60 = vld [vmem:[%s0 + $0x54] sm:$0xff]
    %v61 = vld [vmem:[%s0 + $0x5c] sm:$0xf]
    %v62 = vld [vmem:[%s0 + $0x60] sm:$0xff]
    %v63 = vld [vmem:[%s0 + $0x68] sm:$0xf]
    %v64 = vld [vmem:[%s0 + $0x6c] sm:$0xff]
    %v65 = vld [vmem:[%s0 + $0x74] sm:$0xf]
    %v66 = vld [vmem:[%s0 + $0x78] sm:$0xff]
    %v67 = vld [vmem:[%s0 + $0x80] sm:$0xf]
    %v68 = vld [vmem:[%s0 + $0x84] sm:$0xff]
    %v69 = vld [vmem:[%s0 + $0x8c] sm:$0xf]
    %v70 = vld [vmem:[%s0 + $0x90] sm:$0xff]
    %v71 = vld [vmem:[%s0 + $0x98] sm:$0xf]
    %v72 = vld [vmem:[%s0 + $0x9c] sm:$0xff]
    %v73 = vld [vmem:[%s0 + $0xa4] sm:$0xf]
    %v74 = vld [vmem:[%s0 + $0xa8] sm:$0xff]
    %v75 = vld [vmem:[%s0 + $0xb0] sm:$0xf]
    %v76 = vld [vmem:[%s0 + $0xb4] sm:$0xff]
    %v77 = vld [vmem:[%s0 + $0xbc] sm:$0xf]
    %v78 = vld [vmem:[%s1] sm:$0xf]
    %v79 = vld [vmem:[%s1 + $0x4] sm:$0xf]
    %v80 = vld [vmem:[%s1 + $0x8] sm:$0xf]
    %v81 = vld [vmem:[%s1 + $0xc] sm:$0xf]
    %v82 = vld [vmem:[%s1 + $0x10] sm:$0xf]
    %v83 = vld [vmem:[%s1 + $0x14] sm:$0xf]
    %v84 = vld [vmem:[%s1 + $0x18] sm:$0xf]
    %v85 = vld [vmem:[%s1 + $0x1c] sm:$0xf]
    %v86 = vld [vmem:[%s1 + $0x20] sm:$0xf]
    %v87 = vld [vmem:[%s1 + $0x24] sm:$0xf]
    %v88 = vld [vmem:[%s1 + $0x28] sm:$0xf]
    %v89 = vld [vmem:[%s1 + $0x2c] sm:$0xf]
    %v90 = vld [vmem:[%s1 + $0x30] sm:$0xf]
    %v91 = vld [vmem:[%s1 + $0x34] sm:$0xf]
    %v92 = vld [vmem:[%s1 + $0x38] sm:$0xf]
    %v93 = vld [vmem:[%s1 + $0x3c] sm:$0xf]
    %v94 = vld [vmem:[%s1 + $0x40] sm:$0xf]
    %v95 = vld [vmem:[%s1 + $0x44] sm:$0xf]
    %v96 = vld [vmem:[%s1 + $0x48] sm:$0xf]
    %v97 = vld [vmem:[%s1 + $0x4c] sm:$0xf]
    %v98 = vld [vmem:[%s1 + $0x50] sm:$0xf]
    %v99 = vld [vmem:[%s1 + $0x54] sm:$0xf]
    %v100 = vld [vmem:[%s1 + $0x58] sm:$0xf]
    %v101 = vld [vmem:[%s1 + $0x5c] sm:$0xf]
    %v102 = vld [vmem:[%s1 + $0x60] sm:$0xf]
    %v103 = vld [vmem:[%s1 + $0x64] sm:$0xf]
    %v104 = vld [vmem:[%s1 + $0x68] sm:$0xf]
    %v105 = vld [vmem:[%s1 + $0x6c] sm:$0xf]
    %v106 = vld [vmem:[%s1 + $0x70] sm:$0xf]
    %v107 = vld [vmem:[%s1 + $0x74] sm:$0xf]
    %v108 = vld [vmem:[%s1 + $0x78] sm:$0xf]
    %v109 = vld [vmem:[%s1 + $0x7c] sm:$0xf]
    %v110 = vld [vmem:[%s1 + $0x80] sm:$0xf]
    %v111 = vld [vmem:[%s1 + $0x84] sm:$0xf]
    %v112 = vld [vmem:[%s1 + $0x88] sm:$0xf]
    %v113 = vld [vmem:[%s1 + $0x8c] sm:$0xf]
    %v146 = vunpack.c.l.b16 %v46
    %v147 = vunpack.c.h.b16 %v46
    %v148 = vunpack.c.l.b16 %v47
    %v149 = vunpack.c.l.b16 %v48
    %v150 = vunpack.c.h.b16 %v48
    %v151 = vunpack.c.l.b16 %v49
    %v152 = vunpack.c.l.b16 %v50
    %v153 = vunpack.c.h.b16 %v50
    %v154 = vunpack.c.l.b16 %v51
    %v155 = vunpack.c.l.b16 %v52
    %v156 = vunpack.c.h.b16 %v52
    %v157 = vunpack.c.l.b16 %v53
    %v158 = vunpack.c.l.b16 %v54
    %v159 = vunpack.c.h.b16 %v54
    %v160 = vunpack.c.l.b16 %v55
    %v161 = vunpack.c.l.b16 %v56
    %v162 = vunpack.c.h.b16 %v56
    %v163 = vunpack.c.l.b16 %v57
    %v164 = vunpack.c.l.b16 %v58
    %v165 = vunpack.c.h.b16 %v58
    %v166 = vunpack.c.l.b16 %v59
    %v167 = vunpack.c.l.b16 %v60
    %v168 = vunpack.c.h.b16 %v60
    %v169 = vunpack.c.l.b16 %v61
    %v170 = vunpack.c.l.b16 %v62
    %v171 = vunpack.c.h.b16 %v62
    %v172 = vunpack.c.l.b16 %v63
    %v173 = vunpack.c.l.b16 %v64
    %v174 = vunpack.c.h.b16 %v64
    %v175 = vunpack.c.l.b16 %v65
    %v176 = vunpack.c.l.b16 %v66
    %v177 = vunpack.c.h.b16 %v66
    %v178 = vunpack.c.l.b16 %v67
    %v179 = vunpack.c.l.b16 %v68
    %v180 = vunpack.c.h.b16 %v68
    %v181 = vunpack.c.l.b16 %v69
    %v182 = vunpack.c.l.b16 %v70
    %v183 = vunpack.c.h.b16 %v70
    %v184 = vunpack.c.l.b16 %v71
    %v185 = vunpack.c.l.b16 %v72
    %v186 = vunpack.c.h.b16 %v72
    %v187 = vunpack.c.l.b16 %v73
    %v188 = vunpack.c.l.b16 %v74
    %v189 = vunpack.c.h.b16 %v74
    %v190 = vunpack.c.l.b16 %v75
    %v191 = vunpack.c.l.b16 %v76
    %v192 = vunpack.c.h.b16 %v76
    %v193 = vunpack.c.l.b16 %v77
    %v194 = vpack.c.b16 %v149, %v146
    %v195 = vpack.c.b16 %v150, %v147
    %v196 = vpack.c.b16 %v151, %v148
    %v197 = vpack.c.b16 %v155, %v152
    %v198 = vpack.c.b16 %v156, %v153
    %v199 = vpack.c.b16 %v157, %v154
    %v200 = vpack.c.b16 %v161, %v158
    %v201 = vpack.c.b16 %v162, %v159
    %v202 = vpack.c.b16 %v163, %v160
    %v203 = vpack.c.b16 %v167, %v164
    %v204 = vpack.c.b16 %v168, %v165
    %v205 = vpack.c.b16 %v169, %v166
    %v206 = vpack.c.b16 %v173, %v170
    %v207 = vpack.c.b16 %v174, %v171
    %v208 = vpack.c.b16 %v175, %v172
    %v209 = vpack.c.b16 %v179, %v176
    %v210 = vpack.c.b16 %v180, %v177
    %v211 = vpack.c.b16 %v181, %v178
    %v212 = vpack.c.b16 %v185, %v182
    %v213 = vpack.c.b16 %v186, %v183
    %v214 = vpack.c.b16 %v187, %v184
    %v215 = vpack.c.b16 %v191, %v188
    %v216 = vpack.c.b16 %v192, %v189
    %v217 = vpack.c.b16 %v193, %v190
    %v270 = vunpack.c.l.b16 %v78
    %v271 = vunpack.c.l.b16 %v79
    %v272 = vunpack.c.l.b16 %v80
    %v273 = vunpack.c.l.b16 %v81
    %v274 = vunpack.c.l.b16 %v82
    %v275 = vunpack.c.l.b16 %v83
    %v276 = vunpack.c.l.b16 %v84
    %v277 = vunpack.c.l.b16 %v85
    %v278 = vunpack.c.l.b16 %v86
    %v279 = vunpack.c.l.b16 %v87
    %v280 = vunpack.c.l.b16 %v88
    %v281 = vunpack.c.l.b16 %v89
    %v282 = vunpack.c.l.b16 %v90
    %v283 = vunpack.c.l.b16 %v91
    %v284 = vunpack.c.l.b16 %v92
    %v285 = vunpack.c.l.b16 %v93
    %v286 = vunpack.c.l.b16 %v94
    %v287 = vunpack.c.l.b16 %v95
    %v288 = vunpack.c.l.b16 %v96
    %v289 = vunpack.c.l.b16 %v97
    %v290 = vunpack.c.l.b16 %v98
    %v291 = vunpack.c.l.b16 %v99
    %v292 = vunpack.c.l.b16 %v100
    %v293 = vunpack.c.l.b16 %v101
    %v294 = vunpack.c.l.b16 %v102
    %v295 = vunpack.c.l.b16 %v103
    %v296 = vunpack.c.l.b16 %v104
    %v297 = vunpack.c.l.b16 %v105
    %v298 = vunpack.c.l.b16 %v106
    %v299 = vunpack.c.l.b16 %v107
    %v300 = vunpack.c.l.b16 %v108
    %v301 = vunpack.c.l.b16 %v109
    %v302 = vunpack.c.l.b16 %v110
    %v303 = vunpack.c.l.b16 %v111
    %v304 = vunpack.c.l.b16 %v112
    %v305 = vunpack.c.l.b16 %v113
    %v306 = vpack.c.b16 %v271, %v270
    %v307 = vpack.c.b16 %v273, %v272
    %v308 = vpack.c.b16 %v275, %v274
    %v309 = vpack.c.b16 %v277, %v276
    %v310 = vpack.c.b16 %v279, %v278
    %v311 = vpack.c.b16 %v281, %v280
    %v312 = vpack.c.b16 %v283, %v282
    %v313 = vpack.c.b16 %v285, %v284
    %v314 = vpack.c.b16 %v287, %v286
    %v315 = vpack.c.b16 %v289, %v288
    %v316 = vpack.c.b16 %v291, %v290
    %v317 = vpack.c.b16 %v293, %v292
    %v318 = vpack.c.b16 %v295, %v294
    %v319 = vpack.c.b16 %v297, %v296
    %v320 = vpack.c.b16 %v299, %v298
    %v321 = vpack.c.b16 %v301, %v300
    %v322 = vpack.c.b16 %v303, %v302
    %v323 = vpack.c.b16 %v305, %v304
    %vm342 = vcmask 261120
    %v344 = vsel %vm342, %v196, 0
    %v347 = vsel %vm342, %v199, 0
    %v350 = vsel %vm342, %v202, 0
    %v353 = vsel %vm342, %v205, 0
    %v356 = vsel %vm342, %v208, 0
    %v359 = vsel %vm342, %v211, 0
    %v362 = vsel %vm342, %v214, 0
    %v365 = vsel %vm342, %v217, 0
    %367 = vmatpush.bf16.msra.mxu0 %v313
    %368 = vmatpush.bf16.msra.mxu0 %v312
    %369 = vmatpush.bf16.msra.mxu0 %v311
    %370 = vmatpush.bf16.msra.mxu0 %v310
    %371 = vmatpush.bf16.msra.mxu0 %v309
    %372 = vmatpush.bf16.msra.mxu0 %v308
    %373 = vmatpush.bf16.msra.mxu0 %v307
    %374 = vmatpush.bf16.msra.mxu0 %v306
    %375 = vmatmul.bf16.gmra.mxu0 %v194
    %v376 = vpop.f32.mrf.mxu0
    %v377 = vadd.f32 0.0, %v376
    %v378 = vpop.f32.mrf.mxu0
    %v379 = vadd.f32 0.0, %v378
    %380 = vmatmul.bf16.gmra.mxu0 %v197
    %v381 = vpop.f32.mrf.mxu0
    %v382 = vadd.f32 0.0, %v381
    %v383 = vpop.f32.mrf.mxu0
    %v384 = vadd.f32 0.0, %v383
    %385 = vmatmul.bf16.gmra.mxu0 %v200
    %v386 = vpop.f32.mrf.mxu0
    %v387 = vadd.f32 0.0, %v386
    %v388 = vpop.f32.mrf.mxu0
    %v389 = vadd.f32 0.0, %v388
    %390 = vmatmul.bf16.gmra.mxu0 %v203
    %v391 = vpop.f32.mrf.mxu0
    %v392 = vadd.f32 0.0, %v391
    %v393 = vpop.f32.mrf.mxu0
    %v394 = vadd.f32 0.0, %v393
    %395 = vmatmul.bf16.gmra.mxu0 %v206
    %v396 = vpop.f32.mrf.mxu0
    %v397 = vadd.f32 0.0, %v396
    %v398 = vpop.f32.mrf.mxu0
    %v399 = vadd.f32 0.0, %v398
    %400 = vmatmul.bf16.gmra.mxu0 %v209
    %v401 = vpop.f32.mrf.mxu0
    %v402 = vadd.f32 0.0, %v401
    %v403 = vpop.f32.mrf.mxu0
    %v404 = vadd.f32 0.0, %v403
    %405 = vmatmul.bf16.gmra.mxu0 %v212
    %v406 = vpop.f32.mrf.mxu0
    %v407 = vadd.f32 0.0, %v406
    %v408 = vpop.f32.mrf.mxu0
    %v409 = vadd.f32 0.0, %v408
    %410 = vmatmul.bf16.gmra.mxu0 %v215
    %v411 = vpop.f32.mrf.mxu0
    %v412 = vadd.f32 0.0, %v411
    %v413 = vpop.f32.mrf.mxu0
    %v414 = vadd.f32 0.0, %v413
    %415 = vdwg.mxu0
    %416 = vmatpush.bf16.msra.mxu0 %v321
    %417 = vmatpush.bf16.msra.mxu0 %v320
    %418 = vmatpush.bf16.msra.mxu0 %v319
    %419 = vmatpush.bf16.msra.mxu0 %v318
    %420 = vmatpush.bf16.msra.mxu0 %v317
    %421 = vmatpush.bf16.msra.mxu0 %v316
    %422 = vmatpush.bf16.msra.mxu0 %v315
    %423 = vmatpush.bf16.msra.mxu0 %v314
    %424 = vmatmul.bf16.gmra.mxu0 %v195
    %v425 = vpop.f32.mrf.mxu0
    %v426 = vadd.f32 %v377, %v425
    %v427 = vpop.f32.mrf.mxu0
    %v428 = vadd.f32 %v379, %v427
    %429 = vmatmul.bf16.gmra.mxu0 %v198
    %v430 = vpop.f32.mrf.mxu0
    %v431 = vadd.f32 %v382, %v430
    %v432 = vpop.f32.mrf.mxu0
    %v433 = vadd.f32 %v384, %v432
    %434 = vmatmul.bf16.gmra.mxu0 %v201
    %v435 = vpop.f32.mrf.mxu0
    %v436 = vadd.f32 %v387, %v435
    %v437 = vpop.f32.mrf.mxu0
    %v438 = vadd.f32 %v389, %v437
    %439 = vmatmul.bf16.gmra.mxu0 %v204
    %v440 = vpop.f32.mrf.mxu0
    %v441 = vadd.f32 %v392, %v440
    %v442 = vpop.f32.mrf.mxu0
    %v443 = vadd.f32 %v394, %v442
    %444 = vmatmul.bf16.gmra.mxu0 %v207
    %v445 = vpop.f32.mrf.mxu0
    %v446 = vadd.f32 %v397, %v445
    %v447 = vpop.f32.mrf.mxu0
    %v448 = vadd.f32 %v399, %v447
    %449 = vmatmul.bf16.gmra.mxu0 %v210
    %v450 = vpop.f32.mrf.mxu0
    %v451 = vadd.f32 %v402, %v450
    %v452 = vpop.f32.mrf.mxu0
    %v453 = vadd.f32 %v404, %v452
    %454 = vmatmul.bf16.gmra.mxu0 %v213
    %v455 = vpop.f32.mrf.mxu0
    %v456 = vadd.f32 %v407, %v455
    %v457 = vpop.f32.mrf.mxu0
    %v458 = vadd.f32 %v409, %v457
    %459 = vmatmul.bf16.gmra.mxu0 %v216
    %v460 = vpop.f32.mrf.mxu0
    %v461 = vadd.f32 %v412, %v460
    %v462 = vpop.f32.mrf.mxu0
    %v463 = vadd.f32 %v414, %v462
    %464 = vdwg.mxu0
    %465 = vmatpush.bf16.msra.mxu0 0
    %466 = vmatpush.bf16.msra.mxu0 0
    %467 = vmatpush.bf16.msra.mxu0 0
    %468 = vmatpush.bf16.msra.mxu0 0
    %469 = vmatpush.bf16.msra.mxu0 0
    %470 = vmatpush.bf16.msra.mxu0 0
    %471 = vmatpush.bf16.msra.mxu0 %v323
    %472 = vmatpush.bf16.msra.mxu0 %v322
    %473 = vmatmul.bf16.gmra.mxu0 %v344
    %v474 = vpop.f32.mrf.mxu0
    %v475 = vadd.f32 %v426, %v474
    %v476 = vpop.f32.mrf.mxu0
    %v477 = vadd.f32 %v428, %v476
    %478 = vmatmul.bf16.gmra.mxu0 %v347
    %v479 = vpop.f32.mrf.mxu0
    %v480 = vadd.f32 %v431, %v479
    %v481 = vpop.f32.mrf.mxu0
    %v482 = vadd.f32 %v433, %v481
    %483 = vmatmul.bf16.gmra.mxu0 %v350
    %v484 = vpop.f32.mrf.mxu0
    %v485 = vadd.f32 %v436, %v484
    %v486 = vpop.f32.mrf.mxu0
    %v487 = vadd.f32 %v438, %v486
    %488 = vmatmul.bf16.gmra.mxu0 %v353
    %v489 = vpop.f32.mrf.mxu0
    %v490 = vadd.f32 %v441, %v489
    %v491 = vpop.f32.mrf.mxu0
    %v492 = vadd.f32 %v443, %v491
    %493 = vmatmul.bf16.gmra.mxu0 %v356
    %v494 = vpop.f32.mrf.mxu0
    %v495 = vadd.f32 %v446, %v494
    %v496 = vpop.f32.mrf.mxu0
    %v497 = vadd.f32 %v448, %v496
    %498 = vmatmul.bf16.gmra.mxu0 %v359
    %v499 = vpop.f32.mrf.mxu0
    %v500 = vadd.f32 %v451, %v499
    %v501 = vpop.f32.mrf.mxu0
    %v502 = vadd.f32 %v453, %v501
    %503 = vmatmul.bf16.gmra.mxu0 %v362
    %v504 = vpop.f32.mrf.mxu0
    %v505 = vadd.f32 %v456, %v504
    %v506 = vpop.f32.mrf.mxu0
    %v507 = vadd.f32 %v458, %v506
    %508 = vmatmul.bf16.gmra.mxu0 %v365
    %v509 = vpop.f32.mrf.mxu0
    %v510 = vadd.f32 %v461, %v509
    %v511 = vpop.f32.mrf.mxu0
    %v512 = vadd.f32 %v463, %v511
    %513 = vdwg.mxu0
    %v514 = vld [vmem:[#allocation2] sm:$0x1]
    %v516 = vperm.slane %v514, 0
    %v518 = vmul.f32 %v475, %v516
    %v519 = vmul.f32 %v477, %v516
    %v520 = vmul.f32 %v480, %v516
    %v521 = vmul.f32 %v482, %v516
    %v522 = vmul.f32 %v485, %v516
    %v523 = vmul.f32 %v487, %v516
    %v524 = vmul.f32 %v490, %v516
    %v525 = vmul.f32 %v492, %v516
    %v526 = vmul.f32 %v495, %v516
    %v527 = vmul.f32 %v497, %v516
    %v528 = vmul.f32 %v500, %v516
    %v529 = vmul.f32 %v502, %v516
    %v530 = vmul.f32 %v505, %v516
    %v531 = vmul.f32 %v507, %v516
    %v532 = vmul.f32 %v510, %v516
    %v533 = vmul.f32 %v512, %v516
    %v534 = vld [vmem:[#allocation4] sm:$0x1]
    %v536 = vperm.slane %v534, 0
    %v538 = vadd.f32 %v518, %v536
    %v539 = vadd.f32 %v519, %v536
    %v540 = vadd.f32 %v520, %v536
    %v541 = vadd.f32 %v521, %v536
    %v542 = vadd.f32 %v522, %v536
    %v543 = vadd.f32 %v523, %v536
    %v544 = vadd.f32 %v524, %v536
    %v545 = vadd.f32 %v525, %v536
    %v546 = vadd.f32 %v526, %v536
    %v547 = vadd.f32 %v527, %v536
    %v548 = vadd.f32 %v528, %v536
    %v549 = vadd.f32 %v529, %v536
    %v550 = vadd.f32 %v530, %v536
    %v551 = vadd.f32 %v531, %v536
    %v552 = vadd.f32 %v532, %v536
    %v553 = vadd.f32 %v533, %v536
    %v554 = vmax.f32 %v538, 0.0
    %v555 = vmax.f32 %v539, 0.0
    %v556 = vmax.f32 %v540, 0.0
    %v557 = vmax.f32 %v541, 0.0
    %v558 = vmax.f32 %v542, 0.0
    %v559 = vmax.f32 %v543, 0.0
    %v560 = vmax.f32 %v544, 0.0
    %v561 = vmax.f32 %v545, 0.0
    %v562 = vmax.f32 %v546, 0.0
    %v563 = vmax.f32 %v547, 0.0
    %v564 = vmax.f32 %v548, 0.0
    %v565 = vmax.f32 %v549, 0.0
    %v566 = vmax.f32 %v550, 0.0
    %v567 = vmax.f32 %v551, 0.0
    %v568 = vmax.f32 %v552, 0.0
    %v569 = vmax.f32 %v553, 0.0
    %v570 = vpack.c.bf16 %v554, %v554
    %v571 = vpack.c.bf16 %v555, %v555
    %v572 = vpack.c.bf16 %v556, %v556
    %v573 = vpack.c.bf16 %v557, %v557
    %v574 = vpack.c.bf16 %v558, %v558
    %v575 = vpack.c.bf16 %v559, %v559
    %v576 = vpack.c.bf16 %v560, %v560
    %v577 = vpack.c.bf16 %v561, %v561
    %v578 = vpack.c.bf16 %v562, %v562
    %v579 = vpack.c.bf16 %v563, %v563
    %v580 = vpack.c.bf16 %v564, %v564
    %v581 = vpack.c.bf16 %v565, %v565
    %v582 = vpack.c.bf16 %v566, %v566
    %v583 = vpack.c.bf16 %v567, %v567
    %v584 = vpack.c.bf16 %v568, %v568
    %v585 = vpack.c.bf16 %v569, %v569
    %vm586 = vcmask 519168
    %587 = vst.msk [vmem:[%s4] sm:$0xf] %vm586, %v570
    %588 = vst.msk [vmem:[%s4 + $0x4] sm:$0xf] %vm586, %v571
    %589 = vst.msk [vmem:[%s4 + $0x8] sm:$0xf] %vm586, %v572
    %590 = vst.msk [vmem:[%s4 + $0xc] sm:$0xf] %vm586, %v573
    %591 = vst.msk [vmem:[%s4 + $0x10] sm:$0xf] %vm586, %v574
    %592 = vst.msk [vmem:[%s4 + $0x14] sm:$0xf] %vm586, %v575
    %593 = vst.msk [vmem:[%s4 + $0x18] sm:$0xf] %vm586, %v576
    %594 = vst.msk [vmem:[%s4 + $0x1c] sm:$0xf] %vm586, %v577
    %595 = vst.msk [vmem:[%s4 + $0x20] sm:$0xf] %vm586, %v578
    %596 = vst.msk [vmem:[%s4 + $0x24] sm:$0xf] %vm586, %v579
    %597 = vst.msk [vmem:[%s4 + $0x28] sm:$0xf] %vm586, %v580
    %598 = vst.msk [vmem:[%s4 + $0x2c] sm:$0xf] %vm586, %v581
    %599 = vst.msk [vmem:[%s4 + $0x30] sm:$0xf] %vm586, %v582
    %600 = vst.msk [vmem:[%s4 + $0x34] sm:$0xf] %vm586, %v583
    %601 = vst.msk [vmem:[%s4 + $0x38] sm:$0xf] %vm586, %v584
    %602 = vst.msk [vmem:[%s4 + $0x3c] sm:$0xf] %vm586, %v585
    // Predicated region
    $region26: #{cnn_classifier_forward.5} parent=1 // pred_check
      _
    $region27: #{cnn_classifier_forward.5} parent=1 // pred_check_branch
      %604 = sbr.rel (0) target = $region29
    $region28: #{cnn_classifier_forward.5} parent=1 // pred_region
      _
    $region29: #{cnn_classifier_forward.5} parent=1 // pred_fallthru
      _
    // Predicated region
    $region30: #{cnn_classifier_forward.5} parent=1 // pred_check
      _
    $region31: #{cnn_classifier_forward.5} parent=1 // pred_check_branch
      %606 = sbr.rel (0) target = $region33
    $region32: #{cnn_classifier_forward.5} parent=1 // pred_region
      _
    $region33: #{cnn_classifier_forward.5} parent=1 // pred_fallthru
      _
    %607 = vsyncpa [#allocation3], 1
    %608 = vsyncpa [#allocation5], 1

// kernel: cnn_classifier_forward.7
$region0: #{cnn_classifier_forward.7}
  #allocation0 [shape = 'u32[]', space=smem, size = 0x4, offset = 0x4, fixed_abs, tag = 'smem constant byte address 0x4 - core index']
  #allocation1 [shape = 'u32[72,128]{1,0:T(1,128)}', space=vmem, size = 0x9000, scoped, tag = 'internal scratch']
  %s0 = inlined_call_operand.vmem [shape: bf16[16,1024], index: 0, kind: input, shape index: {}]
  %s1 = inlined_call_operand.vmem [shape: bf16[1024,10], index: 1, kind: input, shape index: {}]
  %s2 = inlined_call_operand.hbm [shape: f32[1,10], index: 2, kind: input, shape index: {}]
  %s3 = inlined_call_operand.vmem [shape: f32[16,10], index: 3, kind: output, shape index: {}]
  %s4 = sld [smem:[#allocation0]]
  $region26: #{cnn_classifier_forward.7} parent=0
    _
  %s6 = ssub.s32 1, %s4
  %s7 = scalar_select 0, %s6, %s4
  $region1: #{cnn_classifier_forward.7} parent=0
    #allocation2 [shape = 'u8[512]{0}', space=vmem, size = 0x400, scoped, tag = 'input window, operand 2, single buffered']
    #allocation3 [shape = 's32[1]{0}', space=sflag, size = 0x4, scoped, tag = 'scoped memory for cnn_classifier_forward.7']
    %8 = vsyncpa [#allocation3], 0
    // Predicated region
    $region2: #{cnn_classifier_forward.7} parent=1 // pred_check
      _
    $region3: #{cnn_classifier_forward.7} parent=1 // pred_check_branch
      %10 = sbr.rel (0) target = $region5
    $region4: #{cnn_classifier_forward.7} parent=1 // pred_region
      _
    $region5: #{cnn_classifier_forward.7} parent=1 // pred_fallthru
      _
    // Predicated region
    $region6: #{cnn_classifier_forward.7} parent=1 // pred_check
      _
    $region7: #{cnn_classifier_forward.7} parent=1 // pred_check_branch
      %12 = sbr.rel (0) target = $region9
    $region8: #{cnn_classifier_forward.7} parent=1 // pred_region
      _
    $region9: #{cnn_classifier_forward.7} parent=1 // pred_fallthru
      _
    // Predicated region
    $region10: #{cnn_classifier_forward.7} parent=1 // pred_check
      _
    $region11: #{cnn_classifier_forward.7} parent=1 // pred_check_branch
      %14 = sbr.rel (0) target = $region13
    $region12: #{cnn_classifier_forward.7} parent=1 // pred_region
      %16 = vsyncadd [#allocation3], 0
      %s18 = sshll.u32 %s2, 4
      %s19 = int_to_ptr.hbm [resolvable:$true] %s18
      %s20 = sshll.u32 [#allocation2], 4
      %s21 = int_to_ptr.vmem [resolvable:$true] %s20
      %23 = dma.hbm_to_vmem [thread:$0]  %s19, 16, %s21, [#allocation3]
    $region13: #{cnn_classifier_forward.7} parent=1 // pred_fallthru
      _
    // Predicated region
    $region14: #{cnn_classifier_forward.7} parent=1 // pred_check
      _
    $region15: #{cnn_classifier_forward.7} parent=1 // pred_check_branch
      %25 = sbr.rel (0) target = $region17
    $region16: #{cnn_classifier_forward.7} parent=1 // pred_region
      %27 = dma.done [#allocation3], 16
    $region17: #{cnn_classifier_forward.7} parent=1 // pred_fallthru
      _
    %v28 = vld [vmem:[%s0] sm:$0xff]
    %v29 = vld [vmem:[%s0 + $0x8] sm:$0xff]
    %v30 = vld [vmem:[%s0 + $0x10] sm:$0xff]
    %v31 = vld [vmem:[%s0 + $0x18] sm:$0xff]
    %v32 = vld [vmem:[%s0 + $0x20] sm:$0xff]
    %v33 = vld [vmem:[%s0 + $0x28] sm:$0xff]
    %v34 = vld [vmem:[%s0 + $0x30] sm:$0xff]
    %v35 = vld [vmem:[%s0 + $0x38] sm:$0xff]
    %v36 = vld [vmem:[%s1] sm:$0xf]
    %v37 = vld [vmem:[%s1 + $0x4] sm:$0xf]
    %v38 = vld [vmem:[%s1 + $0x8] sm:$0xf]
    %v39 = vld [vmem:[%s1 + $0xc] sm:$0xf]
    %v40 = vld [vmem:[%s1 + $0x10] sm:$0xf]
    %v41 = vld [vmem:[%s1 + $0x14] sm:$0xf]
    %v42 = vld [vmem:[%s1 + $0x18] sm:$0xf]
    %v43 = vld [vmem:[%s1 + $0x1c] sm:$0xf]
    %v44 = vld [vmem:[%s1 + $0x20] sm:$0xf]
    %v45 = vld [vmem:[%s1 + $0x24] sm:$0xf]
    %v46 = vld [vmem:[%s1 + $0x28] sm:$0xf]
    %v47 = vld [vmem:[%s1 + $0x2c] sm:$0xf]
    %v48 = vld [vmem:[%s1 + $0x30] sm:$0xf]
    %v49 = vld [vmem:[%s1 + $0x34] sm:$0xf]
    %v50 = vld [vmem:[%s1 + $0x38] sm:$0xf]
    %v51 = vld [vmem:[%s1 + $0x3c] sm:$0xf]
    %v52 = vld [vmem:[%s1 + $0x40] sm:$0xf]
    %v53 = vld [vmem:[%s1 + $0x44] sm:$0xf]
    %v54 = vld [vmem:[%s1 + $0x48] sm:$0xf]
    %v55 = vld [vmem:[%s1 + $0x4c] sm:$0xf]
    %v56 = vld [vmem:[%s1 + $0x50] sm:$0xf]
    %v57 = vld [vmem:[%s1 + $0x54] sm:$0xf]
    %v58 = vld [vmem:[%s1 + $0x58] sm:$0xf]
    %v59 = vld [vmem:[%s1 + $0x5c] sm:$0xf]
    %v60 = vld [vmem:[%s1 + $0x60] sm:$0xf]
    %v61 = vld [vmem:[%s1 + $0x64] sm:$0xf]
    %v62 = vld [vmem:[%s1 + $0x68] sm:$0xf]
    %v63 = vld [vmem:[%s1 + $0x6c] sm:$0xf]
    %v64 = vld [vmem:[%s1 + $0x70] sm:$0xf]
    %v65 = vld [vmem:[%s1 + $0x74] sm:$0xf]
    %v66 = vld [vmem:[%s1 + $0x78] sm:$0xf]
    %v67 = vld [vmem:[%s1 + $0x7c] sm:$0xf]
    %v68 = vld [vmem:[%s1 + $0x80] sm:$0xf]
    %v69 = vld [vmem:[%s1 + $0x84] sm:$0xf]
    %v70 = vld [vmem:[%s1 + $0x88] sm:$0xf]
    %v71 = vld [vmem:[%s1 + $0x8c] sm:$0xf]
    %v72 = vld [vmem:[%s1 + $0x90] sm:$0xf]
    %v73 = vld [vmem:[%s1 + $0x94] sm:$0xf]
    %v74 = vld [vmem:[%s1 + $0x98] sm:$0xf]
    %v75 = vld [vmem:[%s1 + $0x9c] sm:$0xf]
    %v76 = vld [vmem:[%s1 + $0xa0] sm:$0xf]
    %v77 = vld [vmem:[%s1 + $0xa4] sm:$0xf]
    %v78 = vld [vmem:[%s1 + $0xa8] sm:$0xf]
    %v79 = vld [vmem:[%s1 + $0xac] sm:$0xf]
    %v80 = vld [vmem:[%s1 + $0xb0] sm:$0xf]
    %v81 = vld [vmem:[%s1 + $0xb4] sm:$0xf]
    %v82 = vld [vmem:[%s1 + $0xb8] sm:$0xf]
    %v83 = vld [vmem:[%s1 + $0xbc] sm:$0xf]
    %v84 = vld [vmem:[%s1 + $0xc0] sm:$0xf]
    %v85 = vld [vmem:[%s1 + $0xc4] sm:$0xf]
    %v86 = vld [vmem:[%s1 + $0xc8] sm:$0xf]
    %v87 = vld [vmem:[%s1 + $0xcc] sm:$0xf]
    %v88 = vld [vmem:[%s1 + $0xd0] sm:$0xf]
    %v89 = vld [vmem:[%s1 + $0xd4] sm:$0xf]
    %v90 = vld [vmem:[%s1 + $0xd8] sm:$0xf]
    %v91 = vld [vmem:[%s1 + $0xdc] sm:$0xf]
    %v92 = vld [vmem:[%s1 + $0xe0] sm:$0xf]
    %v93 = vld [vmem:[%s1 + $0xe4] sm:$0xf]
    %v94 = vld [vmem:[%s1 + $0xe8] sm:$0xf]
    %v95 = vld [vmem:[%s1 + $0xec] sm:$0xf]
    %v96 = vld [vmem:[%s1 + $0xf0] sm:$0xf]
    %v97 = vld [vmem:[%s1 + $0xf4] sm:$0xf]
    %v98 = vld [vmem:[%s1 + $0xf8] sm:$0xf]
    %v99 = vld [vmem:[%s1 + $0xfc] sm:$0xf]
    %v100 = vld [vmem:[%s1 + $0x100] sm:$0xf]
    %v101 = vld [vmem:[%s1 + $0x104] sm:$0xf]
    %v102 = vld [vmem:[%s1 + $0x108] sm:$0xf]
    %v103 = vld [vmem:[%s1 + $0x10c] sm:$0xf]
    %v104 = vld [vmem:[%s1 + $0x110] sm:$0xf]
    %v105 = vld [vmem:[%s1 + $0x114] sm:$0xf]
    %v106 = vld [vmem:[%s1 + $0x118] sm:$0xf]
    %v107 = vld [vmem:[%s1 + $0x11c] sm:$0xf]
    %v108 = vld [vmem:[%s1 + $0x120] sm:$0xf]
    %v109 = vld [vmem:[%s1 + $0x124] sm:$0xf]
    %v110 = vld [vmem:[%s1 + $0x128] sm:$0xf]
    %v111 = vld [vmem:[%s1 + $0x12c] sm:$0xf]
    %v112 = vld [vmem:[%s1 + $0x130] sm:$0xf]
    %v113 = vld [vmem:[%s1 + $0x134] sm:$0xf]
    %v114 = vld [vmem:[%s1 + $0x138] sm:$0xf]
    %v115 = vld [vmem:[%s1 + $0x13c] sm:$0xf]
    %v116 = vld [vmem:[%s1 + $0x140] sm:$0xf]
    %v117 = vld [vmem:[%s1 + $0x144] sm:$0xf]
    %v118 = vld [vmem:[%s1 + $0x148] sm:$0xf]
    %v119 = vld [vmem:[%s1 + $0x14c] sm:$0xf]
    %v120 = vld [vmem:[%s1 + $0x150] sm:$0xf]
    %v121 = vld [vmem:[%s1 + $0x154] sm:$0xf]
    %v122 = vld [vmem:[%s1 + $0x158] sm:$0xf]
    %v123 = vld [vmem:[%s1 + $0x15c] sm:$0xf]
    %v124 = vld [vmem:[%s1 + $0x160] sm:$0xf]
    %v125 = vld [vmem:[%s1 + $0x164] sm:$0xf]
    %v126 = vld [vmem:[%s1 + $0x168] sm:$0xf]
    %v127 = vld [vmem:[%s1 + $0x16c] sm:$0xf]
    %v128 = vld [vmem:[%s1 + $0x170] sm:$0xf]
    %v129 = vld [vmem:[%s1 + $0x174] sm:$0xf]
    %v130 = vld [vmem:[%s1 + $0x178] sm:$0xf]
    %v131 = vld [vmem:[%s1 + $0x17c] sm:$0xf]
    %v132 = vld [vmem:[%s1 + $0x180] sm:$0xf]
    %v133 = vld [vmem:[%s1 + $0x184] sm:$0xf]
    %v134 = vld [vmem:[%s1 + $0x188] sm:$0xf]
    %v135 = vld [vmem:[%s1 + $0x18c] sm:$0xf]
    %v136 = vld [vmem:[%s1 + $0x190] sm:$0xf]
    %v137 = vld [vmem:[%s1 + $0x194] sm:$0xf]
    %v138 = vld [vmem:[%s1 + $0x198] sm:$0xf]
    %v139 = vld [vmem:[%s1 + $0x19c] sm:$0xf]
    %v140 = vld [vmem:[%s1 + $0x1a0] sm:$0xf]
    %v141 = vld [vmem:[%s1 + $0x1a4] sm:$0xf]
    %v142 = vld [vmem:[%s1 + $0x1a8] sm:$0xf]
    %v143 = vld [vmem:[%s1 + $0x1ac] sm:$0xf]
    %v144 = vld [vmem:[%s1 + $0x1b0] sm:$0xf]
    %v145 = vld [vmem:[%s1 + $0x1b4] sm:$0xf]
    %v146 = vld [vmem:[%s1 + $0x1b8] sm:$0xf]
    %v147 = vld [vmem:[%s1 + $0x1bc] sm:$0xf]
    %v148 = vld [vmem:[%s1 + $0x1c0] sm:$0xf]
    %v149 = vld [vmem:[%s1 + $0x1c4] sm:$0xf]
    %v150 = vld [vmem:[%s1 + $0x1c8] sm:$0xf]
    %v151 = vld [vmem:[%s1 + $0x1cc] sm:$0xf]
    %v152 = vld [vmem:[%s1 + $0x1d0] sm:$0xf]
    %v153 = vld [vmem:[%s1 + $0x1d4] sm:$0xf]
    %v154 = vld [vmem:[%s1 + $0x1d8] sm:$0xf]
    %v155 = vld [vmem:[%s1 + $0x1dc] sm:$0xf]
    %v156 = vld [vmem:[%s1 + $0x1e0] sm:$0xf]
    %v157 = vld [vmem:[%s1 + $0x1e4] sm:$0xf]
    %v158 = vld [vmem:[%s1 + $0x1e8] sm:$0xf]
    %v159 = vld [vmem:[%s1 + $0x1ec] sm:$0xf]
    %v160 = vld [vmem:[%s1 + $0x1f0] sm:$0xf]
    %v161 = vld [vmem:[%s1 + $0x1f4] sm:$0xf]
    %v162 = vld [vmem:[%s1 + $0x1f8] sm:$0xf]
    %v163 = vld [vmem:[%s1 + $0x1fc] sm:$0xf]
    %v164 = vld [vmem:[#allocation2] sm:$0x1]
    %v166 = vperm.slane %v164, 0
    %v176 = vunpack.c.l.b16 %v28
    %v177 = vunpack.c.h.b16 %v28
    %v178 = vunpack.c.l.b16 %v29
    %v179 = vunpack.c.h.b16 %v29
    %v180 = vunpack.c.l.b16 %v30
    %v181 = vunpack.c.h.b16 %v30
    %v182 = vunpack.c.l.b16 %v31
    %v183 = vunpack.c.h.b16 %v31
    %v184 = vunpack.c.l.b16 %v32
    %v185 = vunpack.c.h.b16 %v32
    %v186 = vunpack.c.l.b16 %v33
    %v187 = vunpack.c.h.b16 %v33
    %v188 = vunpack.c.l.b16 %v34
    %v189 = vunpack.c.h.b16 %v34
    %v190 = vunpack.c.l.b16 %v35
    %v191 = vunpack.c.h.b16 %v35
    %v192 = vpack.c.b16 %v184, %v176
    %v193 = vpack.c.b16 %v185, %v177
    %v194 = vpack.c.b16 %v186, %v178
    %v195 = vpack.c.b16 %v187, %v179
    %v196 = vpack.c.b16 %v188, %v180
    %v197 = vpack.c.b16 %v189, %v181
    %v198 = vpack.c.b16 %v190, %v182
    %v199 = vpack.c.b16 %v191, %v183
    %v336 = vunpack.c.l.b16 %v36
    %v337 = vunpack.c.l.b16 %v37
    %v338 = vunpack.c.l.b16 %v38
    %v339 = vunpack.c.l.b16 %v39
    %v340 = vunpack.c.l.b16 %v40
    %v341 = vunpack.c.l.b16 %v41
    %v342 = vunpack.c.l.b16 %v42
    %v343 = vunpack.c.l.b16 %v43
    %v344 = vunpack.c.l.b16 %v44
    %v345 = vunpack.c.l.b16 %v45
    %v346 = vunpack.c.l.b16 %v46
    %v347 = vunpack.c.l.b16 %v47
    %v348 = vunpack.c.l.b16 %v48
    %v349 = vunpack.c.l.b16 %v49
    %v350 = vunpack.c.l.b16 %v50
    %v351 = vunpack.c.l.b16 %v51
    %v352 = vunpack.c.l.b16 %v52
    %v353 = vunpack.c.l.b16 %v53
    %v354 = vunpack.c.l.b16 %v54
    %v355 = vunpack.c.l.b16 %v55
    %v356 = vunpack.c.l.b16 %v56
    %v357 = vunpack.c.l.b16 %v57
    %v358 = vunpack.c.l.b16 %v58
    %v359 = vunpack.c.l.b16 %v59
    %v360 = vunpack.c.l.b16 %v60
    %v361 = vunpack.c.l.b16 %v61
    %v362 = vunpack.c.l.b16 %v62
    %v363 = vunpack.c.l.b16 %v63
    %v364 = vunpack.c.l.b16 %v64
    %v365 = vunpack.c.l.b16 %v65
    %v366 = vunpack.c.l.b16 %v66
    %v367 = vunpack.c.l.b16 %v67
    %v368 = vunpack.c.l.b16 %v68
    %v369 = vunpack.c.l.b16 %v69
    %v370 = vunpack.c.l.b16 %v70
    %v371 = vunpack.c.l.b16 %v71
    %v372 = vunpack.c.l.b16 %v72
    %v373 = vunpack.c.l.b16 %v73
    %v374 = vunpack.c.l.b16 %v74
    %v375 = vunpack.c.l.b16 %v75
    %v376 = vunpack.c.l.b16 %v76
    %v377 = vunpack.c.l.b16 %v77
    %v378 = vunpack.c.l.b16 %v78
    %v379 = vunpack.c.l.b16 %v79
    %v380 = vunpack.c.l.b16 %v80
    %v381 = vunpack.c.l.b16 %v81
    %v382 = vunpack.c.l.b16 %v82
    %v383 = vunpack.c.l.b16 %v83
    %v384 = vunpack.c.l.b16 %v84
    %v385 = vunpack.c.l.b16 %v85
    %v386 = vunpack.c.l.b16 %v86
    %v387 = vunpack.c.l.b16 %v87
    %v388 = vunpack.c.l.b16 %v88
    %v389 = vunpack.c.l.b16 %v89
    %v390 = vunpack.c.l.b16 %v90
    %v391 = vunpack.c.l.b16 %v91
    %v392 = vunpack.c.l.b16 %v92
    %v393 = vunpack.c.l.b16 %v93
    %v394 = vunpack.c.l.b16 %v94
    %v395 = vunpack.c.l.b16 %v95
    %v396 = vunpack.c.l.b16 %v96
    %v397 = vunpack.c.l.b16 %v97
    %v398 = vunpack.c.l.b16 %v98
    %v399 = vunpack.c.l.b16 %v99
    %v400 = vunpack.c.l.b16 %v100
    %v401 = vunpack.c.l.b16 %v101
    %v402 = vunpack.c.l.b16 %v102
    %v403 = vunpack.c.l.b16 %v103
    %v404 = vunpack.c.l.b16 %v104
    %v405 = vunpack.c.l.b16 %v105
    %v406 = vunpack.c.l.b16 %v106
    %v407 = vunpack.c.l.b16 %v107
    %v408 = vunpack.c.l.b16 %v108
    %v409 = vunpack.c.l.b16 %v109
    %v410 = vunpack.c.l.b16 %v110
    %v411 = vunpack.c.l.b16 %v111
    %v412 = vunpack.c.l.b16 %v112
    %v413 = vunpack.c.l.b16 %v113
    %v414 = vunpack.c.l.b16 %v114
    %v415 = vunpack.c.l.b16 %v115
    %v416 = vunpack.c.l.b16 %v116
    %v417 = vunpack.c.l.b16 %v117
    %v418 = vunpack.c.l.b16 %v118
    %v419 = vunpack.c.l.b16 %v119
    %v420 = vunpack.c.l.b16 %v120
    %v421 = vunpack.c.l.b16 %v121
    %v422 = vunpack.c.l.b16 %v122
    %v423 = vunpack.c.l.b16 %v123
    %v424 = vunpack.c.l.b16 %v124
    %v425 = vunpack.c.l.b16 %v125
    %v426 = vunpack.c.l.b16 %v126
    %v427 = vunpack.c.l.b16 %v127
    %v428 = vunpack.c.l.b16 %v128
    %v429 = vunpack.c.l.b16 %v129
    %v430 = vunpack.c.l.b16 %v130
    %v431 = vunpack.c.l.b16 %v131
    %v432 = vunpack.c.l.b16 %v132
    %v433 = vunpack.c.l.b16 %v133
    %v434 = vunpack.c.l.b16 %v134
    %v435 = vunpack.c.l.b16 %v135
    %v436 = vunpack.c.l.b16 %v136
    %v437 = vunpack.c.l.b16 %v137
    %v438 = vunpack.c.l.b16 %v138
    %v439 = vunpack.c.l.b16 %v139
    %v440 = vunpack.c.l.b16 %v140
    %v441 = vunpack.c.l.b16 %v141
    %v442 = vunpack.c.l.b16 %v142
    %v443 = vunpack.c.l.b16 %v143
    %v444 = vunpack.c.l.b16 %v144
    %v445 = vunpack.c.l.b16 %v145
    %v446 = vunpack.c.l.b16 %v146
    %v447 = vunpack.c.l.b16 %v147
    %v448 = vunpack.c.l.b16 %v148
    %v449 = vunpack.c.l.b16 %v149
    %v450 = vunpack.c.l.b16 %v150
    %v451 = vunpack.c.l.b16 %v151
    %v452 = vunpack.c.l.b16 %v152
    %v453 = vunpack.c.l.b16 %v153
    %v454 = vunpack.c.l.b16 %v154
    %v455 = vunpack.c.l.b16 %v155
    %v456 = vunpack.c.l.b16 %v156
    %v457 = vunpack.c.l.b16 %v157
    %v458 = vunpack.c.l.b16 %v158
    %v459 = vunpack.c.l.b16 %v159
    %v460 = vunpack.c.l.b16 %v160
    %v461 = vunpack.c.l.b16 %v161
    %v462 = vunpack.c.l.b16 %v162
    %v463 = vunpack.c.l.b16 %v163
    %v464 = vpack.c.b16 %v337, %v336
    %v465 = vpack.c.b16 %v339, %v338
    %v466 = vpack.c.b16 %v341, %v340
    %v467 = vpack.c.b16 %v343, %v342
    %v468 = vpack.c.b16 %v345, %v344
    %v469 = vpack.c.b16 %v347, %v346
    %v470 = vpack.c.b16 %v349, %v348
    %v471 = vpack.c.b16 %v351, %v350
    %v472 = vpack.c.b16 %v353, %v352
    %v473 = vpack.c.b16 %v355, %v354
    %v474 = vpack.c.b16 %v357, %v356
    %v475 = vpack.c.b16 %v359, %v358
    %v476 = vpack.c.b16 %v361, %v360
    %v477 = vpack.c.b16 %v363, %v362
    %v478 = vpack.c.b16 %v365, %v364
    %v479 = vpack.c.b16 %v367, %v366
    %v480 = vpack.c.b16 %v369, %v368
    %v481 = vpack.c.b16 %v371, %v370
    %v482 = vpack.c.b16 %v373, %v372
    %v483 = vpack.c.b16 %v375, %v374
    %v484 = vpack.c.b16 %v377, %v376
    %v485 = vpack.c.b16 %v379, %v378
    %v486 = vpack.c.b16 %v381, %v380
    %v487 = vpack.c.b16 %v383, %v382
    %v488 = vpack.c.b16 %v385, %v384
    %v489 = vpack.c.b16 %v387, %v386
    %v490 = vpack.c.b16 %v389, %v388
    %v491 = vpack.c.b16 %v391, %v390
    %v492 = vpack.c.b16 %v393, %v392
    %v493 = vpack.c.b16 %v395, %v394
    %v494 = vpack.c.b16 %v397, %v396
    %v495 = vpack.c.b16 %v399, %v398
    %v496 = vpack.c.b16 %v401, %v400
    %v497 = vpack.c.b16 %v403, %v402
    %v498 = vpack.c.b16 %v405, %v404
    %v499 = vpack.c.b16 %v407, %v406
    %v500 = vpack.c.b16 %v409, %v408
    %v501 = vpack.c.b16 %v411, %v410
    %v502 = vpack.c.b16 %v413, %v412
    %v503 = vpack.c.b16 %v415, %v414
    %v504 = vpack.c.b16 %v417, %v416
    %v505 = vpack.c.b16 %v419, %v418
    %v506 = vpack.c.b16 %v421, %v420
    %v507 = vpack.c.b16 %v423, %v422
    %v508 = vpack.c.b16 %v425, %v424
    %v509 = vpack.c.b16 %v427, %v426
    %v510 = vpack.c.b16 %v429, %v428
    %v511 = vpack.c.b16 %v431, %v430
    %v512 = vpack.c.b16 %v433, %v432
    %v513 = vpack.c.b16 %v435, %v434
    %v514 = vpack.c.b16 %v437, %v436
    %v515 = vpack.c.b16 %v439, %v438
    %v516 = vpack.c.b16 %v441, %v440
    %v517 = vpack.c.b16 %v443, %v442
    %v518 = vpack.c.b16 %v445, %v444
    %v519 = vpack.c.b16 %v447, %v446
    %v520 = vpack.c.b16 %v449, %v448
    %v521 = vpack.c.b16 %v451, %v450
    %v522 = vpack.c.b16 %v453, %v452
    %v523 = vpack.c.b16 %v455, %v454
    %v524 = vpack.c.b16 %v457, %v456
    %v525 = vpack.c.b16 %v459, %v458
    %v526 = vpack.c.b16 %v461, %v460
    %v527 = vpack.c.b16 %v463, %v462
    %592 = vmatpush.bf16.msra.mxu0 %v471
    %593 = vmatpush.bf16.msra.mxu0 %v470
    %594 = vmatpush.bf16.msra.mxu0 %v469
    %595 = vmatpush.bf16.msra.mxu0 %v468
    %596 = vmatpush.bf16.msra.mxu0 %v467
    %597 = vmatpush.bf16.msra.mxu0 %v466
    %598 = vmatpush.bf16.msra.mxu0 %v465
    %599 = vmatpush.bf16.msra.mxu0 %v464
    %600 = vmatmul.bf16.gmra.mxu0 %v192
    %v601 = vpop.f32.mrf.mxu0
    %v602 = vadd.f32 %v166, %v601
    %v603 = vpop.f32.mrf.mxu0
    %v604 = vadd.f32 %v166, %v603
    %605 = vdwg.mxu0
    %606 = vmatpush.bf16.msra.mxu0 %v479
    %607 = vmatpush.bf16.msra.mxu0 %v478
    %608 = vmatpush.bf16.msra.mxu0 %v477
    %609 = vmatpush.bf16.msra.mxu0 %v476
    %610 = vmatpush.bf16.msra.mxu0 %v475
    %611 = vmatpush.bf16.msra.mxu0 %v474
    %612 = vmatpush.bf16.msra.mxu0 %v473
    %613 = vmatpush.bf16.msra.mxu0 %v472
    %614 = vmatmul.bf16.gmra.mxu0 %v193
    %v615 = vpop.f32.mrf.mxu0
    %v616 = vadd.f32 %v602, %v615
    %v617 = vpop.f32.mrf.mxu0
    %v618 = vadd.f32 %v604, %v617
    %619 = vdwg.mxu0
    %620 = vmatpush.bf16.msra.mxu0 %v487
    %621 = vmatpush.bf16.msra.mxu0 %v486
    %622 = vmatpush.bf16.msra.mxu0 %v485
    %623 = vmatpush.bf16.msra.mxu0 %v484
    %624 = vmatpush.bf16.msra.mxu0 %v483
    %625 = vmatpush.bf16.msra.mxu0 %v482
    %626 = vmatpush.bf16.msra.mxu0 %v481
    %627 = vmatpush.bf16.msra.mxu0 %v480
    %628 = vmatmul.bf16.gmra.mxu0 %v194
    %v629 = vpop.f32.mrf.mxu0
    %v630 = vadd.f32 %v616, %v629
    %v631 = vpop.f32.mrf.mxu0
    %v632 = vadd.f32 %v618, %v631
    %633 = vdwg.mxu0
    %634 = vmatpush.bf16.msra.mxu0 %v495
    %635 = vmatpush.bf16.msra.mxu0 %v494
    %636 = vmatpush.bf16.msra.mxu0 %v493
    %637 = vmatpush.bf16.msra.mxu0 %v492
    %638 = vmatpush.bf16.msra.mxu0 %v491
    %639 = vmatpush.bf16.msra.mxu0 %v490
    %640 = vmatpush.bf16.msra.mxu0 %v489
    %641 = vmatpush.bf16.msra.mxu0 %v488
    %642 = vmatmul.bf16.gmra.mxu0 %v195
    %v643 = vpop.f32.mrf.mxu0
    %v644 = vadd.f32 %v630, %v643
    %v645 = vpop.f32.mrf.mxu0
    %v646 = vadd.f32 %v632, %v645
    %647 = vdwg.mxu0
    %648 = vmatpush.bf16.msra.mxu0 %v503
    %649 = vmatpush.bf16.msra.mxu0 %v502
    %650 = vmatpush.bf16.msra.mxu0 %v501
    %651 = vmatpush.bf16.msra.mxu0 %v500
    %652 = vmatpush.bf16.msra.mxu0 %v499
    %653 = vmatpush.bf16.msra.mxu0 %v498
    %654 = vmatpush.bf16.msra.mxu0 %v497
    %655 = vmatpush.bf16.msra.mxu0 %v496
    %656 = vmatmul.bf16.gmra.mxu0 %v196
    %v657 = vpop.f32.mrf.mxu0
    %v658 = vadd.f32 %v644, %v657
    %v659 = vpop.f32.mrf.mxu0
    %v660 = vadd.f32 %v646, %v659
    %661 = vdwg.mxu0
    %662 = vmatpush.bf16.msra.mxu0 %v511
    %663 = vmatpush.bf16.msra.mxu0 %v510
    %664 = vmatpush.bf16.msra.mxu0 %v509
    %665 = vmatpush.bf16.msra.mxu0 %v508
    %666 = vmatpush.bf16.msra.mxu0 %v507
    %667 = vmatpush.bf16.msra.mxu0 %v506
    %668 = vmatpush.bf16.msra.mxu0 %v505
    %669 = vmatpush.bf16.msra.mxu0 %v504
    %670 = vmatmul.bf16.gmra.mxu0 %v197
    %v671 = vpop.f32.mrf.mxu0
    %v672 = vadd.f32 %v658, %v671
    %v673 = vpop.f32.mrf.mxu0
    %v674 = vadd.f32 %v660, %v673
    %675 = vdwg.mxu0
    %676 = vmatpush.bf16.msra.mxu0 %v519
    %677 = vmatpush.bf16.msra.mxu0 %v518
    %678 = vmatpush.bf16.msra.mxu0 %v517
    %679 = vmatpush.bf16.msra.mxu0 %v516
    %680 = vmatpush.bf16.msra.mxu0 %v515
    %681 = vmatpush.bf16.msra.mxu0 %v514
    %682 = vmatpush.bf16.msra.mxu0 %v513
    %683 = vmatpush.bf16.msra.mxu0 %v512
    %684 = vmatmul.bf16.gmra.mxu0 %v198
    %v685 = vpop.f32.mrf.mxu0
    %v686 = vadd.f32 %v672, %v685
    %v687 = vpop.f32.mrf.mxu0
    %v688 = vadd.f32 %v674, %v687
    %689 = vdwg.mxu0
    %690 = vmatpush.bf16.msra.mxu0 %v527
    %691 = vmatpush.bf16.msra.mxu0 %v526
    %692 = vmatpush.bf16.msra.mxu0 %v525
    %693 = vmatpush.bf16.msra.mxu0 %v524
    %694 = vmatpush.bf16.msra.mxu0 %v523
    %695 = vmatpush.bf16.msra.mxu0 %v522
    %696 = vmatpush.bf16.msra.mxu0 %v521
    %697 = vmatpush.bf16.msra.mxu0 %v520
    %698 = vmatmul.bf16.gmra.mxu0 %v199
    %v699 = vpop.f32.mrf.mxu0
    %v700 = vadd.f32 %v686, %v699
    %v701 = vpop.f32.mrf.mxu0
    %v702 = vadd.f32 %v688, %v701
    %703 = vdwg.mxu0
    %v704 = vxor.u32 %v700, 2147483648
    %v705 = vxor.u32 %v702, 2147483648
    %v706 = vmul.f32 %v704, 1.442695
    %v707 = vpow.pop %v706
    %v708 = vmul.f32 %v705, 1.442695
    %v709 = vpow.pop %v708
    %v710 = vadd.f32 %v707, 1.0
    %v711 = vadd.f32 %v709, 1.0
    %v712 = vrcp.pop %v710
    %v713 = vmul.f32 %v710, %v712
    %v714 = vsub.f32 1.0, %v713
    %v715 = vmul.f32 %v712, %v714
    %v716 = vadd.f32 %v712, %v715
    %vm717 = vweird.f32 %v710
    %vm718 = vweird.f32 %v712
    %vm719 = vmor %vm717, %vm718
    %v720 = vsel %vm719, %v712, %v716
    %v721 = vand.u32 2147483647, %v710
    %vm722 = vcmp.eq.f32.partialorder %v721, 8.507059e+37
    %v723 = vand.u32 %v710, 2147483648
    %v724 = vor.u32 1.1754944e-38, %v723
    %v725 = vsel %vm722, %v724, %v720
    %v726 = vmul.f32 1.0, %v725
    %v727 = vrcp.pop %v711
    %v728 = vmul.f32 %v711, %v727
    %v729 = vsub.f32 1.0, %v728
    %v730 = vmul.f32 %v727, %v729
    %v731 = vadd.f32 %v727, %v730
    %vm732 = vweird.f32 %v711
    %vm733 = vweird.f32 %v727
    %vm734 = vmor %vm732, %vm733
    %v735 = vsel %vm734, %v727, %v731
    %v736 = vand.u32 2147483647, %v711
    %vm737 = vcmp.eq.f32.partialorder %v736, 8.507059e+37
    %v738 = vand.u32 %v711, 2147483648
    %v739 = vor.u32 1.1754944e-38, %v738
    %v740 = vsel %vm737, %v739, %v735
    %v741 = vmul.f32 1.0, %v740
    %vm742 = vcmask 80896
    %743 = vst.msk [vmem:[%s3] sm:$0xff] %vm742, %v726
    %744 = vst.msk [vmem:[%s3 + $0x8] sm:$0xff] %vm742, %v741
    // Predicated region
    $region18: #{cnn_classifier_forward.7} parent=1 // pred_check
      _
    $region19: #{cnn_classifier_forward.7} parent=1 // pred_check_branch
      %746 = sbr.rel (0) target = $region21
    $region20: #{cnn_classifier_forward.7} parent=1 // pred_region
      _
    $region21: #{cnn_classifier_forward.7} parent=1 // pred_fallthru
      _
    // Predicated region
    $region22: #{cnn_classifier_forward.7} parent=1 // pred_check
      _
    $region23: #{cnn_classifier_forward.7} parent=1 // pred_check_branch
      %748 = sbr.rel (0) target = $region25
    $region24: #{cnn_classifier_forward.7} parent=1 // pred_region
      _
    $region25: #{cnn_classifier_forward.7} parent=1 // pred_fallthru
      _
    %749 = vsyncpa [#allocation3], 1

// kernel: cnn_classifier_forward.6
$region0: #{cnn_classifier_forward.6}
  #allocation0 [shape = 'u32[]', space=smem, size = 0x4, offset = 0x4, fixed_abs, tag = 'smem constant byte address 0x4 - core index']
  #allocation1 [shape = 'u32[72,128]{1,0:T(1,128)}', space=vmem, size = 0x9000, scoped, tag = 'internal scratch']
  #allocation2 [shape = 'f32[16,512]{1,0:T(8,128)}', space=vmem, size = 0x8000, scoped, tag = 'scratch operand']
  %s0 = inlined_call_operand.vmem [shape: bf16[16,4096], index: 0, kind: input, shape index: {}]
  %s1 = inlined_call_operand.hbm [shape: bf16[4096,1024], index: 1, kind: input, shape index: {}]
  %s2 = inlined_call_operand.hbm [shape: f32[1,1024], index: 2, kind: input, shape index: {}]
  %s3 = inlined_call_operand.vmem [shape: bf16[16,1024], index: 3, kind: output, shape index: {}]
  %s4 = sld [smem:[#allocation0]]
  $region103: #{cnn_classifier_forward.6} parent=0
    _
  %s6 = ssub.s32 1, %s4
  %s7 = scalar_select 0, %s6, %s4
  $region1: #{cnn_classifier_forward.6} parent=0
    #allocation3 [shape = 'u8[131072]{0}', space=vmem, size = 0x20000, scoped, tag = 'input window, operand 0']
    #allocation4 [shape = 'u8[4194304]{0}', space=vmem, size = 0x400000, scoped, tag = 'input window, operand 1']
    #allocation5 [shape = 's32[2]{0}', space=sflag, size = 0x8, scoped, tag = 'scoped memory for cnn_classifier_forward.6']
    #allocation6 [shape = 'u8[4096]{0}', space=vmem, size = 0x1000, scoped, tag = 'input window, operand 2']
    #allocation7 [shape = 's32[2]{0}', space=sflag, size = 0x8, scoped, tag = 'scoped memory for cnn_classifier_forward.6']
    #allocation8 [shape = 'u8[32768]{0}', space=vmem, size = 0x8000, scoped, tag = 'output window, operand 0']
    %8 = vsyncpa [#allocation5], 0
    %s9 = scalar_lea.sflag [#allocation5], 1
    %10 = vsyncpa %s9, 0
    %11 = vsyncpa [#allocation7], 0
    %s12 = scalar_lea.sflag [#allocation7], 1
    %13 = vsyncpa %s12, 0
    loop: start=0, step=1, limit=6
    $region2: #{cnn_classifier_forward.6} parent=1 // loop_pre_header
      _
    $region3: #{cnn_classifier_forward.6} parent=1 // loop_header
      %s15 = sphi 0, %s19
      %p16 = scmp.ge.s32.totalorder %s15, 6
      %s22 = sphi 0, %s41
      %s23 = sphi 0, %s37
      %s24 = sphi 0, %s33
      %s25 = sphi 0, %s22
      %s26 = sphi 0, %s23
      %s27 = sphi 0, %s24
      %s28 = sphi 0, %s25
      %s29 = sphi 0, %s26
      %s30 = sphi 0, %s27
      %s46 = sphi 0, %s48
      %s49 = sphi 0, %s46
      %s50 = sphi 0, %s49
      %s66 = sphi 0, %s50
      %s74 = sphi 0, %s76
      %s77 = sphi 0, %s74
      %s78 = sphi 0, %s77
      %s94 = sphi 0, %s78
      %s100 = sphi 0, %s102
      %s103 = sphi 0, %s100
      %s104 = sphi 0, %s103
      %s120 = sphi 0, %s104
      %s128 = sphi 0, %s130
      %s131 = sphi 0, %s128
      %s132 = sphi 0, %s131
      %s148 = sphi 0, %s132
    $region4: #{cnn_classifier_forward.6} parent=1 // loop_header_branch
      %18 = sbr.rel (%p16) target = $region8
    $region5: #{cnn_classifier_forward.6} parent=1 // loop_body
      %s20 = ssub.s32 %s15, 1
      %s21 = ssub.s32 %s15, 2
      %s31 = sadd.s32 1, %s24
      %p32 = scmp.ge.s32.totalorder %s31, 2
      %s33 = scalar_select %p32, 0, %s31
      %s34 = sadd.s32 1, %s23
      %s35 = scalar_select %p32, %s34, %s23
      %p36 = scmp.ge.s32.totalorder %s35, 2
      %s37 = scalar_select %p36, 0, %s35
      %s38 = sadd.s32 1, %s22
      %s39 = scalar_select %p36, %s38, %s22
      %p40 = scmp.ge.s32.totalorder %s39, 1
      %s41 = scalar_select %p40, 0, %s39
      %s42 = ssub.s32 %s22, %s41
      %s43 = ssub.s32 %s24, %s33
      %s44 = sor.u32 %s42, %s43
      %p45 = scmp.eq.s32.totalorder %s44, 0
      %s47 = sadd.s32 %s46, 1
      %s48 = scalar_select %p45, %s46, %s47
      %p51 = pneg %p45
      %p52 = scmp.eq.s32.totalorder %s15, 3
      %p53 = por %p51, %p52
      %p54 = scmp.ne.s32.totalorder %s46, %s49
      %p55 = scmp.eq.s32.totalorder %s15, 0
      %p56 = por %p54, %p55
      %p57 = scmp.ne.s32.totalorder %s46, %s49
      %p58 = scmp.eq.s32.totalorder %s20, 3
      %p59 = por %p57, %p58
      %p60 = scmp.ne.s32.totalorder %s49, %s50
      %p61 = scmp.eq.s32.totalorder %s20, 0
      %p62 = por %p60, %p61
      %p63 = scmp.ne.s32.totalorder %s49, %s50
      %p64 = scmp.eq.s32.totalorder %s21, 3
      %p65 = por %p63, %p64
      %p67 = scmp.ne.s32.totalorder %s50, %s66
      %p68 = scmp.eq.s32.totalorder %s21, 0
      %p69 = por %p67, %p68
      %s70 = ssub.s32 %s24, %s33
      %s71 = ssub.s32 %s23, %s37
      %s72 = sor.u32 %s70, %s71
      %p73 = scmp.eq.s32.totalorder %s72, 0
      %s75 = sadd.s32 %s74, 1
      %s76 = scalar_select %p73, %s74, %s75
      %p79 = pneg %p73
      %p80 = scmp.eq.s32.totalorder %s15, 3
      %p81 = por %p79, %p80
      %p82 = scmp.ne.s32.totalorder %s74, %s77
      %p83 = scmp.eq.s32.totalorder %s15, 0
      %p84 = por %p82, %p83
      %p85 = scmp.ne.s32.totalorder %s74, %s77
      %p86 = scmp.eq.s32.totalorder %s20, 3
      %p87 = por %p85, %p86
      %p88 = scmp.ne.s32.totalorder %s77, %s78
      %p89 = scmp.eq.s32.totalorder %s20, 0
      %p90 = por %p88, %p89
      %p91 = scmp.ne.s32.totalorder %s77, %s78
      %p92 = scmp.eq.s32.totalorder %s21, 3
      %p93 = por %p91, %p92
      %p95 = scmp.ne.s32.totalorder %s78, %s94
      %p96 = scmp.eq.s32.totalorder %s21, 0
      %p97 = por %p95, %p96
      %s98 = ssub.s32 %s23, %s37
      %p99 = scmp.eq.s32.totalorder %s98, 0
      %s101 = sadd.s32 %s100, 1
      %s102 = scalar_select %p99, %s100, %s101
      %p105 = pneg %p99
      %p106 = scmp.eq.s32.totalorder %s15, 3
      %p107 = por %p105, %p106
      %p108 = scmp.ne.s32.totalorder %s100, %s103
      %p109 = scmp.eq.s32.totalorder %s15, 0
      %p110 = por %p108, %p109
      %p111 = scmp.ne.s32.totalorder %s100, %s103
      %p112 = scmp.eq.s32.totalorder %s20, 3
      %p113 = por %p111, %p112
      %p114 = scmp.ne.s32.totalorder %s103, %s104
      %p115 = scmp.eq.s32.totalorder %s20, 0
      %p116 = por %p114, %p115
      %p117 = scmp.ne.s32.totalorder %s103, %s104
      %p118 = scmp.eq.s32.totalorder %s21, 3
      %p119 = por %p117, %p118
      %p121 = scmp.ne.s32.totalorder %s104, %s120
      %p122 = scmp.eq.s32.totalorder %s21, 0
      %p123 = por %p121, %p122
      %s124 = ssub.s32 %s22, %s41
      %s125 = ssub.s32 %s23, %s37
      %s126 = sor.u32 %s124, %s125
      %p127 = scmp.eq.s32.totalorder %s126, 0
      %s129 = sadd.s32 %s128, 1
      %s130 = scalar_select %p127, %s128, %s129
      %p133 = pneg %p127
      %p134 = scmp.eq.s32.totalorder %s15, 3
      %p135 = por %p133, %p134
      %p136 = scmp.ne.s32.totalorder %s128, %s131
      %p137 = scmp.eq.s32.totalorder %s15, 0
      %p138 = por %p136, %p137
      %p139 = scmp.ne.s32.totalorder %s128, %s131
      %p140 = scmp.eq.s32.totalorder %s20, 3
      %p141 = por %p139, %p140
      %p142 = scmp.ne.s32.totalorder %s131, %s132
      %p143 = scmp.eq.s32.totalorder %s20, 0
      %p144 = por %p142, %p143
      %p145 = scmp.ne.s32.totalorder %s131, %s132
      %p146 = scmp.eq.s32.totalorder %s21, 3
      %p147 = por %p145, %p146
      %p149 = scmp.ne.s32.totalorder %s132, %s148
      %p150 = scmp.eq.s32.totalorder %s21, 0
      %p151 = por %p149, %p150
      %p152 = scmp.le.s32.totalorder 1, %s15
      %p153 = scmp.lt.s32.totalorder %s15, 5
      %p154 = pnand %p152, %p153
      %p155 = pneg %p154
      // Predicated region
      $region9: #{cnn_classifier_forward.6} parent=5 // pred_check
        _
      $region10: #{cnn_classifier_forward.6} parent=5 // pred_check_branch
        %157 = sbr.rel (%p154) target = $region12
      $region11: #{cnn_classifier_forward.6} parent=5 // pred_region
        %s158 = ssub.s32 %s15, 1
      $region12: #{cnn_classifier_forward.6} parent=5 // pred_fallthru
        _
      %p159 = scmp.lt.s32.totalorder %s15, 4
      // Predicated region
      $region13: #{cnn_classifier_forward.6} parent=5 // pred_check
        %p160 = pneg %p159
      $region14: #{cnn_classifier_forward.6} parent=5 // pred_check_branch
        %162 = sbr.rel (%p160) target = $region16
      $region15: #{cnn_classifier_forward.6} parent=5 // pred_region
        // Predicated region
        $region17: #{cnn_classifier_forward.6} parent=15 // pred_check
          %p163 = pneg %p56
        $region18: #{cnn_classifier_forward.6} parent=15 // pred_check_branch
          %165 = sbr.rel (%p163) target = $region20
        $region19: #{cnn_classifier_forward.6} parent=15 // pred_region
          %s166 = sand.u32 %s46, 1
          %s167 = sand.u32 %s46, 1
          %s168 = smul.addr %s167, 128
          %s169 = scalar_lea.vmem [#allocation3], %s168
          %s170 = smul.u32 2, %s22
          %s171 = smul.u32 16, %s24
          %s172 = smul.addr %s170, 32
          %s173 = sadd.s32 %s171, %s172
          %s174 = smul.addr %s173, 4
          %s175 = scalar_lea.vmem %s0, %s174
          // Predicated region
          $region21: #{cnn_classifier_forward.6} parent=19 // pred_check
            _
          $region22: #{cnn_classifier_forward.6} parent=19 // pred_check_branch
            %177 = sbr.rel (0) target = $region24
          $region23: #{cnn_classifier_forward.6} parent=19 // pred_region
            // Predicated region
            $region25: #{cnn_classifier_forward.6} parent=23 // pred_check
              _
            $region26: #{cnn_classifier_forward.6} parent=23 // pred_check_branch
              %179 = sbr.rel (0) target = $region28
            $region27: #{cnn_classifier_forward.6} parent=23 // pred_region
              loop: start=0, step=1, limit=1
              $region29: #{cnn_classifier_forward.6} parent=27 // loop_pre_header
                _
              $region30: #{cnn_classifier_forward.6} parent=27 // loop_header
                %s181 = sphi 0, %s185
                %p182 = scmp.ge.s32.totalorder %s181, 1
                %s186 = sphi %s175, %s175
                %s187 = sphi %s169, %s169
              $region31: #{cnn_classifier_forward.6} parent=27 // loop_header_branch
                %184 = sbr.rel (%p182) target = $region35
              $region32: #{cnn_classifier_forward.6} parent=27 // loop_body
                %v188 = vld [vmem:[%s186] sm:$0xff]
                %189 = vst [vmem:[%s187] sm:$0xff] %v188
                %v190 = vld [vmem:[%s186 + $0x8] sm:$0xff]
                %191 = vst [vmem:[%s187 + $0x8] sm:$0xff] %v190
                %v192 = vld [vmem:[%s186 + $0x10] sm:$0xff]
                %193 = vst [vmem:[%s187 + $0x10] sm:$0xff] %v192
                %v194 = vld [vmem:[%s186 + $0x18] sm:$0xff]
                %195 = vst [vmem:[%s187 + $0x18] sm:$0xff] %v194
                %v196 = vld [vmem:[%s186 + $0x20] sm:$0xff]
                %197 = vst [vmem:[%s187 + $0x20] sm:$0xff] %v196
                %v198 = vld [vmem:[%s186 + $0x28] sm:$0xff]
                %199 = vst [vmem:[%s187 + $0x28] sm:$0xff] %v198
                %v200 = vld [vmem:[%s186 + $0x30] sm:$0xff]
                %201 = vst [vmem:[%s187 + $0x30] sm:$0xff] %v200
                %v202 = vld [vmem:[%s186 + $0x38] sm:$0xff]
                %203 = vst [vmem:[%s187 + $0x38] sm:$0xff] %v202
                %v204 = vld [vmem:[%s186 + $0x80] sm:$0xff]
                %205 = vst [vmem:[%s187 + $0x40] sm:$0xff] %v204
                %v206 = vld [vmem:[%s186 + $0x88] sm:$0xff]
                %207 = vst [vmem:[%s187 + $0x48] sm:$0xff] %v206
                %v208 = vld [vmem:[%s186 + $0x90] sm:$0xff]
                %209 = vst [vmem:[%s187 + $0x50] sm:$0xff] %v208
                %v210 = vld [vmem:[%s186 + $0x98] sm:$0xff]
                %211 = vst [vmem:[%s187 + $0x58] sm:$0xff] %v210
                %v212 = vld [vmem:[%s186 + $0xa0] sm:$0xff]
                %213 = vst [vmem:[%s187 + $0x60] sm:$0xff] %v212
                %v214 = vld [vmem:[%s186 + $0xa8] sm:$0xff]
                %215 = vst [vmem:[%s187 + $0x68] sm:$0xff] %v214
                %v216 = vld [vmem:[%s186 + $0xb0] sm:$0xff]
                %217 = vst [vmem:[%s187 + $0x70] sm:$0xff] %v216
                %v218 = vld [vmem:[%s186 + $0xb8] sm:$0xff]
                %219 = vst [vmem:[%s187 + $0x78] sm:$0xff] %v218
              $region33: #{cnn_classifier_forward.6} parent=27 // loop_footer
                %s185 = sadd.s32 1, %s181
              $region34: #{cnn_classifier_forward.6} parent=27 // loop_footer_branch
                %180 = sbr.rel target = $region30
              $region35: #{cnn_classifier_forward.6} parent=27 // loop_exit
                _
            $region28: #{cnn_classifier_forward.6} parent=23 // pred_fallthru
              _
            // Predicated region
            $region36: #{cnn_classifier_forward.6} parent=23 // pred_check
              _
            $region37: #{cnn_classifier_forward.6} parent=23 // pred_check_branch
              %221 = sbr.rel target = $region39
            $region38: #{cnn_classifier_forward.6} parent=23 // pred_region
              _
            $region39: #{cnn_classifier_forward.6} parent=23 // pred_fallthru
              _
          $region24: #{cnn_classifier_forward.6} parent=19 // pred_fallthru
            _
          %222 = vnop
        $region20: #{cnn_classifier_forward.6} parent=15 // pred_fallthru
          _
        // Predicated region
        $region40: #{cnn_classifier_forward.6} parent=15 // pred_check
          %p223 = pneg %p84
        $region41: #{cnn_classifier_forward.6} parent=15 // pred_check_branch
          %225 = sbr.rel (%p223) target = $region43
        $region42: #{cnn_classifier_forward.6} parent=15 // pred_region
          %s226 = sand.u32 %s74, 1
          %s227 = scalar_lea.sflag [#allocation5], %s226
          %s228 = sand.u32 %s74, 1
          %s229 = smul.addr %s228, 4096
          %s230 = scalar_lea.vmem [#allocation4], %s229
          %s231 = smul.u32 256, %s24
          %s232 = smul.u32 4, %s23
          %234 = vsyncadd %s227, 0
          %s235 = smul.addr %s231, 8
          %s236 = sadd.s32 %s232, %s235
          %s237 = smul.addr %s236, 4
          %s238 = scalar_lea.hbm %s1, %s237
          %s239 = sshll.u32 %s238, 4
          %s240 = int_to_ptr.hbm [resolvable:$true] %s239
          %s241 = sshll.u32 %s230, 4
          %s242 = int_to_ptr.vmem [resolvable:$true] %s241
          %247 = dma.hbm_to_vmem [thread:$0]  %s240, 65536, %s242, %s227, 512, 256, 16
        $region43: #{cnn_classifier_forward.6} parent=15 // pred_fallthru
          _
        // Predicated region
        $region44: #{cnn_classifier_forward.6} parent=15 // pred_check
          %p248 = pneg %p110
        $region45: #{cnn_classifier_forward.6} parent=15 // pred_check_branch
          %250 = sbr.rel (%p248) target = $region47
        $region46: #{cnn_classifier_forward.6} parent=15 // pred_region
          %s251 = sand.u32 %s100, 1
          %s252 = scalar_lea.sflag [#allocation7], %s251
          %s253 = sand.u32 %s100, 1
          %s254 = smul.addr %s253, 4
          %s255 = scalar_lea.vmem [#allocation6], %s254
          %s256 = smul.u32 4, %s23
          %258 = vsyncadd %s252, 0
          %s259 = scalar_lea.hbm %s2, %s256
          %s261 = sshll.u32 %s259, 4
          %s262 = int_to_ptr.hbm [resolvable:$true] %s261
          %s263 = sshll.u32 %s255, 4
          %s264 = int_to_ptr.vmem [resolvable:$true] %s263
          %266 = dma.hbm_to_vmem [thread:$0]  %s262, 64, %s264, %s252
        $region47: #{cnn_classifier_forward.6} parent=15 // pred_fallthru
          _
      $region16: #{cnn_classifier_forward.6} parent=5 // pred_fallthru
        _
      %p267 = scmp.le.s32.totalorder 1, %s15
      %p268 = scmp.lt.s32.totalorder %s15, 5
      %p269 = pnand %p267, %p268
      %p270 = pneg %p269
      // Predicated region
      $region48: #{cnn_classifier_forward.6} parent=5 // pred_check
        _
      $region49: #{cnn_classifier_forward.6} parent=5 // pred_check_branch
        %272 = sbr.rel (%p269) target = $region51
      $region50: #{cnn_classifier_forward.6} parent=5 // pred_region
        %s273 = ssub.s32 %s15, 1
        %s274 = sand.u32 %s49, 1
        %s275 = sand.u32 %s49, 1
        %s276 = smul.addr %s275, 128
        %s277 = scalar_lea.vmem [#allocation3], %s276
        // Predicated region
        $region52: #{cnn_classifier_forward.6} parent=50 // pred_check
          %p278 = pneg %p62
        $region53: #{cnn_classifier_forward.6} parent=50 // pred_check_branch
          %280 = sbr.rel (%p278) target = $region55
        $region54: #{cnn_classifier_forward.6} parent=50 // pred_region
          _
        $region55: #{cnn_classifier_forward.6} parent=50 // pred_fallthru
          _
        %s281 = sand.u32 %s77, 1
        %s282 = scalar_lea.sflag [#allocation5], %s281
        %s283 = sand.u32 %s77, 1
        %s284 = smul.addr %s283, 4096
        %s285 = scalar_lea.vmem [#allocation4], %s284
        // Predicated region
        $region56: #{cnn_classifier_forward.6} parent=50 // pred_check
          %p286 = pneg %p90
        $region57: #{cnn_classifier_forward.6} parent=50 // pred_check_branch
          %288 = sbr.rel (%p286) target = $region59
        $region58: #{cnn_classifier_forward.6} parent=50 // pred_region
          %290 = dma.done %s282, 65536
        $region59: #{cnn_classifier_forward.6} parent=50 // pred_fallthru
          _
        %s291 = sand.u32 %s103, 1
        %s292 = scalar_lea.sflag [#allocation7], %s291
        %s293 = sand.u32 %s103, 1
        %s294 = smul.addr %s293, 4
        %s295 = scalar_lea.vmem [#allocation6], %s294
        // Predicated region
        $region60: #{cnn_classifier_forward.6} parent=50 // pred_check
          %p296 = pneg %p116
        $region61: #{cnn_classifier_forward.6} parent=50 // pred_check_branch
          %298 = sbr.rel (%p296) target = $region63
        $region62: #{cnn_classifier_forward.6} parent=50 // pred_region
          %300 = dma.done %s292, 64
        $region63: #{cnn_classifier_forward.6} parent=50 // pred_fallthru
          _
        %s301 = sand.u32 %s49, 1
        %s302 = sand.u32 %s49, 1
        %s303 = smul.addr %s302, 128
        %s304 = scalar_lea.vmem [#allocation3], %s303
        %p305 = pneg %p62
        %p306 = pneg %p59
        %s307 = sand.u32 %s77, 1
        %s308 = scalar_lea.sflag [#allocation5], %s307
        %s309 = sand.u32 %s77, 1
        %s310 = smul.addr %s309, 4096
        %s311 = scalar_lea.vmem [#allocation4], %s310
        %p312 = pneg %p90
        %p313 = pneg %p87
        %s314 = sand.u32 %s103, 1
        %s315 = scalar_lea.sflag [#allocation7], %s314
        %s316 = sand.u32 %s103, 1
        %s317 = smul.addr %s316, 4
        %s318 = scalar_lea.vmem [#allocation6], %s317
        %p319 = pneg %p116
        %p320 = pneg %p113
        %p321 = pneg %p144
        %p322 = pneg %p141
        %s323 = sand.u32 %s131, 1
        %s324 = sand.u32 %s131, 1
        %s325 = smul.addr %s324, 32
        %s326 = scalar_lea.vmem [#allocation8], %s325
        %s327 = smul.u32 2, %s25
        %s328 = smul.u32 16, %s27
        %s329 = smul.u32 256, %s27
        %s330 = smul.u32 4, %s26
        %s331 = smul.u32 4, %s26
        %s332 = smul.u32 2, %s25
        %s333 = smul.u32 4, %s26
        %p334 = scmp.eq.s32.totalorder %s27, 0
        // Predicated region
        $region64: #{cnn_classifier_forward.6} parent=50 // pred_check
          %p335 = pneg %p334
        $region65: #{cnn_classifier_forward.6} parent=50 // pred_check_branch
          %337 = sbr.rel (%p335) target = $region67
        $region66: #{cnn_classifier_forward.6} parent=50 // pred_region
          %338 = vst [vmem:[#allocation2] sm:$0xff] 0.0
          %339 = vst [vmem:[#allocation2 + $0x8] sm:$0xff] 0.0
          %340 = vst [vmem:[#allocation2 + $0x10] sm:$0xff] 0.0
          %341 = vst [vmem:[#allocation2 + $0x18] sm:$0xff] 0.0
          %342 = vst [vmem:[#allocation2 + $0x20] sm:$0xff] 0.0
          %343 = vst [vmem:[#allocation2 + $0x28] sm:$0xff] 0.0
          %344 = vst [vmem:[#allocation2 + $0x30] sm:$0xff] 0.0
          %345 = vst [vmem:[#allocation2 + $0x38] sm:$0xff] 0.0
        $region67: #{cnn_classifier_forward.6} parent=50 // pred_fallthru
          _
        %v346 = vld [vmem:[#allocation2] sm:$0xff]
        %v347 = vld [vmem:[#allocation2 + $0x8] sm:$0xff]
        %v348 = vld [vmem:[#allocation2 + $0x10] sm:$0xff]
        %v349 = vld [vmem:[#allocation2 + $0x18] sm:$0xff]
        %v350 = vld [vmem:[#allocation2 + $0x20] sm:$0xff]
        %v351 = vld [vmem:[#allocation2 + $0x28] sm:$0xff]
        %v352 = vld [vmem:[#allocation2 + $0x30] sm:$0xff]
        %v353 = vld [vmem:[#allocation2 + $0x38] sm:$0xff]
        %v354 = vld [vmem:[%s277] sm:$0xff]
        %v355 = vld [vmem:[%s277 + $0x8] sm:$0xff]
        %v356 = vld [vmem:[%s277 + $0x10] sm:$0xff]
        %v357 = vld [vmem:[%s277 + $0x18] sm:$0xff]
        %v358 = vld [vmem:[%s277 + $0x20] sm:$0xff]
        %v359 = vld [vmem:[%s277 + $0x28] sm:$0xff]
        %v360 = vld [vmem:[%s277 + $0x30] sm:$0xff]
        %v361 = vld [vmem:[%s277 + $0x38] sm:$0xff]
        %v362 = vld [vmem:[%s277 + $0x40] sm:$0xff]
        %v363 = vld [vmem:[%s277 + $0x48] sm:$0xff]
        %v364 = vld [vmem:[%s277 + $0x50] sm:$0xff]
        %v365 = vld [vmem:[%s277 + $0x58] sm:$0xff]
        %v366 = vld [vmem:[%s277 + $0x60] sm:$0xff]
        %v367 = vld [vmem:[%s277 + $0x68] sm:$0xff]
        %v368 = vld [vmem:[%s277 + $0x70] sm:$0xff]
        %v369 = vld [vmem:[%s277 + $0x78] sm:$0xff]
        %v370 = vld [vmem:[%s285] sm:$0xff]
        %v371 = vld [vmem:[%s285 + $0x8] sm:$0xff]
        %v372 = vld [vmem:[%s285 + $0x10] sm:$0xff]
        %v373 = vld [vmem:[%s285 + $0x18] sm:$0xff]
        %v374 = vld [vmem:[%s285 + $0x20] sm:$0xff]
        %v375 = vld [vmem:[%s285 + $0x28] sm:$0xff]
        %v376 = vld [vmem:[%s285 + $0x30] sm:$0xff]
        %v377 = vld [vmem:[%s285 + $0x38] sm:$0xff]
        %v378 = vld [vmem:[%s285 + $0x40] sm:$0xff]
        %v379 = vld [vmem:[%s285 + $0x48] sm:$0xff]
        %v380 = vld [vmem:[%s285 + $0x50] sm:$0xff]
        %v381 = vld [vmem:[%s285 + $0x58] sm:$0xff]
        %v382 = vld [vmem:[%s285 + $0x60] sm:$0xff]
        %v383 = vld [vmem:[%s285 + $0x68] sm:$0xff]
        %v384 = vld [vmem:[%s285 + $0x70] sm:$0xff]
        %v385 = vld [vmem:[%s285 + $0x78] sm:$0xff]
        %v386 = vld [vmem:[%s285 + $0x80] sm:$0xff]
        %v387 = vld [vmem:[%s285 + $0x88] sm:$0xff]
        %v388 = vld [vmem:[%s285 + $0x90] sm:$0xff]
        %v389 = vld [vmem:[%s285 + $0x98] sm:$0xff]
        %v390 = vld [vmem:[%s285 + $0xa0] sm:$0xff]
        %v391 = vld [vmem:[%s285 + $0xa8] sm:$0xff]
        %v392 = vld [vmem:[%s285 + $0xb0] sm:$0xff]
        %v393 = vld [vmem:[%s285 + $0xb8] sm:$0xff]
        %v394 = vld [vmem:[%s285 + $0xc0] sm:$0xff]
        %v395 = vld [vmem:[%s285 + $0xc8] sm:$0xff]
        %v396 = vld [vmem:[%s285 + $0xd0] sm:$0xff]
        %v397 = vld [vmem:[%s285 + $0xd8] sm:$0xff]
        %v398 = vld [vmem:[%s285 + $0xe0] sm:$0xff]
        %v399 = vld [vmem:[%s285 + $0xe8] sm:$0xff]
        %v400 = vld [vmem:[%s285 + $0xf0] sm:$0xff]
        %v401 = vld [vmem:[%s285 + $0xf8] sm:$0xff]
        %v402 = vld [vmem:[%s285 + $0x100] sm:$0xff]
        %v403 = vld [vmem:[%s285 + $0x108] sm:$0xff]
        %v404 = vld [vmem:[%s285 + $0x110] sm:$0xff]
        %v405 = vld [vmem:[%s285 + $0x118] sm:$0xff]
        %v406 = vld [vmem:[%s285 + $0x120] sm:$0xff]
        %v407 = vld [vmem:[%s285 + $0x128] sm:$0xff]
        %v408 = vld [vmem:[%s285 + $0x130] sm:$0xff]
        %v409 = vld [vmem:[%s285 + $0x138] sm:$0xff]
        %v410 = vld [vmem:[%s285 + $0x140] sm:$0xff]
        %v411 = vld [vmem:[%s285 + $0x148] sm:$0xff]
        %v412 = vld [vmem:[%s285 + $0x150] sm:$0xff]
        %v413 = vld [vmem:[%s285 + $0x158] sm:$0xff]
        %v414 = vld [vmem:[%s285 + $0x160] sm:$0xff]
        %v415 = vld [vmem:[%s285 + $0x168] sm:$0xff]
        %v416 = vld [vmem:[%s285 + $0x170] sm:$0xff]
        %v417 = vld [vmem:[%s285 + $0x178] sm:$0xff]
        %v418 = vld [vmem:[%s285 + $0x180] sm:$0xff]
        %v419 = vld [vmem:[%s285 + $0x188] sm:$0xff]
        %v420 = vld [vmem:[%s285 + $0x190] sm:$0xff]
        %v421 = vld [vmem:[%s285 + $0x198] sm:$0xff]
        %v422 = vld [vmem:[%s285 + $0x1a0] sm:$0xff]
        %v423 = vld [vmem:[%s285 + $0x1a8] sm:$0xff]
        %v424 = vld [vmem:[%s285 + $0x1b0] sm:$0xff]
        %v425 = vld [vmem:[%s285 + $0x1b8] sm:$0xff]
        %v426 = vld [vmem:[%s285 + $0x1c0] sm:$0xff]
        %v427 = vld [vmem:[%s285 + $0x1c8] sm:$0xff]
        %v428 = vld [vmem:[%s285 + $0x1d0] sm:$0xff]
        %v429 = vld [vmem:[%s285 + $0x1d8] sm:$0xff]
        %v430 = vld [vmem:[%s285 + $0x1e0] sm:$0xff]
        %v431 = vld [vmem:[%s285 + $0x1e8] sm:$0xff]
        %v432 = vld [vmem:[%s285 + $0x1f0] sm:$0xff]
        %v433 = vld [vmem:[%s285 + $0x1f8] sm:$0xff]
        %v434 = vld [vmem:[%s285 + $0x200] sm:$0xff]
        %v435 = vld [vmem:[%s285 + $0x208] sm:$0xff]
        %v436 = vld [vmem:[%s285 + $0x210] sm:$0xff]
        %v437 = vld [vmem:[%s285 + $0x218] sm:$0xff]
        %v438 = vld [vmem:[%s285 + $0x220] sm:$0xff]
        %v439 = vld [vmem:[%s285 + $0x228] sm:$0xff]
        %v440 = vld [vmem:[%s285 + $0x230] sm:$0xff]
        %v441 = vld [vmem:[%s285 + $0x238] sm:$0xff]
        %v442 = vld [vmem:[%s285 + $0x240] sm:$0xff]
        %v443 = vld [vmem:[%s285 + $0x248] sm:$0xff]
        %v444 = vld [vmem:[%s285 + $0x250] sm:$0xff]
        %v445 = vld [vmem:[%s285 + $0x258] sm:$0xff]
        %v446 = vld [vmem:[%s285 + $0x260] sm:$0xff]
        %v447 = vld [vmem:[%s285 + $0x268] sm:$0xff]
        %v448 = vld [vmem:[%s285 + $0x270] sm:$0xff]
        %v449 = vld [vmem:[%s285 + $0x278] sm:$0xff]
        %v450 = vld [vmem:[%s285 + $0x280] sm:$0xff]
        %v451 = vld [vmem:[%s285 + $0x288] sm:$0xff]
        %v452 = vld [vmem:[%s285 + $0x290] sm:$0xff]
        %v453 = vld [vmem:[%s285 + $0x298] sm:$0xff]
        %v454 = vld [vmem:[%s285 + $0x2a0] sm:$0xff]
        %v455 = vld [vmem:[%s285 + $0x2a8] sm:$0xff]
        %v456 = vld [vmem:[%s285 + $0x2b0] sm:$0xff]
        %v457 = vld [vmem:[%s285 + $0x2b8] sm:$0xff]
        %v458 = vld [vmem:[%s285 + $0x2c0] sm:$0xff]
        %v459 = vld [vmem:[%s285 + $0x2c8] sm:$0xff]
        %v460 = vld [vmem:[%s285 + $0x2d0] sm:$0xff]
        %v461 = vld [vmem:[%s285 + $0x2d8] sm:$0xff]
        %v462 = vld [vmem:[%s285 + $0x2e0] sm:$0xff]
        %v463 = vld [vmem:[%s285 + $0x2e8] sm:$0xff]
        %v464 = vld [vmem:[%s285 + $0x2f0] sm:$0xff]
        %v465 = vld [vmem:[%s285 + $0x2f8] sm:$0xff]
        %v466 = vld [vmem:[%s285 + $0x300] sm:$0xff]
        %v467 = vld [vmem:[%s285 + $0x308] sm:$0xff]
        %v468 = vld [vmem:[%s285 + $0x310] sm:$0xff]
        %v469 = vld [vmem:[%s285 + $0x318] sm:$0xff]
        %v470 = vld [vmem:[%s285 + $0x320] sm:$0xff]
        %v471 = vld [vmem:[%s285 + $0x328] sm:$0xff]
        %v472 = vld [vmem:[%s285 + $0x330] sm:$0xff]
        %v473 = vld [vmem:[%s285 + $0x338] sm:$0xff]
        %v474 = vld [vmem:[%s285 + $0x340] sm:$0xff]
        %v475 = vld [vmem:[%s285 + $0x348] sm:$0xff]
        %v476 = vld [vmem:[%s285 + $0x350] sm:$0xff]
        %v477 = vld [vmem:[%s285 + $0x358] sm:$0xff]
        %v478 = vld [vmem:[%s285 + $0x360] sm:$0xff]
        %v479 = vld [vmem:[%s285 + $0x368] sm:$0xff]
        %v480 = vld [vmem:[%s285 + $0x370] sm:$0xff]
        %v481 = vld [vmem:[%s285 + $0x378] sm:$0xff]
        %v482 = vld [vmem:[%s285 + $0x380] sm:$0xff]
        %v483 = vld [vmem:[%s285 + $0x388] sm:$0xff]
        %v484 = vld [vmem:[%s285 + $0x390] sm:$0xff]
        %v485 = vld [vmem:[%s285 + $0x398] sm:$0xff]
        %v486 = vld [vmem:[%s285 + $0x3a0] sm:$0xff]
        %v487 = vld [vmem:[%s285 + $0x3a8] sm:$0xff]
        %v488 = vld [vmem:[%s285 + $0x3b0] sm:$0xff]
        %v489 = vld [vmem:[%s285 + $0x3b8] sm:$0xff]
        %v490 = vld [vmem:[%s285 + $0x3c0] sm:$0xff]
        %v491 = vld [vmem:[%s285 + $0x3c8] sm:$0xff]
        %v492 = vld [vmem:[%s285 + $0x3d0] sm:$0xff]
        %v493 = vld [vmem:[%s285 + $0x3d8] sm:$0xff]
        %v494 = vld [vmem:[%s285 + $0x3e0] sm:$0xff]
        %v495 = vld [vmem:[%s285 + $0x3e8] sm:$0xff]
        %v496 = vld [vmem:[%s285 + $0x3f0] sm:$0xff]
        %v497 = vld [vmem:[%s285 + $0x3f8] sm:$0xff]
        %v498 = vld [vmem:[%s285 + $0x400] sm:$0xff]
        %v499 = vld [vmem:[%s285 + $0x408] sm:$0xff]
        %v500 = vld [vmem:[%s285 + $0x410] sm:$0xff]
        %v501 = vld [vmem:[%s285 + $0x418] sm:$0xff]
        %v502 = vld [vmem:[%s285 + $0x420] sm:$0xff]
        %v503 = vld [vmem:[%s285 + $0x428] sm:$0xff]
        %v504 = vld [vmem:[%s285 + $0x430] sm:$0xff]
        %v505 = vld [vmem:[%s285 + $0x438] sm:$0xff]
        %v506 = vld [vmem:[%s285 + $0x440] sm:$0xff]
        %v507 = vld [vmem:[%s285 + $0x448] sm:$0xff]
        %v508 = vld [vmem:[%s285 + $0x450] sm:$0xff]
        %v509 = vld [vmem:[%s285 + $0x458] sm:$0xff]
        %v510 = vld [vmem:[%s285 + $0x460] sm:$0xff]
        %v511 = vld [vmem:[%s285 + $0x468] sm:$0xff]
        %v512 = vld [vmem:[%s285 + $0x470] sm:$0xff]
        %v513 = vld [vmem:[%s285 + $0x478] sm:$0xff]
        %v514 = vld [vmem:[%s285 + $0x480] sm:$0xff]
        %v515 = vld [vmem:[%s285 + $0x488] sm:$0xff]
        %v516 = vld [vmem:[%s285 + $0x490] sm:$0xff]
        %v517 = vld [vmem:[%s285 + $0x498] sm:$0xff]
        %v518 = vld [vmem:[%s285 + $0x4a0] sm:$0xff]
        %v519 = vld [vmem:[%s285 + $0x4a8] sm:$0xff]
        %v520 = vld [vmem:[%s285 + $0x4b0] sm:$0xff]
        %v521 = vld [vmem:[%s285 + $0x4b8] sm:$0xff]
        %v522 = vld [vmem:[%s285 + $0x4c0] sm:$0xff]
        %v523 = vld [vmem:[%s285 + $0x4c8] sm:$0xff]
        %v524 = vld [vmem:[%s285 + $0x4d0] sm:$0xff]
        %v525 = vld [vmem:[%s285 + $0x4d8] sm:$0xff]
        %v526 = vld [vmem:[%s285 + $0x4e0] sm:$0xff]
        %v527 = vld [vmem:[%s285 + $0x4e8] sm:$0xff]
        %v528 = vld [vmem:[%s285 + $0x4f0] sm:$0xff]
        %v529 = vld [vmem:[%s285 + $0x4f8] sm:$0xff]
        %v530 = vld [vmem:[%s285 + $0x500] sm:$0xff]
        %v531 = vld [vmem:[%s285 + $0x508] sm:$0xff]
        %v532 = vld [vmem:[%s285 + $0x510] sm:$0xff]
        %v533 = vld [vmem:[%s285 + $0x518] sm:$0xff]
        %v534 = vld [vmem:[%s285 + $0x520] sm:$0xff]
        %v535 = vld [vmem:[%s285 + $0x528] sm:$0xff]
        %v536 = vld [vmem:[%s285 + $0x530] sm:$0xff]
        %v537 = vld [vmem:[%s285 + $0x538] sm:$0xff]
        %v538 = vld [vmem:[%s285 + $0x540] sm:$0xff]
        %v539 = vld [vmem:[%s285 + $0x548] sm:$0xff]
        %v540 = vld [vmem:[%s285 + $0x550] sm:$0xff]
        %v541 = vld [vmem:[%s285 + $0x558] sm:$0xff]
        %v542 = vld [vmem:[%s285 + $0x560] sm:$0xff]
        %v543 = vld [vmem:[%s285 + $0x568] sm:$0xff]
        %v544 = vld [vmem:[%s285 + $0x570] sm:$0xff]
        %v545 = vld [vmem:[%s285 + $0x578] sm:$0xff]
        %v546 = vld [vmem:[%s285 + $0x580] sm:$0xff]
        %v547 = vld [vmem:[%s285 + $0x588] sm:$0xff]
        %v548 = vld [vmem:[%s285 + $0x590] sm:$0xff]
        %v549 = vld [vmem:[%s285 + $0x598] sm:$0xff]
        %v550 = vld [vmem:[%s285 + $0x5a0] sm:$0xff]
        %v551 = vld [vmem:[%s285 + $0x5a8] sm:$0xff]
        %v552 = vld [vmem:[%s285 + $0x5b0] sm:$0xff]
        %v553 = vld [vmem:[%s285 + $0x5b8] sm:$0xff]
        %v554 = vld [vmem:[%s285 + $0x5c0] sm:$0xff]
        %v555 = vld [vmem:[%s285 + $0x5c8] sm:$0xff]
        %v556 = vld [vmem:[%s285 + $0x5d0] sm:$0xff]
        %v557 = vld [vmem:[%s285 + $0x5d8] sm:$0xff]
        %v558 = vld [vmem:[%s285 + $0x5e0] sm:$0xff]
        %v559 = vld [vmem:[%s285 + $0x5e8] sm:$0xff]
        %v560 = vld [vmem:[%s285 + $0x5f0] sm:$0xff]
        %v561 = vld [vmem:[%s285 + $0x5f8] sm:$0xff]
        %v562 = vld [vmem:[%s285 + $0x600] sm:$0xff]
        %v563 = vld [vmem:[%s285 + $0x608] sm:$0xff]
        %v564 = vld [vmem:[%s285 + $0x610] sm:$0xff]
        %v565 = vld [vmem:[%s285 + $0x618] sm:$0xff]
        %v566 = vld [vmem:[%s285 + $0x620] sm:$0xff]
        %v567 = vld [vmem:[%s285 + $0x628] sm:$0xff]
        %v568 = vld [vmem:[%s285 + $0x630] sm:$0xff]
        %v569 = vld [vmem:[%s285 + $0x638] sm:$0xff]
        %v570 = vld [vmem:[%s285 + $0x640] sm:$0xff]
        %v571 = vld [vmem:[%s285 + $0x648] sm:$0xff]
        %v572 = vld [vmem:[%s285 + $0x650] sm:$0xff]
        %v573 = vld [vmem:[%s285 + $0x658] sm:$0xff]
        %v574 = vld [vmem:[%s285 + $0x660] sm:$0xff]
        %v575 = vld [vmem:[%s285 + $0x668] sm:$0xff]
        %v576 = vld [vmem:[%s285 + $0x670] sm:$0xff]
        %v577 = vld [vmem:[%s285 + $0x678] sm:$0xff]
        %v578 = vld [vmem:[%s285 + $0x680] sm:$0xff]
        %v579 = vld [vmem:[%s285 + $0x688] sm:$0xff]
        %v580 = vld [vmem:[%s285 + $0x690] sm:$0xff]
        %v581 = vld [vmem:[%s285 + $0x698] sm:$0xff]
        %v582 = vld [vmem:[%s285 + $0x6a0] sm:$0xff]
        %v583 = vld [vmem:[%s285 + $0x6a8] sm:$0xff]
        %v584 = vld [vmem:[%s285 + $0x6b0] sm:$0xff]
        %v585 = vld [vmem:[%s285 + $0x6b8] sm:$0xff]
        %v586 = vld [vmem:[%s285 + $0x6c0] sm:$0xff]
        %v587 = vld [vmem:[%s285 + $0x6c8] sm:$0xff]
        %v588 = vld [vmem:[%s285 + $0x6d0] sm:$0xff]
        %v589 = vld [vmem:[%s285 + $0x6d8] sm:$0xff]
        %v590 = vld [vmem:[%s285 + $0x6e0] sm:$0xff]
        %v591 = vld [vmem:[%s285 + $0x6e8] sm:$0xff]
        %v592 = vld [vmem:[%s285 + $0x6f0] sm:$0xff]
        %v593 = vld [vmem:[%s285 + $0x6f8] sm:$0xff]
        %v594 = vld [vmem:[%s285 + $0x700] sm:$0xff]
        %v595 = vld [vmem:[%s285 + $0x708] sm:$0xff]
        %v596 = vld [vmem:[%s285 + $0x710] sm:$0xff]
        %v597 = vld [vmem:[%s285 + $0x718] sm:$0xff]
        %v598 = vld [vmem:[%s285 + $0x720] sm:$0xff]
        %v599 = vld [vmem:[%s285 + $0x728] sm:$0xff]
        %v600 = vld [vmem:[%s285 + $0x730] sm:$0xff]
        %v601 = vld [vmem:[%s285 + $0x738] sm:$0xff]
        %v602 = vld [vmem:[%s285 + $0x740] sm:$0xff]
        %v603 = vld [vmem:[%s285 + $0x748] sm:$0xff]
        %v604 = vld [vmem:[%s285 + $0x750] sm:$0xff]
        %v605 = vld [vmem:[%s285 + $0x758] sm:$0xff]
        %v606 = vld [vmem:[%s285 + $0x760] sm:$0xff]
        %v607 = vld [vmem:[%s285 + $0x768] sm:$0xff]
        %v608 = vld [vmem:[%s285 + $0x770] sm:$0xff]
        %v609 = vld [vmem:[%s285 + $0x778] sm:$0xff]
        %v610 = vld [vmem:[%s285 + $0x780] sm:$0xff]
        %v611 = vld [vmem:[%s285 + $0x788] sm:$0xff]
        %v612 = vld [vmem:[%s285 + $0x790] sm:$0xff]
        %v613 = vld [vmem:[%s285 + $0x798] sm:$0xff]
        %v614 = vld [vmem:[%s285 + $0x7a0] sm:$0xff]
        %v615 = vld [vmem:[%s285 + $0x7a8] sm:$0xff]
        %v616 = vld [vmem:[%s285 + $0x7b0] sm:$0xff]
        %v617 = vld [vmem:[%s285 + $0x7b8] sm:$0xff]
        %v618 = vld [vmem:[%s285 + $0x7c0] sm:$0xff]
        %v619 = vld [vmem:[%s285 + $0x7c8] sm:$0xff]
        %v620 = vld [vmem:[%s285 + $0x7d0] sm:$0xff]
        %v621 = vld [vmem:[%s285 + $0x7d8] sm:$0xff]
        %v622 = vld [vmem:[%s285 + $0x7e0] sm:$0xff]
        %v623 = vld [vmem:[%s285 + $0x7e8] sm:$0xff]
        %v624 = vld [vmem:[%s285 + $0x7f0] sm:$0xff]
        %v625 = vld [vmem:[%s285 + $0x7f8] sm:$0xff]
        %v626 = vld [vmem:[%s285 + $0x800] sm:$0xff]
        %v627 = vld [vmem:[%s285 + $0x808] sm:$0xff]
        %v628 = vld [vmem:[%s285 + $0x810] sm:$0xff]
        %v629 = vld [vmem:[%s285 + $0x818] sm:$0xff]
        %v630 = vld [vmem:[%s285 + $0x820] sm:$0xff]
        %v631 = vld [vmem:[%s285 + $0x828] sm:$0xff]
        %v632 = vld [vmem:[%s285 + $0x830] sm:$0xff]
        %v633 = vld [vmem:[%s285 + $0x838] sm:$0xff]
        %v634 = vld [vmem:[%s285 + $0x840] sm:$0xff]
        %v635 = vld [vmem:[%s285 + $0x848] sm:$0xff]
        %v636 = vld [vmem:[%s285 + $0x850] sm:$0xff]
        %v637 = vld [vmem:[%s285 + $0x858] sm:$0xff]
        %v638 = vld [vmem:[%s285 + $0x860] sm:$0xff]
        %v639 = vld [vmem:[%s285 + $0x868] sm:$0xff]
        %v640 = vld [vmem:[%s285 + $0x870] sm:$0xff]
        %v641 = vld [vmem:[%s285 + $0x878] sm:$0xff]
        %v642 = vld [vmem:[%s285 + $0x880] sm:$0xff]
        %v643 = vld [vmem:[%s285 + $0x888] sm:$0xff]
        %v644 = vld [vmem:[%s285 + $0x890] sm:$0xff]
        %v645 = vld [vmem:[%s285 + $0x898] sm:$0xff]
        %v646 = vld [vmem:[%s285 + $0x8a0] sm:$0xff]
        %v647 = vld [vmem:[%s285 + $0x8a8] sm:$0xff]
        %v648 = vld [vmem:[%s285 + $0x8b0] sm:$0xff]
        %v649 = vld [vmem:[%s285 + $0x8b8] sm:$0xff]
        %v650 = vld [vmem:[%s285 + $0x8c0] sm:$0xff]
        %v651 = vld [vmem:[%s285 + $0x8c8] sm:$0xff]
        %v652 = vld [vmem:[%s285 + $0x8d0] sm:$0xff]
        %v653 = vld [vmem:[%s285 + $0x8d8] sm:$0xff]
        %v654 = vld [vmem:[%s285 + $0x8e0] sm:$0xff]
        %v655 = vld [vmem:[%s285 + $0x8e8] sm:$0xff]
        %v656 = vld [vmem:[%s285 + $0x8f0] sm:$0xff]
        %v657 = vld [vmem:[%s285 + $0x8f8] sm:$0xff]
        %v658 = vld [vmem:[%s285 + $0x900] sm:$0xff]
        %v659 = vld [vmem:[%s285 + $0x908] sm:$0xff]
        %v660 = vld [vmem:[%s285 + $0x910] sm:$0xff]
        %v661 = vld [vmem:[%s285 + $0x918] sm:$0xff]
        %v662 = vld [vmem:[%s285 + $0x920] sm:$0xff]
        %v663 = vld [vmem:[%s285 + $0x928] sm:$0xff]
        %v664 = vld [vmem:[%s285 + $0x930] sm:$0xff]
        %v665 = vld [vmem:[%s285 + $0x938] sm:$0xff]
        %v666 = vld [vmem:[%s285 + $0x940] sm:$0xff]
        %v667 = vld [vmem:[%s285 + $0x948] sm:$0xff]
        %v668 = vld [vmem:[%s285 + $0x950] sm:$0xff]
        %v669 = vld [vmem:[%s285 + $0x958] sm:$0xff]
        %v670 = vld [vmem:[%s285 + $0x960] sm:$0xff]
        %v671 = vld [vmem:[%s285 + $0x968] sm:$0xff]
        %v672 = vld [vmem:[%s285 + $0x970] sm:$0xff]
        %v673 = vld [vmem:[%s285 + $0x978] sm:$0xff]
        %v674 = vld [vmem:[%s285 + $0x980] sm:$0xff]
        %v675 = vld [vmem:[%s285 + $0x988] sm:$0xff]
        %v676 = vld [vmem:[%s285 + $0x990] sm:$0xff]
        %v677 = vld [vmem:[%s285 + $0x998] sm:$0xff]
        %v678 = vld [vmem:[%s285 + $0x9a0] sm:$0xff]
        %v679 = vld [vmem:[%s285 + $0x9a8] sm:$0xff]
        %v680 = vld [vmem:[%s285 + $0x9b0] sm:$0xff]
        %v681 = vld [vmem:[%s285 + $0x9b8] sm:$0xff]
        %v682 = vld [vmem:[%s285 + $0x9c0] sm:$0xff]
        %v683 = vld [vmem:[%s285 + $0x9c8] sm:$0xff]
        %v684 = vld [vmem:[%s285 + $0x9d0] sm:$0xff]
        %v685 = vld [vmem:[%s285 + $0x9d8] sm:$0xff]
        %v686 = vld [vmem:[%s285 + $0x9e0] sm:$0xff]
        %v687 = vld [vmem:[%s285 + $0x9e8] sm:$0xff]
        %v688 = vld [vmem:[%s285 + $0x9f0] sm:$0xff]
        %v689 = vld [vmem:[%s285 + $0x9f8] sm:$0xff]
        %v690 = vld [vmem:[%s285 + $0xa00] sm:$0xff]
        %v691 = vld [vmem:[%s285 + $0xa08] sm:$0xff]
        %v692 = vld [vmem:[%s285 + $0xa10] sm:$0xff]
        %v693 = vld [vmem:[%s285 + $0xa18] sm:$0xff]
        %v694 = vld [vmem:[%s285 + $0xa20] sm:$0xff]
        %v695 = vld [vmem:[%s285 + $0xa28] sm:$0xff]
        %v696 = vld [vmem:[%s285 + $0xa30] sm:$0xff]
        %v697 = vld [vmem:[%s285 + $0xa38] sm:$0xff]
        %v698 = vld [vmem:[%s285 + $0xa40] sm:$0xff]
        %v699 = vld [vmem:[%s285 + $0xa48] sm:$0xff]
        %v700 = vld [vmem:[%s285 + $0xa50] sm:$0xff]
        %v701 = vld [vmem:[%s285 + $0xa58] sm:$0xff]
        %v702 = vld [vmem:[%s285 + $0xa60] sm:$0xff]
        %v703 = vld [vmem:[%s285 + $0xa68] sm:$0xff]
        %v704 = vld [vmem:[%s285 + $0xa70] sm:$0xff]
        %v705 = vld [vmem:[%s285 + $0xa78] sm:$0xff]
        %v706 = vld [vmem:[%s285 + $0xa80] sm:$0xff]
        %v707 = vld [vmem:[%s285 + $0xa88] sm:$0xff]
        %v708 = vld [vmem:[%s285 + $0xa90] sm:$0xff]
        %v709 = vld [vmem:[%s285 + $0xa98] sm:$0xff]
        %v710 = vld [vmem:[%s285 + $0xaa0] sm:$0xff]
        %v711 = vld [vmem:[%s285 + $0xaa8] sm:$0xff]
        %v712 = vld [vmem:[%s285 + $0xab0] sm:$0xff]
        %v713 = vld [vmem:[%s285 + $0xab8] sm:$0xff]
        %v714 = vld [vmem:[%s285 + $0xac0] sm:$0xff]
        %v715 = vld [vmem:[%s285 + $0xac8] sm:$0xff]
        %v716 = vld [vmem:[%s285 + $0xad0] sm:$0xff]
        %v717 = vld [vmem:[%s285 + $0xad8] sm:$0xff]
        %v718 = vld [vmem:[%s285 + $0xae0] sm:$0xff]
        %v719 = vld [vmem:[%s285 + $0xae8] sm:$0xff]
        %v720 = vld [vmem:[%s285 + $0xaf0] sm:$0xff]
        %v721 = vld [vmem:[%s285 + $0xaf8] sm:$0xff]
        %v722 = vld [vmem:[%s285 + $0xb00] sm:$0xff]
        %v723 = vld [vmem:[%s285 + $0xb08] sm:$0xff]
        %v724 = vld [vmem:[%s285 + $0xb10] sm:$0xff]
        %v725 = vld [vmem:[%s285 + $0xb18] sm:$0xff]
        %v726 = vld [vmem:[%s285 + $0xb20] sm:$0xff]
        %v727 = vld [vmem:[%s285 + $0xb28] sm:$0xff]
        %v728 = vld [vmem:[%s285 + $0xb30] sm:$0xff]
        %v729 = vld [vmem:[%s285 + $0xb38] sm:$0xff]
        %v730 = vld [vmem:[%s285 + $0xb40] sm:$0xff]
        %v731 = vld [vmem:[%s285 + $0xb48] sm:$0xff]
        %v732 = vld [vmem:[%s285 + $0xb50] sm:$0xff]
        %v733 = vld [vmem:[%s285 + $0xb58] sm:$0xff]
        %v734 = vld [vmem:[%s285 + $0xb60] sm:$0xff]
        %v735 = vld [vmem:[%s285 + $0xb68] sm:$0xff]
        %v736 = vld [vmem:[%s285 + $0xb70] sm:$0xff]
        %v737 = vld [vmem:[%s285 + $0xb78] sm:$0xff]
        %v738 = vld [vmem:[%s285 + $0xb80] sm:$0xff]
        %v739 = vld [vmem:[%s285 + $0xb88] sm:$0xff]
        %v740 = vld [vmem:[%s285 + $0xb90] sm:$0xff]
        %v741 = vld [vmem:[%s285 + $0xb98] sm:$0xff]
        %v742 = vld [vmem:[%s285 + $0xba0] sm:$0xff]
        %v743 = vld [vmem:[%s285 + $0xba8] sm:$0xff]
        %v744 = vld [vmem:[%s285 + $0xbb0] sm:$0xff]
        %v745 = vld [vmem:[%s285 + $0xbb8] sm:$0xff]
        %v746 = vld [vmem:[%s285 + $0xbc0] sm:$0xff]
        %v747 = vld [vmem:[%s285 + $0xbc8] sm:$0xff]
        %v748 = vld [vmem:[%s285 + $0xbd0] sm:$0xff]
        %v749 = vld [vmem:[%s285 + $0xbd8] sm:$0xff]
        %v750 = vld [vmem:[%s285 + $0xbe0] sm:$0xff]
        %v751 = vld [vmem:[%s285 + $0xbe8] sm:$0xff]
        %v752 = vld [vmem:[%s285 + $0xbf0] sm:$0xff]
        %v753 = vld [vmem:[%s285 + $0xbf8] sm:$0xff]
        %v754 = vld [vmem:[%s285 + $0xc00] sm:$0xff]
        %v755 = vld [vmem:[%s285 + $0xc08] sm:$0xff]
        %v756 = vld [vmem:[%s285 + $0xc10] sm:$0xff]
        %v757 = vld [vmem:[%s285 + $0xc18] sm:$0xff]
        %v758 = vld [vmem:[%s285 + $0xc20] sm:$0xff]
        %v759 = vld [vmem:[%s285 + $0xc28] sm:$0xff]
        %v760 = vld [vmem:[%s285 + $0xc30] sm:$0xff]
        %v761 = vld [vmem:[%s285 + $0xc38] sm:$0xff]
        %v762 = vld [vmem:[%s285 + $0xc40] sm:$0xff]
        %v763 = vld [vmem:[%s285 + $0xc48] sm:$0xff]
        %v764 = vld [vmem:[%s285 + $0xc50] sm:$0xff]
        %v765 = vld [vmem:[%s285 + $0xc58] sm:$0xff]
        %v766 = vld [vmem:[%s285 + $0xc60] sm:$0xff]
        %v767 = vld [vmem:[%s285 + $0xc68] sm:$0xff]
        %v768 = vld [vmem:[%s285 + $0xc70] sm:$0xff]
        %v769 = vld [vmem:[%s285 + $0xc78] sm:$0xff]
        %v770 = vld [vmem:[%s285 + $0xc80] sm:$0xff]
        %v771 = vld [vmem:[%s285 + $0xc88] sm:$0xff]
        %v772 = vld [vmem:[%s285 + $0xc90] sm:$0xff]
        %v773 = vld [vmem:[%s285 + $0xc98] sm:$0xff]
        %v774 = vld [vmem:[%s285 + $0xca0] sm:$0xff]
        %v775 = vld [vmem:[%s285 + $0xca8] sm:$0xff]
        %v776 = vld [vmem:[%s285 + $0xcb0] sm:$0xff]
        %v777 = vld [vmem:[%s285 + $0xcb8] sm:$0xff]
        %v778 = vld [vmem:[%s285 + $0xcc0] sm:$0xff]
        %v779 = vld [vmem:[%s285 + $0xcc8] sm:$0xff]
        %v780 = vld [vmem:[%s285 + $0xcd0] sm:$0xff]
        %v781 = vld [vmem:[%s285 + $0xcd8] sm:$0xff]
        %v782 = vld [vmem:[%s285 + $0xce0] sm:$0xff]
        %v783 = vld [vmem:[%s285 + $0xce8] sm:$0xff]
        %v784 = vld [vmem:[%s285 + $0xcf0] sm:$0xff]
        %v785 = vld [vmem:[%s285 + $0xcf8] sm:$0xff]
        %v786 = vld [vmem:[%s285 + $0xd00] sm:$0xff]
        %v787 = vld [vmem:[%s285 + $0xd08] sm:$0xff]
        %v788 = vld [vmem:[%s285 + $0xd10] sm:$0xff]
        %v789 = vld [vmem:[%s285 + $0xd18] sm:$0xff]
        %v790 = vld [vmem:[%s285 + $0xd20] sm:$0xff]
        %v791 = vld [vmem:[%s285 + $0xd28] sm:$0xff]
        %v792 = vld [vmem:[%s285 + $0xd30] sm:$0xff]
        %v793 = vld [vmem:[%s285 + $0xd38] sm:$0xff]
        %v794 = vld [vmem:[%s285 + $0xd40] sm:$0xff]
        %v795 = vld [vmem:[%s285 + $0xd48] sm:$0xff]
        %v796 = vld [vmem:[%s285 + $0xd50] sm:$0xff]
        %v797 = vld [vmem:[%s285 + $0xd58] sm:$0xff]
        %v798 = vld [vmem:[%s285 + $0xd60] sm:$0xff]
        %v799 = vld [vmem:[%s285 + $0xd68] sm:$0xff]
        %v800 = vld [vmem:[%s285 + $0xd70] sm:$0xff]
        %v801 = vld [vmem:[%s285 + $0xd78] sm:$0xff]
        %v802 = vld [vmem:[%s285 + $0xd80] sm:$0xff]
        %v803 = vld [vmem:[%s285 + $0xd88] sm:$0xff]
        %v804 = vld [vmem:[%s285 + $0xd90] sm:$0xff]
        %v805 = vld [vmem:[%s285 + $0xd98] sm:$0xff]
        %v806 = vld [vmem:[%s285 + $0xda0] sm:$0xff]
        %v807 = vld [vmem:[%s285 + $0xda8] sm:$0xff]
        %v808 = vld [vmem:[%s285 + $0xdb0] sm:$0xff]
        %v809 = vld [vmem:[%s285 + $0xdb8] sm:$0xff]
        %v810 = vld [vmem:[%s285 + $0xdc0] sm:$0xff]
        %v811 = vld [vmem:[%s285 + $0xdc8] sm:$0xff]
        %v812 = vld [vmem:[%s285 + $0xdd0] sm:$0xff]
        %v813 = vld [vmem:[%s285 + $0xdd8] sm:$0xff]
        %v814 = vld [vmem:[%s285 + $0xde0] sm:$0xff]
        %v815 = vld [vmem:[%s285 + $0xde8] sm:$0xff]
        %v816 = vld [vmem:[%s285 + $0xdf0] sm:$0xff]
        %v817 = vld [vmem:[%s285 + $0xdf8] sm:$0xff]
        %v818 = vld [vmem:[%s285 + $0xe00] sm:$0xff]
        %v819 = vld [vmem:[%s285 + $0xe08] sm:$0xff]
        %v820 = vld [vmem:[%s285 + $0xe10] sm:$0xff]
        %v821 = vld [vmem:[%s285 + $0xe18] sm:$0xff]
        %v822 = vld [vmem:[%s285 + $0xe20] sm:$0xff]
        %v823 = vld [vmem:[%s285 + $0xe28] sm:$0xff]
        %v824 = vld [vmem:[%s285 + $0xe30] sm:$0xff]
        %v825 = vld [vmem:[%s285 + $0xe38] sm:$0xff]
        %v826 = vld [vmem:[%s285 + $0xe40] sm:$0xff]
        %v827 = vld [vmem:[%s285 + $0xe48] sm:$0xff]
        %v828 = vld [vmem:[%s285 + $0xe50] sm:$0xff]
        %v829 = vld [vmem:[%s285 + $0xe58] sm:$0xff]
        %v830 = vld [vmem:[%s285 + $0xe60] sm:$0xff]
        %v831 = vld [vmem:[%s285 + $0xe68] sm:$0xff]
        %v832 = vld [vmem:[%s285 + $0xe70] sm:$0xff]
        %v833 = vld [vmem:[%s285 + $0xe78] sm:$0xff]
        %v834 = vld [vmem:[%s285 + $0xe80] sm:$0xff]
        %v835 = vld [vmem:[%s285 + $0xe88] sm:$0xff]
        %v836 = vld [vmem:[%s285 + $0xe90] sm:$0xff]
        %v837 = vld [vmem:[%s285 + $0xe98] sm:$0xff]
        %v838 = vld [vmem:[%s285 + $0xea0] sm:$0xff]
        %v839 = vld [vmem:[%s285 + $0xea8] sm:$0xff]
        %v840 = vld [vmem:[%s285 + $0xeb0] sm:$0xff]
        %v841 = vld [vmem:[%s285 + $0xeb8] sm:$0xff]
        %v842 = vld [vmem:[%s285 + $0xec0] sm:$0xff]
        %v843 = vld [vmem:[%s285 + $0xec8] sm:$0xff]
        %v844 = vld [vmem:[%s285 + $0xed0] sm:$0xff]
        %v845 = vld [vmem:[%s285 + $0xed8] sm:$0xff]
        %v846 = vld [vmem:[%s285 + $0xee0] sm:$0xff]
        %v847 = vld [vmem:[%s285 + $0xee8] sm:$0xff]
        %v848 = vld [vmem:[%s285 + $0xef0] sm:$0xff]
        %v849 = vld [vmem:[%s285 + $0xef8] sm:$0xff]
        %v850 = vld [vmem:[%s285 + $0xf00] sm:$0xff]
        %v851 = vld [vmem:[%s285 + $0xf08] sm:$0xff]
        %v852 = vld [vmem:[%s285 + $0xf10] sm:$0xff]
        %v853 = vld [vmem:[%s285 + $0xf18] sm:$0xff]
        %v854 = vld [vmem:[%s285 + $0xf20] sm:$0xff]
        %v855 = vld [vmem:[%s285 + $0xf28] sm:$0xff]
        %v856 = vld [vmem:[%s285 + $0xf30] sm:$0xff]
        %v857 = vld [vmem:[%s285 + $0xf38] sm:$0xff]
        %v858 = vld [vmem:[%s285 + $0xf40] sm:$0xff]
        %v859 = vld [vmem:[%s285 + $0xf48] sm:$0xff]
        %v860 = vld [vmem:[%s285 + $0xf50] sm:$0xff]
        %v861 = vld [vmem:[%s285 + $0xf58] sm:$0xff]
        %v862 = vld [vmem:[%s285 + $0xf60] sm:$0xff]
        %v863 = vld [vmem:[%s285 + $0xf68] sm:$0xff]
        %v864 = vld [vmem:[%s285 + $0xf70] sm:$0xff]
        %v865 = vld [vmem:[%s285 + $0xf78] sm:$0xff]
        %v866 = vld [vmem:[%s285 + $0xf80] sm:$0xff]
        %v867 = vld [vmem:[%s285 + $0xf88] sm:$0xff]
        %v868 = vld [vmem:[%s285 + $0xf90] sm:$0xff]
        %v869 = vld [vmem:[%s285 + $0xf98] sm:$0xff]
        %v870 = vld [vmem:[%s285 + $0xfa0] sm:$0xff]
        %v871 = vld [vmem:[%s285 + $0xfa8] sm:$0xff]
        %v872 = vld [vmem:[%s285 + $0xfb0] sm:$0xff]
        %v873 = vld [vmem:[%s285 + $0xfb8] sm:$0xff]
        %v874 = vld [vmem:[%s285 + $0xfc0] sm:$0xff]
        %v875 = vld [vmem:[%s285 + $0xfc8] sm:$0xff]
        %v876 = vld [vmem:[%s285 + $0xfd0] sm:$0xff]
        %v877 = vld [vmem:[%s285 + $0xfd8] sm:$0xff]
        %v878 = vld [vmem:[%s285 + $0xfe0] sm:$0xff]
        %v879 = vld [vmem:[%s285 + $0xfe8] sm:$0xff]
        %v880 = vld [vmem:[%s285 + $0xff0] sm:$0xff]
        %v881 = vld [vmem:[%s285 + $0xff8] sm:$0xff]
        %v898 = vunpack.c.l.b16 %v354
        %v899 = vunpack.c.h.b16 %v354
        %v900 = vunpack.c.l.b16 %v355
        %v901 = vunpack.c.h.b16 %v355
        %v902 = vunpack.c.l.b16 %v356
        %v903 = vunpack.c.h.b16 %v356
        %v904 = vunpack.c.l.b16 %v357
        %v905 = vunpack.c.h.b16 %v357
        %v906 = vunpack.c.l.b16 %v358
        %v907 = vunpack.c.h.b16 %v358
        %v908 = vunpack.c.l.b16 %v359
        %v909 = vunpack.c.h.b16 %v359
        %v910 = vunpack.c.l.b16 %v360
        %v911 = vunpack.c.h.b16 %v360
        %v912 = vunpack.c.l.b16 %v361
        %v913 = vunpack.c.h.b16 %v361
        %v914 = vunpack.c.l.b16 %v362
        %v915 = vunpack.c.h.b16 %v362
        %v916 = vunpack.c.l.b16 %v363
        %v917 = vunpack.c.h.b16 %v363
        %v918 = vunpack.c.l.b16 %v364
        %v919 = vunpack.c.h.b16 %v364
        %v920 = vunpack.c.l.b16 %v365
        %v921 = vunpack.c.h.b16 %v365
        %v922 = vunpack.c.l.b16 %v366
        %v923 = vunpack.c.h.b16 %v366
        %v924 = vunpack.c.l.b16 %v367
        %v925 = vunpack.c.h.b16 %v367
        %v926 = vunpack.c.l.b16 %v368
        %v927 = vunpack.c.h.b16 %v368
        %v928 = vunpack.c.l.b16 %v369
        %v929 = vunpack.c.h.b16 %v369
        %v930 = vpack.c.b16 %v914, %v898
        %v931 = vpack.c.b16 %v915, %v899
        %v932 = vpack.c.b16 %v916, %v900
        %v933 = vpack.c.b16 %v917, %v901
        %v934 = vpack.c.b16 %v918, %v902
        %v935 = vpack.c.b16 %v919, %v903
        %v936 = vpack.c.b16 %v920, %v904
        %v937 = vpack.c.b16 %v921, %v905
        %v938 = vpack.c.b16 %v922, %v906
        %v939 = vpack.c.b16 %v923, %v907
        %v940 = vpack.c.b16 %v924, %v908
        %v941 = vpack.c.b16 %v925, %v909
        %v942 = vpack.c.b16 %v926, %v910
        %v943 = vpack.c.b16 %v927, %v911
        %v944 = vpack.c.b16 %v928, %v912
        %v945 = vpack.c.b16 %v929, %v913
        %v1474 = vunpack.c.l.b16 %v370
        %v1475 = vunpack.c.h.b16 %v370
        %v1476 = vunpack.c.l.b16 %v371
        %v1477 = vunpack.c.h.b16 %v371
        %v1478 = vunpack.c.l.b16 %v372
        %v1479 = vunpack.c.h.b16 %v372
        %v1480 = vunpack.c.l.b16 %v373
        %v1481 = vunpack.c.h.b16 %v373
        %v1482 = vunpack.c.l.b16 %v374
        %v1483 = vunpack.c.h.b16 %v374
        %v1484 = vunpack.c.l.b16 %v375
        %v1485 = vunpack.c.h.b16 %v375
        %v1486 = vunpack.c.l.b16 %v376
        %v1487 = vunpack.c.h.b16 %v376
        %v1488 = vunpack.c.l.b16 %v377
        %v1489 = vunpack.c.h.b16 %v377
        %v1490 = vunpack.c.l.b16 %v378
        %v1491 = vunpack.c.h.b16 %v378
        %v1492 = vunpack.c.l.b16 %v379
        %v1493 = vunpack.c.h.b16 %v379
        %v1494 = vunpack.c.l.b16 %v380
        %v1495 = vunpack.c.h.b16 %v380
        %v1496 = vunpack.c.l.b16 %v381
        %v1497 = vunpack.c.h.b16 %v381
        %v1498 = vunpack.c.l.b16 %v382
        %v1499 = vunpack.c.h.b16 %v382
        %v1500 = vunpack.c.l.b16 %v383
        %v1501 = vunpack.c.h.b16 %v383
        %v1502 = vunpack.c.l.b16 %v384
        %v1503 = vunpack.c.h.b16 %v384
        %v1504 = vunpack.c.l.b16 %v385
        %v1505 = vunpack.c.h.b16 %v385
        %v1506 = vunpack.c.l.b16 %v386
        %v1507 = vunpack.c.h.b16 %v386
        %v1508 = vunpack.c.l.b16 %v387
        %v1509 = vunpack.c.h.b16 %v387
        %v1510 = vunpack.c.l.b16 %v388
        %v1511 = vunpack.c.h.b16 %v388
        %v1512 = vunpack.c.l.b16 %v389
        %v1513 = vunpack.c.h.b16 %v389
        %v1514 = vunpack.c.l.b16 %v390
        %v1515 = vunpack.c.h.b16 %v390
        %v1516 = vunpack.c.l.b16 %v391
        %v1517 = vunpack.c.h.b16 %v391
        %v1518 = vunpack.c.l.b16 %v392
        %v1519 = vunpack.c.h.b16 %v392
        %v1520 = vunpack.c.l.b16 %v393
        %v1521 = vunpack.c.h.b16 %v393
        %v1522 = vunpack.c.l.b16 %v394
        %v1523 = vunpack.c.h.b16 %v394
        %v1524 = vunpack.c.l.b16 %v395
        %v1525 = vunpack.c.h.b16 %v395
        %v1526 = vunpack.c.l.b16 %v396
        %v1527 = vunpack.c.h.b16 %v396
        %v1528 = vunpack.c.l.b16 %v397
        %v1529 = vunpack.c.h.b16 %v397
        %v1530 = vunpack.c.l.b16 %v398
        %v1531 = vunpack.c.h.b16 %v398
        %v1532 = vunpack.c.l.b16 %v399
        %v1533 = vunpack.c.h.b16 %v399
        %v1534 = vunpack.c.l.b16 %v400
        %v1535 = vunpack.c.h.b16 %v400
        %v1536 = vunpack.c.l.b16 %v401
        %v1537 = vunpack.c.h.b16 %v401
        %v1538 = vunpack.c.l.b16 %v402
        %v1539 = vunpack.c.h.b16 %v402
        %v1540 = vunpack.c.l.b16 %v403
        %v1541 = vunpack.c.h.b16 %v403
        %v1542 = vunpack.c.l.b16 %v404
        %v1543 = vunpack.c.h.b16 %v404
        %v1544 = vunpack.c.l.b16 %v405
        %v1545 = vunpack.c.h.b16 %v405
        %v1546 = vunpack.c.l.b16 %v406
        %v1547 = vunpack.c.h.b16 %v406
        %v1548 = vunpack.c.l.b16 %v407
        %v1549 = vunpack.c.h.b16 %v407
        %v1550 = vunpack.c.l.b16 %v408
        %v1551 = vunpack.c.h.b16 %v408
        %v1552 = vunpack.c.l.b16 %v409
        %v1553 = vunpack.c.h.b16 %v409
        %v1554 = vunpack.c.l.b16 %v410
        %v1555 = vunpack.c.h.b16 %v410
        %v1556 = vunpack.c.l.b16 %v411
        %v1557 = vunpack.c.h.b16 %v411
        %v1558 = vunpack.c.l.b16 %v412
        %v1559 = vunpack.c.h.b16 %v412
        %v1560 = vunpack.c.l.b16 %v413
        %v1561 = vunpack.c.h.b16 %v413
        %v1562 = vunpack.c.l.b16 %v414
        %v1563 = vunpack.c.h.b16 %v414
        %v1564 = vunpack.c.l.b16 %v415
        %v1565 = vunpack.c.h.b16 %v415
        %v1566 = vunpack.c.l.b16 %v416
        %v1567 = vunpack.c.h.b16 %v416
        %v1568 = vunpack.c.l.b16 %v417
        %v1569 = vunpack.c.h.b16 %v417
        %v1570 = vunpack.c.l.b16 %v418
        %v1571 = vunpack.c.h.b16 %v418
        %v1572 = vunpack.c.l.b16 %v419
        %v1573 = vunpack.c.h.b16 %v419
        %v1574 = vunpack.c.l.b16 %v420
        %v1575 = vunpack.c.h.b16 %v420
        %v1576 = vunpack.c.l.b16 %v421
        %v1577 = vunpack.c.h.b16 %v421
        %v1578 = vunpack.c.l.b16 %v422
        %v1579 = vunpack.c.h.b16 %v422
        %v1580 = vunpack.c.l.b16 %v423
        %v1581 = vunpack.c.h.b16 %v423
        %v1582 = vunpack.c.l.b16 %v424
        %v1583 = vunpack.c.h.b16 %v424
        %v1584 = vunpack.c.l.b16 %v425
        %v1585 = vunpack.c.h.b16 %v425
        %v1586 = vunpack.c.l.b16 %v426
        %v1587 = vunpack.c.h.b16 %v426
        %v1588 = vunpack.c.l.b16 %v427
        %v1589 = vunpack.c.h.b16 %v427
        %v1590 = vunpack.c.l.b16 %v428
        %v1591 = vunpack.c.h.b16 %v428
        %v1592 = vunpack.c.l.b16 %v429
        %v1593 = vunpack.c.h.b16 %v429
        %v1594 = vunpack.c.l.b16 %v430
        %v1595 = vunpack.c.h.b16 %v430
        %v1596 = vunpack.c.l.b16 %v431
        %v1597 = vunpack.c.h.b16 %v431
        %v1598 = vunpack.c.l.b16 %v432
        %v1599 = vunpack.c.h.b16 %v432
        %v1600 = vunpack.c.l.b16 %v433
        %v1601 = vunpack.c.h.b16 %v433
        %v1602 = vunpack.c.l.b16 %v434
        %v1603 = vunpack.c.h.b16 %v434
        %v1604 = vunpack.c.l.b16 %v435
        %v1605 = vunpack.c.h.b16 %v435
        %v1606 = vunpack.c.l.b16 %v436
        %v1607 = vunpack.c.h.b16 %v436
        %v1608 = vunpack.c.l.b16 %v437
        %v1609 = vunpack.c.h.b16 %v437
        %v1610 = vunpack.c.l.b16 %v438
        %v1611 = vunpack.c.h.b16 %v438
        %v1612 = vunpack.c.l.b16 %v439
        %v1613 = vunpack.c.h.b16 %v439
        %v1614 = vunpack.c.l.b16 %v440
        %v1615 = vunpack.c.h.b16 %v440
        %v1616 = vunpack.c.l.b16 %v441
        %v1617 = vunpack.c.h.b16 %v441
        %v1618 = vunpack.c.l.b16 %v442
        %v1619 = vunpack.c.h.b16 %v442
        %v1620 = vunpack.c.l.b16 %v443
        %v1621 = vunpack.c.h.b16 %v443
        %v1622 = vunpack.c.l.b16 %v444
        %v1623 = vunpack.c.h.b16 %v444
        %v1624 = vunpack.c.l.b16 %v445
        %v1625 = vunpack.c.h.b16 %v445
        %v1626 = vunpack.c.l.b16 %v446
        %v1627 = vunpack.c.h.b16 %v446
        %v1628 = vunpack.c.l.b16 %v447
        %v1629 = vunpack.c.h.b16 %v447
        %v1630 = vunpack.c.l.b16 %v448
        %v1631 = vunpack.c.h.b16 %v448
        %v1632 = vunpack.c.l.b16 %v449
        %v1633 = vunpack.c.h.b16 %v449
        %v1634 = vunpack.c.l.b16 %v450
        %v1635 = vunpack.c.h.b16 %v450
        %v1636 = vunpack.c.l.b16 %v451
        %v1637 = vunpack.c.h.b16 %v451
        %v1638 = vunpack.c.l.b16 %v452
        %v1639 = vunpack.c.h.b16 %v452
        %v1640 = vunpack.c.l.b16 %v453
        %v1641 = vunpack.c.h.b16 %v453
        %v1642 = vunpack.c.l.b16 %v454
        %v1643 = vunpack.c.h.b16 %v454
        %v1644 = vunpack.c.l.b16 %v455
        %v1645 = vunpack.c.h.b16 %v455
        %v1646 = vunpack.c.l.b16 %v456
        %v1647 = vunpack.c.h.b16 %v456
        %v1648 = vunpack.c.l.b16 %v457
        %v1649 = vunpack.c.h.b16 %v457
        %v1650 = vunpack.c.l.b16 %v458
        %v1651 = vunpack.c.h.b16 %v458
        %v1652 = vunpack.c.l.b16 %v459
        %v1653 = vunpack.c.h.b16 %v459
        %v1654 = vunpack.c.l.b16 %v460
        %v1655 = vunpack.c.h.b16 %v460
        %v1656 = vunpack.c.l.b16 %v461
        %v1657 = vunpack.c.h.b16 %v461
        %v1658 = vunpack.c.l.b16 %v462
        %v1659 = vunpack.c.h.b16 %v462
        %v1660 = vunpack.c.l.b16 %v463
        %v1661 = vunpack.c.h.b16 %v463
        %v1662 = vunpack.c.l.b16 %v464
        %v1663 = vunpack.c.h.b16 %v464
        %v1664 = vunpack.c.l.b16 %v465
        %v1665 = vunpack.c.h.b16 %v465
        %v1666 = vunpack.c.l.b16 %v466
        %v1667 = vunpack.c.h.b16 %v466
        %v1668 = vunpack.c.l.b16 %v467
        %v1669 = vunpack.c.h.b16 %v467
        %v1670 = vunpack.c.l.b16 %v468
        %v1671 = vunpack.c.h.b16 %v468
        %v1672 = vunpack.c.l.b16 %v469
        %v1673 = vunpack.c.h.b16 %v469
        %v1674 = vunpack.c.l.b16 %v470
        %v1675 = vunpack.c.h.b16 %v470
        %v1676 = vunpack.c.l.b16 %v471
        %v1677 = vunpack.c.h.b16 %v471
        %v1678 = vunpack.c.l.b16 %v472
        %v1679 = vunpack.c.h.b16 %v472
        %v1680 = vunpack.c.l.b16 %v473
        %v1681 = vunpack.c.h.b16 %v473
        %v1682 = vunpack.c.l.b16 %v474
        %v1683 = vunpack.c.h.b16 %v474
        %v1684 = vunpack.c.l.b16 %v475
        %v1685 = vunpack.c.h.b16 %v475
        %v1686 = vunpack.c.l.b16 %v476
        %v1687 = vunpack.c.h.b16 %v476
        %v1688 = vunpack.c.l.b16 %v477
        %v1689 = vunpack.c.h.b16 %v477
        %v1690 = vunpack.c.l.b16 %v478
        %v1691 = vunpack.c.h.b16 %v478
        %v1692 = vunpack.c.l.b16 %v479
        %v1693 = vunpack.c.h.b16 %v479
        %v1694 = vunpack.c.l.b16 %v480
        %v1695 = vunpack.c.h.b16 %v480
        %v1696 = vunpack.c.l.b16 %v481
        %v1697 = vunpack.c.h.b16 %v481
        %v1698 = vunpack.c.l.b16 %v482
        %v1699 = vunpack.c.h.b16 %v482
        %v1700 = vunpack.c.l.b16 %v483
        %v1701 = vunpack.c.h.b16 %v483
        %v1702 = vunpack.c.l.b16 %v484
        %v1703 = vunpack.c.h.b16 %v484
        %v1704 = vunpack.c.l.b16 %v485
        %v1705 = vunpack.c.h.b16 %v485
        %v1706 = vunpack.c.l.b16 %v486
        %v1707 = vunpack.c.h.b16 %v486
        %v1708 = vunpack.c.l.b16 %v487
        %v1709 = vunpack.c.h.b16 %v487
        %v1710 = vunpack.c.l.b16 %v488
        %v1711 = vunpack.c.h.b16 %v488
        %v1712 = vunpack.c.l.b16 %v489
        %v1713 = vunpack.c.h.b16 %v489
        %v1714 = vunpack.c.l.b16 %v490
        %v1715 = vunpack.c.h.b16 %v490
        %v1716 = vunpack.c.l.b16 %v491
        %v1717 = vunpack.c.h.b16 %v491
        %v1718 = vunpack.c.l.b16 %v492
        %v1719 = vunpack.c.h.b16 %v492
        %v1720 = vunpack.c.l.b16 %v493
        %v1721 = vunpack.c.h.b16 %v493
        %v1722 = vunpack.c.l.b16 %v494
        %v1723 = vunpack.c.h.b16 %v494
        %v1724 = vunpack.c.l.b16 %v495
        %v1725 = vunpack.c.h.b16 %v495
        %v1726 = vunpack.c.l.b16 %v496
        %v1727 = vunpack.c.h.b16 %v496
        %v1728 = vunpack.c.l.b16 %v497
        %v1729 = vunpack.c.h.b16 %v497
        %v1730 = vunpack.c.l.b16 %v498
        %v1731 = vunpack.c.h.b16 %v498
        %v1732 = vunpack.c.l.b16 %v499
        %v1733 = vunpack.c.h.b16 %v499
        %v1734 = vunpack.c.l.b16 %v500
        %v1735 = vunpack.c.h.b16 %v500
        %v1736 = vunpack.c.l.b16 %v501
        %v1737 = vunpack.c.h.b16 %v501
        %v1738 = vunpack.c.l.b16 %v502
        %v1739 = vunpack.c.h.b16 %v502
        %v1740 = vunpack.c.l.b16 %v503
        %v1741 = vunpack.c.h.b16 %v503
        %v1742 = vunpack.c.l.b16 %v504
        %v1743 = vunpack.c.h.b16 %v504
        %v1744 = vunpack.c.l.b16 %v505
        %v1745 = vunpack.c.h.b16 %v505
        %v1746 = vunpack.c.l.b16 %v506
        %v1747 = vunpack.c.h.b16 %v506
        %v1748 = vunpack.c.l.b16 %v507
        %v1749 = vunpack.c.h.b16 %v507
        %v1750 = vunpack.c.l.b16 %v508
        %v1751 = vunpack.c.h.b16 %v508
        %v1752 = vunpack.c.l.b16 %v509
        %v1753 = vunpack.c.h.b16 %v509
        %v1754 = vunpack.c.l.b16 %v510
        %v1755 = vunpack.c.h.b16 %v510
        %v1756 = vunpack.c.l.b16 %v511
        %v1757 = vunpack.c.h.b16 %v511
        %v1758 = vunpack.c.l.b16 %v512
        %v1759 = vunpack.c.h.b16 %v512
        %v1760 = vunpack.c.l.b16 %v513
        %v1761 = vunpack.c.h.b16 %v513
        %v1762 = vunpack.c.l.b16 %v514
        %v1763 = vunpack.c.h.b16 %v514
        %v1764 = vunpack.c.l.b16 %v515
        %v1765 = vunpack.c.h.b16 %v515
        %v1766 = vunpack.c.l.b16 %v516
        %v1767 = vunpack.c.h.b16 %v516
        %v1768 = vunpack.c.l.b16 %v517
        %v1769 = vunpack.c.h.b16 %v517
        %v1770 = vunpack.c.l.b16 %v518
        %v1771 = vunpack.c.h.b16 %v518
        %v1772 = vunpack.c.l.b16 %v519
        %v1773 = vunpack.c.h.b16 %v519
        %v1774 = vunpack.c.l.b16 %v520
        %v1775 = vunpack.c.h.b16 %v520
        %v1776 = vunpack.c.l.b16 %v521
        %v1777 = vunpack.c.h.b16 %v521
        %v1778 = vunpack.c.l.b16 %v522
        %v1779 = vunpack.c.h.b16 %v522
        %v1780 = vunpack.c.l.b16 %v523
        %v1781 = vunpack.c.h.b16 %v523
        %v1782 = vunpack.c.l.b16 %v524
        %v1783 = vunpack.c.h.b16 %v524
        %v1784 = vunpack.c.l.b16 %v525
        %v1785 = vunpack.c.h.b16 %v525
        %v1786 = vunpack.c.l.b16 %v526
        %v1787 = vunpack.c.h.b16 %v526
        %v1788 = vunpack.c.l.b16 %v527
        %v1789 = vunpack.c.h.b16 %v527
        %v1790 = vunpack.c.l.b16 %v528
        %v1791 = vunpack.c.h.b16 %v528
        %v1792 = vunpack.c.l.b16 %v529
        %v1793 = vunpack.c.h.b16 %v529
        %v1794 = vunpack.c.l.b16 %v530
        %v1795 = vunpack.c.h.b16 %v530
        %v1796 = vunpack.c.l.b16 %v531
        %v1797 = vunpack.c.h.b16 %v531
        %v1798 = vunpack.c.l.b16 %v532
        %v1799 = vunpack.c.h.b16 %v532
        %v1800 = vunpack.c.l.b16 %v533
        %v1801 = vunpack.c.h.b16 %v533
        %v1802 = vunpack.c.l.b16 %v534
        %v1803 = vunpack.c.h.b16 %v534
        %v1804 = vunpack.c.l.b16 %v535
        %v1805 = vunpack.c.h.b16 %v535
        %v1806 = vunpack.c.l.b16 %v536
        %v1807 = vunpack.c.h.b16 %v536
        %v1808 = vunpack.c.l.b16 %v537
        %v1809 = vunpack.c.h.b16 %v537
        %v1810 = vunpack.c.l.b16 %v538
        %v1811 = vunpack.c.h.b16 %v538
        %v1812 = vunpack.c.l.b16 %v539
        %v1813 = vunpack.c.h.b16 %v539
        %v1814 = vunpack.c.l.b16 %v540
        %v1815 = vunpack.c.h.b16 %v540
        %v1816 = vunpack.c.l.b16 %v541
        %v1817 = vunpack.c.h.b16 %v541
        %v1818 = vunpack.c.l.b16 %v542
        %v1819 = vunpack.c.h.b16 %v542
        %v1820 = vunpack.c.l.b16 %v543
        %v1821 = vunpack.c.h.b16 %v543
        %v1822 = vunpack.c.l.b16 %v544
        %v1823 = vunpack.c.h.b16 %v544
        %v1824 = vunpack.c.l.b16 %v545
        %v1825 = vunpack.c.h.b16 %v545
        %v1826 = vunpack.c.l.b16 %v546
        %v1827 = vunpack.c.h.b16 %v546
        %v1828 = vunpack.c.l.b16 %v547
        %v1829 = vunpack.c.h.b16 %v547
        %v1830 = vunpack.c.l.b16 %v548
        %v1831 = vunpack.c.h.b16 %v548
        %v1832 = vunpack.c.l.b16 %v549
        %v1833 = vunpack.c.h.b16 %v549
        %v1834 = vunpack.c.l.b16 %v550
        %v1835 = vunpack.c.h.b16 %v550
        %v1836 = vunpack.c.l.b16 %v551
        %v1837 = vunpack.c.h.b16 %v551
        %v1838 = vunpack.c.l.b16 %v552
        %v1839 = vunpack.c.h.b16 %v552
        %v1840 = vunpack.c.l.b16 %v553
        %v1841 = vunpack.c.h.b16 %v553
        %v1842 = vunpack.c.l.b16 %v554
        %v1843 = vunpack.c.h.b16 %v554
        %v1844 = vunpack.c.l.b16 %v555
        %v1845 = vunpack.c.h.b16 %v555
        %v1846 = vunpack.c.l.b16 %v556
        %v1847 = vunpack.c.h.b16 %v556
        %v1848 = vunpack.c.l.b16 %v557
        %v1849 = vunpack.c.h.b16 %v557
        %v1850 = vunpack.c.l.b16 %v558
        %v1851 = vunpack.c.h.b16 %v558
        %v1852 = vunpack.c.l.b16 %v559
        %v1853 = vunpack.c.h.b16 %v559
        %v1854 = vunpack.c.l.b16 %v560
        %v1855 = vunpack.c.h.b16 %v560
        %v1856 = vunpack.c.l.b16 %v561
        %v1857 = vunpack.c.h.b16 %v561
        %v1858 = vunpack.c.l.b16 %v562
        %v1859 = vunpack.c.h.b16 %v562
        %v1860 = vunpack.c.l.b16 %v563
        %v1861 = vunpack.c.h.b16 %v563
        %v1862 = vunpack.c.l.b16 %v564
        %v1863 = vunpack.c.h.b16 %v564
        %v1864 = vunpack.c.l.b16 %v565
        %v1865 = vunpack.c.h.b16 %v565
        %v1866 = vunpack.c.l.b16 %v566
        %v1867 = vunpack.c.h.b16 %v566
        %v1868 = vunpack.c.l.b16 %v567
        %v1869 = vunpack.c.h.b16 %v567
        %v1870 = vunpack.c.l.b16 %v568
        %v1871 = vunpack.c.h.b16 %v568
        %v1872 = vunpack.c.l.b16 %v569
        %v1873 = vunpack.c.h.b16 %v569
        %v1874 = vunpack.c.l.b16 %v570
        %v1875 = vunpack.c.h.b16 %v570
        %v1876 = vunpack.c.l.b16 %v571
        %v1877 = vunpack.c.h.b16 %v571
        %v1878 = vunpack.c.l.b16 %v572
        %v1879 = vunpack.c.h.b16 %v572
        %v1880 = vunpack.c.l.b16 %v573
        %v1881 = vunpack.c.h.b16 %v573
        %v1882 = vunpack.c.l.b16 %v574
        %v1883 = vunpack.c.h.b16 %v574
        %v1884 = vunpack.c.l.b16 %v575
        %v1885 = vunpack.c.h.b16 %v575
        %v1886 = vunpack.c.l.b16 %v576
        %v1887 = vunpack.c.h.b16 %v576
        %v1888 = vunpack.c.l.b16 %v577
        %v1889 = vunpack.c.h.b16 %v577
        %v1890 = vunpack.c.l.b16 %v578
        %v1891 = vunpack.c.h.b16 %v578
        %v1892 = vunpack.c.l.b16 %v579
        %v1893 = vunpack.c.h.b16 %v579
        %v1894 = vunpack.c.l.b16 %v580
        %v1895 = vunpack.c.h.b16 %v580
        %v1896 = vunpack.c.l.b16 %v581
        %v1897 = vunpack.c.h.b16 %v581
        %v1898 = vunpack.c.l.b16 %v582
        %v1899 = vunpack.c.h.b16 %v582
        %v1900 = vunpack.c.l.b16 %v583
        %v1901 = vunpack.c.h.b16 %v583
        %v1902 = vunpack.c.l.b16 %v584
        %v1903 = vunpack.c.h.b16 %v584
        %v1904 = vunpack.c.l.b16 %v585
        %v1905 = vunpack.c.h.b16 %v585
        %v1906 = vunpack.c.l.b16 %v586
        %v1907 = vunpack.c.h.b16 %v586
        %v1908 = vunpack.c.l.b16 %v587
        %v1909 = vunpack.c.h.b16 %v587
        %v1910 = vunpack.c.l.b16 %v588
        %v1911 = vunpack.c.h.b16 %v588
        %v1912 = vunpack.c.l.b16 %v589
        %v1913 = vunpack.c.h.b16 %v589
        %v1914 = vunpack.c.l.b16 %v590
        %v1915 = vunpack.c.h.b16 %v590
        %v1916 = vunpack.c.l.b16 %v591
        %v1917 = vunpack.c.h.b16 %v591
        %v1918 = vunpack.c.l.b16 %v592
        %v1919 = vunpack.c.h.b16 %v592
        %v1920 = vunpack.c.l.b16 %v593
        %v1921 = vunpack.c.h.b16 %v593
        %v1922 = vunpack.c.l.b16 %v594
        %v1923 = vunpack.c.h.b16 %v594
        %v1924 = vunpack.c.l.b16 %v595
        %v1925 = vunpack.c.h.b16 %v595
        %v1926 = vunpack.c.l.b16 %v596
        %v1927 = vunpack.c.h.b16 %v596
        %v1928 = vunpack.c.l.b16 %v597
        %v1929 = vunpack.c.h.b16 %v597
        %v1930 = vunpack.c.l.b16 %v598
        %v1931 = vunpack.c.h.b16 %v598
        %v1932 = vunpack.c.l.b16 %v599
        %v1933 = vunpack.c.h.b16 %v599
        %v1934 = vunpack.c.l.b16 %v600
        %v1935 = vunpack.c.h.b16 %v600
        %v1936 = vunpack.c.l.b16 %v601
        %v1937 = vunpack.c.h.b16 %v601
        %v1938 = vunpack.c.l.b16 %v602
        %v1939 = vunpack.c.h.b16 %v602
        %v1940 = vunpack.c.l.b16 %v603
        %v1941 = vunpack.c.h.b16 %v603
        %v1942 = vunpack.c.l.b16 %v604
        %v1943 = vunpack.c.h.b16 %v604
        %v1944 = vunpack.c.l.b16 %v605
        %v1945 = vunpack.c.h.b16 %v605
        %v1946 = vunpack.c.l.b16 %v606
        %v1947 = vunpack.c.h.b16 %v606
        %v1948 = vunpack.c.l.b16 %v607
        %v1949 = vunpack.c.h.b16 %v607
        %v1950 = vunpack.c.l.b16 %v608
        %v1951 = vunpack.c.h.b16 %v608
        %v1952 = vunpack.c.l.b16 %v609
        %v1953 = vunpack.c.h.b16 %v609
        %v1954 = vunpack.c.l.b16 %v610
        %v1955 = vunpack.c.h.b16 %v610
        %v1956 = vunpack.c.l.b16 %v611
        %v1957 = vunpack.c.h.b16 %v611
        %v1958 = vunpack.c.l.b16 %v612
        %v1959 = vunpack.c.h.b16 %v612
        %v1960 = vunpack.c.l.b16 %v613
        %v1961 = vunpack.c.h.b16 %v613
        %v1962 = vunpack.c.l.b16 %v614
        %v1963 = vunpack.c.h.b16 %v614
        %v1964 = vunpack.c.l.b16 %v615
        %v1965 = vunpack.c.h.b16 %v615
        %v1966 = vunpack.c.l.b16 %v616
        %v1967 = vunpack.c.h.b16 %v616
        %v1968 = vunpack.c.l.b16 %v617
        %v1969 = vunpack.c.h.b16 %v617
        %v1970 = vunpack.c.l.b16 %v618
        %v1971 = vunpack.c.h.b16 %v618
        %v1972 = vunpack.c.l.b16 %v619
        %v1973 = vunpack.c.h.b16 %v619
        %v1974 = vunpack.c.l.b16 %v620
        %v1975 = vunpack.c.h.b16 %v620
        %v1976 = vunpack.c.l.b16 %v621
        %v1977 = vunpack.c.h.b16 %v621
        %v1978 = vunpack.c.l.b16 %v622
        %v1979 = vunpack.c.h.b16 %v622
        %v1980 = vunpack.c.l.b16 %v623
        %v1981 = vunpack.c.h.b16 %v623
        %v1982 = vunpack.c.l.b16 %v624
        %v1983 = vunpack.c.h.b16 %v624
        %v1984 = vunpack.c.l.b16 %v625
        %v1985 = vunpack.c.h.b16 %v625
        %v1986 = vunpack.c.l.b16 %v626
        %v1987 = vunpack.c.h.b16 %v626
        %v1988 = vunpack.c.l.b16 %v627
        %v1989 = vunpack.c.h.b16 %v627
        %v1990 = vunpack.c.l.b16 %v628
        %v1991 = vunpack.c.h.b16 %v628
        %v1992 = vunpack.c.l.b16 %v629
        %v1993 = vunpack.c.h.b16 %v629
        %v1994 = vunpack.c.l.b16 %v630
        %v1995 = vunpack.c.h.b16 %v630
        %v1996 = vunpack.c.l.b16 %v631
        %v1997 = vunpack.c.h.b16 %v631
        %v1998 = vunpack.c.l.b16 %v632
        %v1999 = vunpack.c.h.b16 %v632
        %v2000 = vunpack.c.l.b16 %v633
        %v2001 = vunpack.c.h.b16 %v633
        %v2002 = vunpack.c.l.b16 %v634
        %v2003 = vunpack.c.h.b16 %v634
        %v2004 = vunpack.c.l.b16 %v635
        %v2005 = vunpack.c.h.b16 %v635
        %v2006 = vunpack.c.l.b16 %v636
        %v2007 = vunpack.c.h.b16 %v636
        %v2008 = vunpack.c.l.b16 %v637
        %v2009 = vunpack.c.h.b16 %v637
        %v2010 = vunpack.c.l.b16 %v638
        %v2011 = vunpack.c.h.b16 %v638
        %v2012 = vunpack.c.l.b16 %v639
        %v2013 = vunpack.c.h.b16 %v639
        %v2014 = vunpack.c.l.b16 %v640
        %v2015 = vunpack.c.h.b16 %v640
        %v2016 = vunpack.c.l.b16 %v641
        %v2017 = vunpack.c.h.b16 %v641
        %v2018 = vunpack.c.l.b16 %v642
        %v2019 = vunpack.c.h.b16 %v642
        %v2020 = vunpack.c.l.b16 %v643
        %v2021 = vunpack.c.h.b16 %v643
        %v2022 = vunpack.c.l.b16 %v644
        %v2023 = vunpack.c.h.b16 %v644
        %v2024 = vunpack.c.l.b16 %v645
        %v2025 = vunpack.c.h.b16 %v645
        %v2026 = vunpack.c.l.b16 %v646
        %v2027 = vunpack.c.h.b16 %v646
        %v2028 = vunpack.c.l.b16 %v647
        %v2029 = vunpack.c.h.b16 %v647
        %v2030 = vunpack.c.l.b16 %v648
        %v2031 = vunpack.c.h.b16 %v648
        %v2032 = vunpack.c.l.b16 %v649
        %v2033 = vunpack.c.h.b16 %v649
        %v2034 = vunpack.c.l.b16 %v650
        %v2035 = vunpack.c.h.b16 %v650
        %v2036 = vunpack.c.l.b16 %v651
        %v2037 = vunpack.c.h.b16 %v651
        %v2038 = vunpack.c.l.b16 %v652
        %v2039 = vunpack.c.h.b16 %v652
        %v2040 = vunpack.c.l.b16 %v653
        %v2041 = vunpack.c.h.b16 %v653
        %v2042 = vunpack.c.l.b16 %v654
        %v2043 = vunpack.c.h.b16 %v654
        %v2044 = vunpack.c.l.b16 %v655
        %v2045 = vunpack.c.h.b16 %v655
        %v2046 = vunpack.c.l.b16 %v656
        %v2047 = vunpack.c.h.b16 %v656
        %v2048 = vunpack.c.l.b16 %v657
        %v2049 = vunpack.c.h.b16 %v657
        %v2050 = vunpack.c.l.b16 %v658
        %v2051 = vunpack.c.h.b16 %v658
        %v2052 = vunpack.c.l.b16 %v659
        %v2053 = vunpack.c.h.b16 %v659
        %v2054 = vunpack.c.l.b16 %v660
        %v2055 = vunpack.c.h.b16 %v660
        %v2056 = vunpack.c.l.b16 %v661
        %v2057 = vunpack.c.h.b16 %v661
        %v2058 = vunpack.c.l.b16 %v662
        %v2059 = vunpack.c.h.b16 %v662
        %v2060 = vunpack.c.l.b16 %v663
        %v2061 = vunpack.c.h.b16 %v663
        %v2062 = vunpack.c.l.b16 %v664
        %v2063 = vunpack.c.h.b16 %v664
        %v2064 = vunpack.c.l.b16 %v665
        %v2065 = vunpack.c.h.b16 %v665
        %v2066 = vunpack.c.l.b16 %v666
        %v2067 = vunpack.c.h.b16 %v666
        %v2068 = vunpack.c.l.b16 %v667
        %v2069 = vunpack.c.h.b16 %v667
        %v2070 = vunpack.c.l.b16 %v668
        %v2071 = vunpack.c.h.b16 %v668
        %v2072 = vunpack.c.l.b16 %v669
        %v2073 = vunpack.c.h.b16 %v669
        %v2074 = vunpack.c.l.b16 %v670
        %v2075 = vunpack.c.h.b16 %v670
        %v2076 = vunpack.c.l.b16 %v671
        %v2077 = vunpack.c.h.b16 %v671
        %v2078 = vunpack.c.l.b16 %v672
        %v2079 = vunpack.c.h.b16 %v672
        %v2080 = vunpack.c.l.b16 %v673
        %v2081 = vunpack.c.h.b16 %v673
        %v2082 = vunpack.c.l.b16 %v674
        %v2083 = vunpack.c.h.b16 %v674
        %v2084 = vunpack.c.l.b16 %v675
        %v2085 = vunpack.c.h.b16 %v675
        %v2086 = vunpack.c.l.b16 %v676
        %v2087 = vunpack.c.h.b16 %v676
        %v2088 = vunpack.c.l.b16 %v677
        %v2089 = vunpack.c.h.b16 %v677
        %v2090 = vunpack.c.l.b16 %v678
        %v2091 = vunpack.c.h.b16 %v678
        %v2092 = vunpack.c.l.b16 %v679
        %v2093 = vunpack.c.h.b16 %v679
        %v2094 = vunpack.c.l.b16 %v680
        %v2095 = vunpack.c.h.b16 %v680
        %v2096 = vunpack.c.l.b16 %v681
        %v2097 = vunpack.c.h.b16 %v681
        %v2098 = vunpack.c.l.b16 %v682
        %v2099 = vunpack.c.h.b16 %v682
        %v2100 = vunpack.c.l.b16 %v683
        %v2101 = vunpack.c.h.b16 %v683
        %v2102 = vunpack.c.l.b16 %v684
        %v2103 = vunpack.c.h.b16 %v684
        %v2104 = vunpack.c.l.b16 %v685
        %v2105 = vunpack.c.h.b16 %v685
        %v2106 = vunpack.c.l.b16 %v686
        %v2107 = vunpack.c.h.b16 %v686
        %v2108 = vunpack.c.l.b16 %v687
        %v2109 = vunpack.c.h.b16 %v687
        %v2110 = vunpack.c.l.b16 %v688
        %v2111 = vunpack.c.h.b16 %v688
        %v2112 = vunpack.c.l.b16 %v689
        %v2113 = vunpack.c.h.b16 %v689
        %v2114 = vunpack.c.l.b16 %v690
        %v2115 = vunpack.c.h.b16 %v690
        %v2116 = vunpack.c.l.b16 %v691
        %v2117 = vunpack.c.h.b16 %v691
        %v2118 = vunpack.c.l.b16 %v692
        %v2119 = vunpack.c.h.b16 %v692
        %v2120 = vunpack.c.l.b16 %v693
        %v2121 = vunpack.c.h.b16 %v693
        %v2122 = vunpack.c.l.b16 %v694
        %v2123 = vunpack.c.h.b16 %v694
        %v2124 = vunpack.c.l.b16 %v695
        %v2125 = vunpack.c.h.b16 %v695
        %v2126 = vunpack.c.l.b16 %v696
        %v2127 = vunpack.c.h.b16 %v696
        %v2128 = vunpack.c.l.b16 %v697
        %v2129 = vunpack.c.h.b16 %v697
        %v2130 = vunpack.c.l.b16 %v698
        %v2131 = vunpack.c.h.b16 %v698
        %v2132 = vunpack.c.l.b16 %v699
        %v2133 = vunpack.c.h.b16 %v699
        %v2134 = vunpack.c.l.b16 %v700
        %v2135 = vunpack.c.h.b16 %v700
        %v2136 = vunpack.c.l.b16 %v701
        %v2137 = vunpack.c.h.b16 %v701
        %v2138 = vunpack.c.l.b16 %v702
        %v2139 = vunpack.c.h.b16 %v702
        %v2140 = vunpack.c.l.b16 %v703
        %v2141 = vunpack.c.h.b16 %v703
        %v2142 = vunpack.c.l.b16 %v704
        %v2143 = vunpack.c.h.b16 %v704
        %v2144 = vunpack.c.l.b16 %v705
        %v2145 = vunpack.c.h.b16 %v705
        %v2146 = vunpack.c.l.b16 %v706
        %v2147 = vunpack.c.h.b16 %v706
        %v2148 = vunpack.c.l.b16 %v707
        %v2149 = vunpack.c.h.b16 %v707
        %v2150 = vunpack.c.l.b16 %v708
        %v2151 = vunpack.c.h.b16 %v708
        %v2152 = vunpack.c.l.b16 %v709
        %v2153 = vunpack.c.h.b16 %v709
        %v2154 = vunpack.c.l.b16 %v710
        %v2155 = vunpack.c.h.b16 %v710
        %v2156 = vunpack.c.l.b16 %v711
        %v2157 = vunpack.c.h.b16 %v711
        %v2158 = vunpack.c.l.b16 %v712
        %v2159 = vunpack.c.h.b16 %v712
        %v2160 = vunpack.c.l.b16 %v713
        %v2161 = vunpack.c.h.b16 %v713
        %v2162 = vunpack.c.l.b16 %v714
        %v2163 = vunpack.c.h.b16 %v714
        %v2164 = vunpack.c.l.b16 %v715
        %v2165 = vunpack.c.h.b16 %v715
        %v2166 = vunpack.c.l.b16 %v716
        %v2167 = vunpack.c.h.b16 %v716
        %v2168 = vunpack.c.l.b16 %v717
        %v2169 = vunpack.c.h.b16 %v717
        %v2170 = vunpack.c.l.b16 %v718
        %v2171 = vunpack.c.h.b16 %v718
        %v2172 = vunpack.c.l.b16 %v719
        %v2173 = vunpack.c.h.b16 %v719
        %v2174 = vunpack.c.l.b16 %v720
        %v2175 = vunpack.c.h.b16 %v720
        %v2176 = vunpack.c.l.b16 %v721
        %v2177 = vunpack.c.h.b16 %v721
        %v2178 = vunpack.c.l.b16 %v722
        %v2179 = vunpack.c.h.b16 %v722
        %v2180 = vunpack.c.l.b16 %v723
        %v2181 = vunpack.c.h.b16 %v723
        %v2182 = vunpack.c.l.b16 %v724
        %v2183 = vunpack.c.h.b16 %v724
        %v2184 = vunpack.c.l.b16 %v725
        %v2185 = vunpack.c.h.b16 %v725
        %v2186 = vunpack.c.l.b16 %v726
        %v2187 = vunpack.c.h.b16 %v726
        %v2188 = vunpack.c.l.b16 %v727
        %v2189 = vunpack.c.h.b16 %v727
        %v2190 = vunpack.c.l.b16 %v728
        %v2191 = vunpack.c.h.b16 %v728
        %v2192 = vunpack.c.l.b16 %v729
        %v2193 = vunpack.c.h.b16 %v729
        %v2194 = vunpack.c.l.b16 %v730
        %v2195 = vunpack.c.h.b16 %v730
        %v2196 = vunpack.c.l.b16 %v731
        %v2197 = vunpack.c.h.b16 %v731
        %v2198 = vunpack.c.l.b16 %v732
        %v2199 = vunpack.c.h.b16 %v732
        %v2200 = vunpack.c.l.b16 %v733
        %v2201 = vunpack.c.h.b16 %v733
        %v2202 = vunpack.c.l.b16 %v734
        %v2203 = vunpack.c.h.b16 %v734
        %v2204 = vunpack.c.l.b16 %v735
        %v2205 = vunpack.c.h.b16 %v735
        %v2206 = vunpack.c.l.b16 %v736
        %v2207 = vunpack.c.h.b16 %v736
        %v2208 = vunpack.c.l.b16 %v737
        %v2209 = vunpack.c.h.b16 %v737
        %v2210 = vunpack.c.l.b16 %v738
        %v2211 = vunpack.c.h.b16 %v738
        %v2212 = vunpack.c.l.b16 %v739
        %v2213 = vunpack.c.h.b16 %v739
        %v2214 = vunpack.c.l.b16 %v740
        %v2215 = vunpack.c.h.b16 %v740
        %v2216 = vunpack.c.l.b16 %v741
        %v2217 = vunpack.c.h.b16 %v741
        %v2218 = vunpack.c.l.b16 %v742
        %v2219 = vunpack.c.h.b16 %v742
        %v2220 = vunpack.c.l.b16 %v743
        %v2221 = vunpack.c.h.b16 %v743
        %v2222 = vunpack.c.l.b16 %v744
        %v2223 = vunpack.c.h.b16 %v744
        %v2224 = vunpack.c.l.b16 %v745
        %v2225 = vunpack.c.h.b16 %v745
        %v2226 = vunpack.c.l.b16 %v746
        %v2227 = vunpack.c.h.b16 %v746
        %v2228 = vunpack.c.l.b16 %v747
        %v2229 = vunpack.c.h.b16 %v747
        %v2230 = vunpack.c.l.b16 %v748
        %v2231 = vunpack.c.h.b16 %v748
        %v2232 = vunpack.c.l.b16 %v749
        %v2233 = vunpack.c.h.b16 %v749
        %v2234 = vunpack.c.l.b16 %v750
        %v2235 = vunpack.c.h.b16 %v750
        %v2236 = vunpack.c.l.b16 %v751
        %v2237 = vunpack.c.h.b16 %v751
        %v2238 = vunpack.c.l.b16 %v752
        %v2239 = vunpack.c.h.b16 %v752
        %v2240 = vunpack.c.l.b16 %v753
        %v2241 = vunpack.c.h.b16 %v753
        %v2242 = vunpack.c.l.b16 %v754
        %v2243 = vunpack.c.h.b16 %v754
        %v2244 = vunpack.c.l.b16 %v755
        %v2245 = vunpack.c.h.b16 %v755
        %v2246 = vunpack.c.l.b16 %v756
        %v2247 = vunpack.c.h.b16 %v756
        %v2248 = vunpack.c.l.b16 %v757
        %v2249 = vunpack.c.h.b16 %v757
        %v2250 = vunpack.c.l.b16 %v758
        %v2251 = vunpack.c.h.b16 %v758
        %v2252 = vunpack.c.l.b16 %v759
        %v2253 = vunpack.c.h.b16 %v759
        %v2254 = vunpack.c.l.b16 %v760
        %v2255 = vunpack.c.h.b16 %v760
        %v2256 = vunpack.c.l.b16 %v761
        %v2257 = vunpack.c.h.b16 %v761
        %v2258 = vunpack.c.l.b16 %v762
        %v2259 = vunpack.c.h.b16 %v762
        %v2260 = vunpack.c.l.b16 %v763
        %v2261 = vunpack.c.h.b16 %v763
        %v2262 = vunpack.c.l.b16 %v764
        %v2263 = vunpack.c.h.b16 %v764
        %v2264 = vunpack.c.l.b16 %v765
        %v2265 = vunpack.c.h.b16 %v765
        %v2266 = vunpack.c.l.b16 %v766
        %v2267 = vunpack.c.h.b16 %v766
        %v2268 = vunpack.c.l.b16 %v767
        %v2269 = vunpack.c.h.b16 %v767
        %v2270 = vunpack.c.l.b16 %v768
        %v2271 = vunpack.c.h.b16 %v768
        %v2272 = vunpack.c.l.b16 %v769
        %v2273 = vunpack.c.h.b16 %v769
        %v2274 = vunpack.c.l.b16 %v770
        %v2275 = vunpack.c.h.b16 %v770
        %v2276 = vunpack.c.l.b16 %v771
        %v2277 = vunpack.c.h.b16 %v771
        %v2278 = vunpack.c.l.b16 %v772
        %v2279 = vunpack.c.h.b16 %v772
        %v2280 = vunpack.c.l.b16 %v773
        %v2281 = vunpack.c.h.b16 %v773
        %v2282 = vunpack.c.l.b16 %v774
        %v2283 = vunpack.c.h.b16 %v774
        %v2284 = vunpack.c.l.b16 %v775
        %v2285 = vunpack.c.h.b16 %v775
        %v2286 = vunpack.c.l.b16 %v776
        %v2287 = vunpack.c.h.b16 %v776
        %v2288 = vunpack.c.l.b16 %v777
        %v2289 = vunpack.c.h.b16 %v777
        %v2290 = vunpack.c.l.b16 %v778
        %v2291 = vunpack.c.h.b16 %v778
        %v2292 = vunpack.c.l.b16 %v779
        %v2293 = vunpack.c.h.b16 %v779
        %v2294 = vunpack.c.l.b16 %v780
        %v2295 = vunpack.c.h.b16 %v780
        %v2296 = vunpack.c.l.b16 %v781
        %v2297 = vunpack.c.h.b16 %v781
        %v2298 = vunpack.c.l.b16 %v782
        %v2299 = vunpack.c.h.b16 %v782
        %v2300 = vunpack.c.l.b16 %v783
        %v2301 = vunpack.c.h.b16 %v783
        %v2302 = vunpack.c.l.b16 %v784
        %v2303 = vunpack.c.h.b16 %v784
        %v2304 = vunpack.c.l.b16 %v785
        %v2305 = vunpack.c.h.b16 %v785
        %v2306 = vunpack.c.l.b16 %v786
        %v2307 = vunpack.c.h.b16 %v786
        %v2308 = vunpack.c.l.b16 %v787
        %v2309 = vunpack.c.h.b16 %v787
        %v2310 = vunpack.c.l.b16 %v788
        %v2311 = vunpack.c.h.b16 %v788
        %v2312 = vunpack.c.l.b16 %v789
        %v2313 = vunpack.c.h.b16 %v789
        %v2314 = vunpack.c.l.b16 %v790
        %v2315 = vunpack.c.h.b16 %v790
        %v2316 = vunpack.c.l.b16 %v791
        %v2317 = vunpack.c.h.b16 %v791
        %v2318 = vunpack.c.l.b16 %v792
        %v2319 = vunpack.c.h.b16 %v792
        %v2320 = vunpack.c.l.b16 %v793
        %v2321 = vunpack.c.h.b16 %v793
        %v2322 = vunpack.c.l.b16 %v794
        %v2323 = vunpack.c.h.b16 %v794
        %v2324 = vunpack.c.l.b16 %v795
        %v2325 = vunpack.c.h.b16 %v795
        %v2326 = vunpack.c.l.b16 %v796
        %v2327 = vunpack.c.h.b16 %v796
        %v2328 = vunpack.c.l.b16 %v797
        %v2329 = vunpack.c.h.b16 %v797
        %v2330 = vunpack.c.l.b16 %v798
        %v2331 = vunpack.c.h.b16 %v798
        %v2332 = vunpack.c.l.b16 %v799
        %v2333 = vunpack.c.h.b16 %v799
        %v2334 = vunpack.c.l.b16 %v800
        %v2335 = vunpack.c.h.b16 %v800
        %v2336 = vunpack.c.l.b16 %v801
        %v2337 = vunpack.c.h.b16 %v801
        %v2338 = vunpack.c.l.b16 %v802
        %v2339 = vunpack.c.h.b16 %v802
        %v2340 = vunpack.c.l.b16 %v803
        %v2341 = vunpack.c.h.b16 %v803
        %v2342 = vunpack.c.l.b16 %v804
        %v2343 = vunpack.c.h.b16 %v804
        %v2344 = vunpack.c.l.b16 %v805
        %v2345 = vunpack.c.h.b16 %v805
        %v2346 = vunpack.c.l.b16 %v806
        %v2347 = vunpack.c.h.b16 %v806
        %v2348 = vunpack.c.l.b16 %v807
        %v2349 = vunpack.c.h.b16 %v807
        %v2350 = vunpack.c.l.b16 %v808
        %v2351 = vunpack.c.h.b16 %v808
        %v2352 = vunpack.c.l.b16 %v809
        %v2353 = vunpack.c.h.b16 %v809
        %v2354 = vunpack.c.l.b16 %v810
        %v2355 = vunpack.c.h.b16 %v810
        %v2356 = vunpack.c.l.b16 %v811
        %v2357 = vunpack.c.h.b16 %v811
        %v2358 = vunpack.c.l.b16 %v812
        %v2359 = vunpack.c.h.b16 %v812
        %v2360 = vunpack.c.l.b16 %v813
        %v2361 = vunpack.c.h.b16 %v813
        %v2362 = vunpack.c.l.b16 %v814
        %v2363 = vunpack.c.h.b16 %v814
        %v2364 = vunpack.c.l.b16 %v815
        %v2365 = vunpack.c.h.b16 %v815
        %v2366 = vunpack.c.l.b16 %v816
        %v2367 = vunpack.c.h.b16 %v816
        %v2368 = vunpack.c.l.b16 %v817
        %v2369 = vunpack.c.h.b16 %v817
        %v2370 = vunpack.c.l.b16 %v818
        %v2371 = vunpack.c.h.b16 %v818
        %v2372 = vunpack.c.l.b16 %v819
        %v2373 = vunpack.c.h.b16 %v819
        %v2374 = vunpack.c.l.b16 %v820
        %v2375 = vunpack.c.h.b16 %v820
        %v2376 = vunpack.c.l.b16 %v821
        %v2377 = vunpack.c.h.b16 %v821
        %v2378 = vunpack.c.l.b16 %v822
        %v2379 = vunpack.c.h.b16 %v822
        %v2380 = vunpack.c.l.b16 %v823
        %v2381 = vunpack.c.h.b16 %v823
        %v2382 = vunpack.c.l.b16 %v824
        %v2383 = vunpack.c.h.b16 %v824
        %v2384 = vunpack.c.l.b16 %v825
        %v2385 = vunpack.c.h.b16 %v825
        %v2386 = vunpack.c.l.b16 %v826
        %v2387 = vunpack.c.h.b16 %v826
        %v2388 = vunpack.c.l.b16 %v827
        %v2389 = vunpack.c.h.b16 %v827
        %v2390 = vunpack.c.l.b16 %v828
        %v2391 = vunpack.c.h.b16 %v828
        %v2392 = vunpack.c.l.b16 %v829
        %v2393 = vunpack.c.h.b16 %v829
        %v2394 = vunpack.c.l.b16 %v830
        %v2395 = vunpack.c.h.b16 %v830
        %v2396 = vunpack.c.l.b16 %v831
        %v2397 = vunpack.c.h.b16 %v831
        %v2398 = vunpack.c.l.b16 %v832
        %v2399 = vunpack.c.h.b16 %v832
        %v2400 = vunpack.c.l.b16 %v833
        %v2401 = vunpack.c.h.b16 %v833
        %v2402 = vunpack.c.l.b16 %v834
        %v2403 = vunpack.c.h.b16 %v834
        %v2404 = vunpack.c.l.b16 %v835
        %v2405 = vunpack.c.h.b16 %v835
        %v2406 = vunpack.c.l.b16 %v836
        %v2407 = vunpack.c.h.b16 %v836
        %v2408 = vunpack.c.l.b16 %v837
        %v2409 = vunpack.c.h.b16 %v837
        %v2410 = vunpack.c.l.b16 %v838
        %v2411 = vunpack.c.h.b16 %v838
        %v2412 = vunpack.c.l.b16 %v839
        %v2413 = vunpack.c.h.b16 %v839
        %v2414 = vunpack.c.l.b16 %v840
        %v2415 = vunpack.c.h.b16 %v840
        %v2416 = vunpack.c.l.b16 %v841
        %v2417 = vunpack.c.h.b16 %v841
        %v2418 = vunpack.c.l.b16 %v842
        %v2419 = vunpack.c.h.b16 %v842
        %v2420 = vunpack.c.l.b16 %v843
        %v2421 = vunpack.c.h.b16 %v843
        %v2422 = vunpack.c.l.b16 %v844
        %v2423 = vunpack.c.h.b16 %v844
        %v2424 = vunpack.c.l.b16 %v845
        %v2425 = vunpack.c.h.b16 %v845
        %v2426 = vunpack.c.l.b16 %v846
        %v2427 = vunpack.c.h.b16 %v846
        %v2428 = vunpack.c.l.b16 %v847
        %v2429 = vunpack.c.h.b16 %v847
        %v2430 = vunpack.c.l.b16 %v848
        %v2431 = vunpack.c.h.b16 %v848
        %v2432 = vunpack.c.l.b16 %v849
        %v2433 = vunpack.c.h.b16 %v849
        %v2434 = vunpack.c.l.b16 %v850
        %v2435 = vunpack.c.h.b16 %v850
        %v2436 = vunpack.c.l.b16 %v851
        %v2437 = vunpack.c.h.b16 %v851
        %v2438 = vunpack.c.l.b16 %v852
        %v2439 = vunpack.c.h.b16 %v852
        %v2440 = vunpack.c.l.b16 %v853
        %v2441 = vunpack.c.h.b16 %v853
        %v2442 = vunpack.c.l.b16 %v854
        %v2443 = vunpack.c.h.b16 %v854
        %v2444 = vunpack.c.l.b16 %v855
        %v2445 = vunpack.c.h.b16 %v855
        %v2446 = vunpack.c.l.b16 %v856
        %v2447 = vunpack.c.h.b16 %v856
        %v2448 = vunpack.c.l.b16 %v857
        %v2449 = vunpack.c.h.b16 %v857
        %v2450 = vunpack.c.l.b16 %v858
        %v2451 = vunpack.c.h.b16 %v858
        %v2452 = vunpack.c.l.b16 %v859
        %v2453 = vunpack.c.h.b16 %v859
        %v2454 = vunpack.c.l.b16 %v860
        %v2455 = vunpack.c.h.b16 %v860
        %v2456 = vunpack.c.l.b16 %v861
        %v2457 = vunpack.c.h.b16 %v861
        %v2458 = vunpack.c.l.b16 %v862
        %v2459 = vunpack.c.h.b16 %v862
        %v2460 = vunpack.c.l.b16 %v863
        %v2461 = vunpack.c.h.b16 %v863
        %v2462 = vunpack.c.l.b16 %v864
        %v2463 = vunpack.c.h.b16 %v864
        %v2464 = vunpack.c.l.b16 %v865
        %v2465 = vunpack.c.h.b16 %v865
        %v2466 = vunpack.c.l.b16 %v866
        %v2467 = vunpack.c.h.b16 %v866
        %v2468 = vunpack.c.l.b16 %v867
        %v2469 = vunpack.c.h.b16 %v867
        %v2470 = vunpack.c.l.b16 %v868
        %v2471 = vunpack.c.h.b16 %v868
        %v2472 = vunpack.c.l.b16 %v869
        %v2473 = vunpack.c.h.b16 %v869
        %v2474 = vunpack.c.l.b16 %v870
        %v2475 = vunpack.c.h.b16 %v870
        %v2476 = vunpack.c.l.b16 %v871
        %v2477 = vunpack.c.h.b16 %v871
        %v2478 = vunpack.c.l.b16 %v872
        %v2479 = vunpack.c.h.b16 %v872
        %v2480 = vunpack.c.l.b16 %v873
        %v2481 = vunpack.c.h.b16 %v873
        %v2482 = vunpack.c.l.b16 %v874
        %v2483 = vunpack.c.h.b16 %v874
        %v2484 = vunpack.c.l.b16 %v875
        %v2485 = vunpack.c.h.b16 %v875
        %v2486 = vunpack.c.l.b16 %v876
        %v2487 = vunpack.c.h.b16 %v876
        %v2488 = vunpack.c.l.b16 %v877
        %v2489 = vunpack.c.h.b16 %v877
        %v2490 = vunpack.c.l.b16 %v878
        %v2491 = vunpack.c.h.b16 %v878
        %v2492 = vunpack.c.l.b16 %v879
        %v2493 = vunpack.c.h.b16 %v879
        %v2494 = vunpack.c.l.b16 %v880
        %v2495 = vunpack.c.h.b16 %v880
        %v2496 = vunpack.c.l.b16 %v881
        %v2497 = vunpack.c.h.b16 %v881
        %v2498 = vpack.c.b16 %v1478, %v1474
        %v2499 = vpack.c.b16 %v1479, %v1475
        %v2500 = vpack.c.b16 %v1480, %v1476
        %v2501 = vpack.c.b16 %v1481, %v1477
        %v2502 = vpack.c.b16 %v1486, %v1482
        %v2503 = vpack.c.b16 %v1487, %v1483
        %v2504 = vpack.c.b16 %v1488, %v1484
        %v2505 = vpack.c.b16 %v1489, %v1485
        %v2506 = vpack.c.b16 %v1494, %v1490
        %v2507 = vpack.c.b16 %v1495, %v1491
        %v2508 = vpack.c.b16 %v1496, %v1492
        %v2509 = vpack.c.b16 %v1497, %v1493
        %v2510 = vpack.c.b16 %v1502, %v1498
        %v2511 = vpack.c.b16 %v1503, %v1499
        %v2512 = vpack.c.b16 %v1504, %v1500
        %v2513 = vpack.c.b16 %v1505, %v1501
        %v2514 = vpack.c.b16 %v1510, %v1506
        %v2515 = vpack.c.b16 %v1511, %v1507
        %v2516 = vpack.c.b16 %v1512, %v1508
        %v2517 = vpack.c.b16 %v1513, %v1509
        %v2518 = vpack.c.b16 %v1518, %v1514
        %v2519 = vpack.c.b16 %v1519, %v1515
        %v2520 = vpack.c.b16 %v1520, %v1516
        %v2521 = vpack.c.b16 %v1521, %v1517
        %v2522 = vpack.c.b16 %v1526, %v1522
        %v2523 = vpack.c.b16 %v1527, %v1523
        %v2524 = vpack.c.b16 %v1528, %v1524
        %v2525 = vpack.c.b16 %v1529, %v1525
        %v2526 = vpack.c.b16 %v1534, %v1530
        %v2527 = vpack.c.b16 %v1535, %v1531
        %v2528 = vpack.c.b16 %v1536, %v1532
        %v2529 = vpack.c.b16 %v1537, %v1533
        %v2530 = vpack.c.b16 %v1542, %v1538
        %v2531 = vpack.c.b16 %v1543, %v1539
        %v2532 = vpack.c.b16 %v1544, %v1540
        %v2533 = vpack.c.b16 %v1545, %v1541
        %v2534 = vpack.c.b16 %v1550, %v1546
        %v2535 = vpack.c.b16 %v1551, %v1547
        %v2536 = vpack.c.b16 %v1552, %v1548
        %v2537 = vpack.c.b16 %v1553, %v1549
        %v2538 = vpack.c.b16 %v1558, %v1554
        %v2539 = vpack.c.b16 %v1559, %v1555
        %v2540 = vpack.c.b16 %v1560, %v1556
        %v2541 = vpack.c.b16 %v1561, %v1557
        %v2542 = vpack.c.b16 %v1566, %v1562
        %v2543 = vpack.c.b16 %v1567, %v1563
        %v2544 = vpack.c.b16 %v1568, %v1564
        %v2545 = vpack.c.b16 %v1569, %v1565
        %v2546 = vpack.c.b16 %v1574, %v1570
        %v2547 = vpack.c.b16 %v1575, %v1571
        %v2548 = vpack.c.b16 %v1576, %v1572
        %v2549 = vpack.c.b16 %v1577, %v1573
        %v2550 = vpack.c.b16 %v1582, %v1578
        %v2551 = vpack.c.b16 %v1583, %v1579
        %v2552 = vpack.c.b16 %v1584, %v1580
        %v2553 = vpack.c.b16 %v1585, %v1581
        %v2554 = vpack.c.b16 %v1590, %v1586
        %v2555 = vpack.c.b16 %v1591, %v1587
        %v2556 = vpack.c.b16 %v1592, %v1588
        %v2557 = vpack.c.b16 %v1593, %v1589
        %v2558 = vpack.c.b16 %v1598, %v1594
        %v2559 = vpack.c.b16 %v1599, %v1595
        %v2560 = vpack.c.b16 %v1600, %v1596
        %v2561 = vpack.c.b16 %v1601, %v1597
        %v2562 = vpack.c.b16 %v1606, %v1602
        %v2563 = vpack.c.b16 %v1607, %v1603
        %v2564 = vpack.c.b16 %v1608, %v1604
        %v2565 = vpack.c.b16 %v1609, %v1605
        %v2566 = vpack.c.b16 %v1614, %v1610
        %v2567 = vpack.c.b16 %v1615, %v1611
        %v2568 = vpack.c.b16 %v1616, %v1612
        %v2569 = vpack.c.b16 %v1617, %v1613
        %v2570 = vpack.c.b16 %v1622, %v1618
        %v2571 = vpack.c.b16 %v1623, %v1619
        %v2572 = vpack.c.b16 %v1624, %v1620
        %v2573 = vpack.c.b16 %v1625, %v1621
        %v2574 = vpack.c.b16 %v1630, %v1626
        %v2575 = vpack.c.b16 %v1631, %v1627
        %v2576 = vpack.c.b16 %v1632, %v1628
        %v2577 = vpack.c.b16 %v1633, %v1629
        %v2578 = vpack.c.b16 %v1638, %v1634
        %v2579 = vpack.c.b16 %v1639, %v1635
        %v2580 = vpack.c.b16 %v1640, %v1636
        %v2581 = vpack.c.b16 %v1641, %v1637
        %v2582 = vpack.c.b16 %v1646, %v1642
        %v2583 = vpack.c.b16 %v1647, %v1643
        %v2584 = vpack.c.b16 %v1648, %v1644
        %v2585 = vpack.c.b16 %v1649, %v1645
        %v2586 = vpack.c.b16 %v1654, %v1650
        %v2587 = vpack.c.b16 %v1655, %v1651
        %v2588 = vpack.c.b16 %v1656, %v1652
        %v2589 = vpack.c.b16 %v1657, %v1653
        %v2590 = vpack.c.b16 %v1662, %v1658
        %v2591 = vpack.c.b16 %v1663, %v1659
        %v2592 = vpack.c.b16 %v1664, %v1660
        %v2593 = vpack.c.b16 %v1665, %v1661
        %v2594 = vpack.c.b16 %v1670, %v1666
        %v2595 = vpack.c.b16 %v1671, %v1667
        %v2596 = vpack.c.b16 %v1672, %v1668
        %v2597 = vpack.c.b16 %v1673, %v1669
        %v2598 = vpack.c.b16 %v1678, %v1674
        %v2599 = vpack.c.b16 %v1679, %v1675
        %v2600 = vpack.c.b16 %v1680, %v1676
        %v2601 = vpack.c.b16 %v1681, %v1677
        %v2602 = vpack.c.b16 %v1686, %v1682
        %v2603 = vpack.c.b16 %v1687, %v1683
        %v2604 = vpack.c.b16 %v1688, %v1684
        %v2605 = vpack.c.b16 %v1689, %v1685
        %v2606 = vpack.c.b16 %v1694, %v1690
        %v2607 = vpack.c.b16 %v1695, %v1691
        %v2608 = vpack.c.b16 %v1696, %v1692
        %v2609 = vpack.c.b16 %v1697, %v1693
        %v2610 = vpack.c.b16 %v1702, %v1698
        %v2611 = vpack.c.b16 %v1703, %v1699
        %v2612 = vpack.c.b16 %v1704, %v1700
        %v2613 = vpack.c.b16 %v1705, %v1701
        %v2614 = vpack.c.b16 %v1710, %v1706
        %v2615 = vpack.c.b16 %v1711, %v1707
        %v2616 = vpack.c.b16 %v1712, %v1708
        %v2617 = vpack.c.b16 %v1713, %v1709
        %v2618 = vpack.c.b16 %v1718, %v1714
        %v2619 = vpack.c.b16 %v1719, %v1715
        %v2620 = vpack.c.b16 %v1720, %v1716
        %v2621 = vpack.c.b16 %v1721, %v1717
        %v2622 = vpack.c.b16 %v1726, %v1722
        %v2623 = vpack.c.b16 %v1727, %v1723
        %v2624 = vpack.c.b16 %v1728, %v1724
        %v2625 = vpack.c.b16 %v1729, %v1725
        %v2626 = vpack.c.b16 %v1734, %v1730
        %v2627 = vpack.c.b16 %v1735, %v1731
        %v2628 = vpack.c.b16 %v1736, %v1732
        %v2629 = vpack.c.b16 %v1737, %v1733
        %v2630 = vpack.c.b16 %v1742, %v1738
        %v2631 = vpack.c.b16 %v1743, %v1739
        %v2632 = vpack.c.b16 %v1744, %v1740
        %v2633 = vpack.c.b16 %v1745, %v1741
        %v2634 = vpack.c.b16 %v1750, %v1746
        %v2635 = vpack.c.b16 %v1751, %v1747
        %v2636 = vpack.c.b16 %v1752, %v1748
        %v2637 = vpack.c.b16 %v1753, %v1749
        %v2638 = vpack.c.b16 %v1758, %v1754
        %v2639 = vpack.c.b16 %v1759, %v1755
        %v2640 = vpack.c.b16 %v1760, %v1756
        %v2641 = vpack.c.b16 %v1761, %v1757
        %v2642 = vpack.c.b16 %v1766, %v1762
        %v2643 = vpack.c.b16 %v1767, %v1763
        %v2644 = vpack.c.b16 %v1768, %v1764
        %v2645 = vpack.c.b16 %v1769, %v1765
        %v2646 = vpack.c.b16 %v1774, %v1770
        %v2647 = vpack.c.b16 %v1775, %v1771
        %v2648 = vpack.c.b16 %v1776, %v1772
        %v2649 = vpack.c.b16 %v1777, %v1773
        %v2650 = vpack.c.b16 %v1782, %v1778
        %v2651 = vpack.c.b16 %v1783, %v1779
        %v2652 = vpack.c.b16 %v1784, %v1780
        %v2653 = vpack.c.b16 %v1785, %v1781
        %v2654 = vpack.c.b16 %v1790, %v1786
        %v2655 = vpack.c.b16 %v1791, %v1787
        %v2656 = vpack.c.b16 %v1792, %v1788
        %v2657 = vpack.c.b16 %v1793, %v1789
        %v2658 = vpack.c.b16 %v1798, %v1794
        %v2659 = vpack.c.b16 %v1799, %v1795
        %v2660 = vpack.c.b16 %v1800, %v1796
        %v2661 = vpack.c.b16 %v1801, %v1797
        %v2662 = vpack.c.b16 %v1806, %v1802
        %v2663 = vpack.c.b16 %v1807, %v1803
        %v2664 = vpack.c.b16 %v1808, %v1804
        %v2665 = vpack.c.b16 %v1809, %v1805
        %v2666 = vpack.c.b16 %v1814, %v1810
        %v2667 = vpack.c.b16 %v1815, %v1811
        %v2668 = vpack.c.b16 %v1816, %v1812
        %v2669 = vpack.c.b16 %v1817, %v1813
        %v2670 = vpack.c.b16 %v1822, %v1818
        %v2671 = vpack.c.b16 %v1823, %v1819
        %v2672 = vpack.c.b16 %v1824, %v1820
        %v2673 = vpack.c.b16 %v1825, %v1821
        %v2674 = vpack.c.b16 %v1830, %v1826
        %v2675 = vpack.c.b16 %v1831, %v1827
        %v2676 = vpack.c.b16 %v1832, %v1828
        %v2677 = vpack.c.b16 %v1833, %v1829
        %v2678 = vpack.c.b16 %v1838, %v1834
        %v2679 = vpack.c.b16 %v1839, %v1835
        %v2680 = vpack.c.b16 %v1840, %v1836
        %v2681 = vpack.c.b16 %v1841, %v1837
        %v2682 = vpack.c.b16 %v1846, %v1842
        %v2683 = vpack.c.b16 %v1847, %v1843
        %v2684 = vpack.c.b16 %v1848, %v1844
        %v2685 = vpack.c.b16 %v1849, %v1845
        %v2686 = vpack.c.b16 %v1854, %v1850
        %v2687 = vpack.c.b16 %v1855, %v1851
        %v2688 = vpack.c.b16 %v1856, %v1852
        %v2689 = vpack.c.b16 %v1857, %v1853
        %v2690 = vpack.c.b16 %v1862, %v1858
        %v2691 = vpack.c.b16 %v1863, %v1859
        %v2692 = vpack.c.b16 %v1864, %v1860
        %v2693 = vpack.c.b16 %v1865, %v1861
        %v2694 = vpack.c.b16 %v1870, %v1866
        %v2695 = vpack.c.b16 %v1871, %v1867
        %v2696 = vpack.c.b16 %v1872, %v1868
        %v2697 = vpack.c.b16 %v1873, %v1869
        %v2698 = vpack.c.b16 %v1878, %v1874
        %v2699 = vpack.c.b16 %v1879, %v1875
        %v2700 = vpack.c.b16 %v1880, %v1876
        %v2701 = vpack.c.b16 %v1881, %v1877
        %v2702 = vpack.c.b16 %v1886, %v1882
        %v2703 = vpack.c.b16 %v1887, %v1883
        %v2704 = vpack.c.b16 %v1888, %v1884
        %v2705 = vpack.c.b16 %v1889, %v1885
        %v2706 = vpack.c.b16 %v1894, %v1890
        %v2707 = vpack.c.b16 %v1895, %v1891
        %v2708 = vpack.c.b16 %v1896, %v1892
        %v2709 = vpack.c.b16 %v1897, %v1893
        %v2710 = vpack.c.b16 %v1902, %v1898
        %v2711 = vpack.c.b16 %v1903, %v1899
        %v2712 = vpack.c.b16 %v1904, %v1900
        %v2713 = vpack.c.b16 %v1905, %v1901
        %v2714 = vpack.c.b16 %v1910, %v1906
        %v2715 = vpack.c.b16 %v1911, %v1907
        %v2716 = vpack.c.b16 %v1912, %v1908
        %v2717 = vpack.c.b16 %v1913, %v1909
        %v2718 = vpack.c.b16 %v1918, %v1914
        %v2719 = vpack.c.b16 %v1919, %v1915
        %v2720 = vpack.c.b16 %v1920, %v1916
        %v2721 = vpack.c.b16 %v1921, %v1917
        %v2722 = vpack.c.b16 %v1926, %v1922
        %v2723 = vpack.c.b16 %v1927, %v1923
        %v2724 = vpack.c.b16 %v1928, %v1924
        %v2725 = vpack.c.b16 %v1929, %v1925
        %v2726 = vpack.c.b16 %v1934, %v1930
        %v2727 = vpack.c.b16 %v1935, %v1931
        %v2728 = vpack.c.b16 %v1936, %v1932
        %v2729 = vpack.c.b16 %v1937, %v1933
        %v2730 = vpack.c.b16 %v1942, %v1938
        %v2731 = vpack.c.b16 %v1943, %v1939
        %v2732 = vpack.c.b16 %v1944, %v1940
        %v2733 = vpack.c.b16 %v1945, %v1941
        %v2734 = vpack.c.b16 %v1950, %v1946
        %v2735 = vpack.c.b16 %v1951, %v1947
        %v2736 = vpack.c.b16 %v1952, %v1948
        %v2737 = vpack.c.b16 %v1953, %v1949
        %v2738 = vpack.c.b16 %v1958, %v1954
        %v2739 = vpack.c.b16 %v1959, %v1955
        %v2740 = vpack.c.b16 %v1960, %v1956
        %v2741 = vpack.c.b16 %v1961, %v1957
        %v2742 = vpack.c.b16 %v1966, %v1962
        %v2743 = vpack.c.b16 %v1967, %v1963
        %v2744 = vpack.c.b16 %v1968, %v1964
        %v2745 = vpack.c.b16 %v1969, %v1965
        %v2746 = vpack.c.b16 %v1974, %v1970
        %v2747 = vpack.c.b16 %v1975, %v1971
        %v2748 = vpack.c.b16 %v1976, %v1972
        %v2749 = vpack.c.b16 %v1977, %v1973
        %v2750 = vpack.c.b16 %v1982, %v1978
        %v2751 = vpack.c.b16 %v1983, %v1979
        %v2752 = vpack.c.b16 %v1984, %v1980
        %v2753 = vpack.c.b16 %v1985, %v1981
        %v2754 = vpack.c.b16 %v1990, %v1986
        %v2755 = vpack.c.b16 %v1991, %v1987
        %v2756 = vpack.c.b16 %v1992, %v1988
        %v2757 = vpack.c.b16 %v1993, %v1989
        %v2758 = vpack.c.b16 %v1998, %v1994
        %v2759 = vpack.c.b16 %v1999, %v1995
        %v2760 = vpack.c.b16 %v2000, %v1996
        %v2761 = vpack.c.b16 %v2001, %v1997
        %v2762 = vpack.c.b16 %v2006, %v2002
        %v2763 = vpack.c.b16 %v2007, %v2003
        %v2764 = vpack.c.b16 %v2008, %v2004
        %v2765 = vpack.c.b16 %v2009, %v2005
        %v2766 = vpack.c.b16 %v2014, %v2010
        %v2767 = vpack.c.b16 %v2015, %v2011
        %v2768 = vpack.c.b16 %v2016, %v2012
        %v2769 = vpack.c.b16 %v2017, %v2013
        %v2770 = vpack.c.b16 %v2022, %v2018
        %v2771 = vpack.c.b16 %v2023, %v2019
        %v2772 = vpack.c.b16 %v2024, %v2020
        %v2773 = vpack.c.b16 %v2025, %v2021
        %v2774 = vpack.c.b16 %v2030, %v2026
        %v2775 = vpack.c.b16 %v2031, %v2027
        %v2776 = vpack.c.b16 %v2032, %v2028
        %v2777 = vpack.c.b16 %v2033, %v2029
        %v2778 = vpack.c.b16 %v2038, %v2034
        %v2779 = vpack.c.b16 %v2039, %v2035
        %v2780 = vpack.c.b16 %v2040, %v2036
        %v2781 = vpack.c.b16 %v2041, %v2037
        %v2782 = vpack.c.b16 %v2046, %v2042
        %v2783 = vpack.c.b16 %v2047, %v2043
        %v2784 = vpack.c.b16 %v2048, %v2044
        %v2785 = vpack.c.b16 %v2049, %v2045
        %v2786 = vpack.c.b16 %v2054, %v2050
        %v2787 = vpack.c.b16 %v2055, %v2051
        %v2788 = vpack.c.b16 %v2056, %v2052
        %v2789 = vpack.c.b16 %v2057, %v2053
        %v2790 = vpack.c.b16 %v2062, %v2058
        %v2791 = vpack.c.b16 %v2063, %v2059
        %v2792 = vpack.c.b16 %v2064, %v2060
        %v2793 = vpack.c.b16 %v2065, %v2061
        %v2794 = vpack.c.b16 %v2070, %v2066
        %v2795 = vpack.c.b16 %v2071, %v2067
        %v2796 = vpack.c.b16 %v2072, %v2068
        %v2797 = vpack.c.b16 %v2073, %v2069
        %v2798 = vpack.c.b16 %v2078, %v2074
        %v2799 = vpack.c.b16 %v2079, %v2075
        %v2800 = vpack.c.b16 %v2080, %v2076
        %v2801 = vpack.c.b16 %v2081, %v2077
        %v2802 = vpack.c.b16 %v2086, %v2082
        %v2803 = vpack.c.b16 %v2087, %v2083
        %v2804 = vpack.c.b16 %v2088, %v2084
        %v2805 = vpack.c.b16 %v2089, %v2085
        %v2806 = vpack.c.b16 %v2094, %v2090
        %v2807 = vpack.c.b16 %v2095, %v2091
        %v2808 = vpack.c.b16 %v2096, %v2092
        %v2809 = vpack.c.b16 %v2097, %v2093
        %v2810 = vpack.c.b16 %v2102, %v2098
        %v2811 = vpack.c.b16 %v2103, %v2099
        %v2812 = vpack.c.b16 %v2104, %v2100
        %v2813 = vpack.c.b16 %v2105, %v2101
        %v2814 = vpack.c.b16 %v2110, %v2106
        %v2815 = vpack.c.b16 %v2111, %v2107
        %v2816 = vpack.c.b16 %v2112, %v2108
        %v2817 = vpack.c.b16 %v2113, %v2109
        %v2818 = vpack.c.b16 %v2118, %v2114
        %v2819 = vpack.c.b16 %v2119, %v2115
        %v2820 = vpack.c.b16 %v2120, %v2116
        %v2821 = vpack.c.b16 %v2121, %v2117
        %v2822 = vpack.c.b16 %v2126, %v2122
        %v2823 = vpack.c.b16 %v2127, %v2123
        %v2824 = vpack.c.b16 %v2128, %v2124
        %v2825 = vpack.c.b16 %v2129, %v2125
        %v2826 = vpack.c.b16 %v2134, %v2130
        %v2827 = vpack.c.b16 %v2135, %v2131
        %v2828 = vpack.c.b16 %v2136, %v2132
        %v2829 = vpack.c.b16 %v2137, %v2133
        %v2830 = vpack.c.b16 %v2142, %v2138
        %v2831 = vpack.c.b16 %v2143, %v2139
        %v2832 = vpack.c.b16 %v2144, %v2140
        %v2833 = vpack.c.b16 %v2145, %v2141
        %v2834 = vpack.c.b16 %v2150, %v2146
        %v2835 = vpack.c.b16 %v2151, %v2147
        %v2836 = vpack.c.b16 %v2152, %v2148
        %v2837 = vpack.c.b16 %v2153, %v2149
        %v2838 = vpack.c.b16 %v2158, %v2154
        %v2839 = vpack.c.b16 %v2159, %v2155
        %v2840 = vpack.c.b16 %v2160, %v2156
        %v2841 = vpack.c.b16 %v2161, %v2157
        %v2842 = vpack.c.b16 %v2166, %v2162
        %v2843 = vpack.c.b16 %v2167, %v2163
        %v2844 = vpack.c.b16 %v2168, %v2164
        %v2845 = vpack.c.b16 %v2169, %v2165
        %v2846 = vpack.c.b16 %v2174, %v2170
        %v2847 = vpack.c.b16 %v2175, %v2171
        %v2848 = vpack.c.b16 %v2176, %v2172
        %v2849 = vpack.c.b16 %v2177, %v2173
        %v2850 = vpack.c.b16 %v2182, %v2178
        %v2851 = vpack.c.b16 %v2183, %v2179
        %v2852 = vpack.c.b16 %v2184, %v2180
        %v2853 = vpack.c.b16 %v2185, %v2181
        %v2854 = vpack.c.b16 %v2190, %v2186
        %v2855 = vpack.c.b16 %v2191, %v2187
        %v2856 = vpack.c.b16 %v2192, %v2188
        %v2857 = vpack.c.b16 %v2193, %v2189
        %v2858 = vpack.c.b16 %v2198, %v2194
        %v2859 = vpack.c.b16 %v2199, %v2195
        %v2860 = vpack.c.b16 %v2200, %v2196
        %v2861 = vpack.c.b16 %v2201, %v2197
        %v2862 = vpack.c.b16 %v2206, %v2202
        %v2863 = vpack.c.b16 %v2207, %v2203
        %v2864 = vpack.c.b16 %v2208, %v2204
        %v2865 = vpack.c.b16 %v2209, %v2205
        %v2866 = vpack.c.b16 %v2214, %v2210
        %v2867 = vpack.c.b16 %v2215, %v2211
        %v2868 = vpack.c.b16 %v2216, %v2212
        %v2869 = vpack.c.b16 %v2217, %v2213
        %v2870 = vpack.c.b16 %v2222, %v2218
        %v2871 = vpack.c.b16 %v2223, %v2219
        %v2872 = vpack.c.b16 %v2224, %v2220
        %v2873 = vpack.c.b16 %v2225, %v2221
        %v2874 = vpack.c.b16 %v2230, %v2226
        %v2875 = vpack.c.b16 %v2231, %v2227
        %v2876 = vpack.c.b16 %v2232, %v2228
        %v2877 = vpack.c.b16 %v2233, %v2229
        %v2878 = vpack.c.b16 %v2238, %v2234
        %v2879 = vpack.c.b16 %v2239, %v2235
        %v2880 = vpack.c.b16 %v2240, %v2236
        %v2881 = vpack.c.b16 %v2241, %v2237
        %v2882 = vpack.c.b16 %v2246, %v2242
        %v2883 = vpack.c.b16 %v2247, %v2243
        %v2884 = vpack.c.b16 %v2248, %v2244
        %v2885 = vpack.c.b16 %v2249, %v2245
        %v2886 = vpack.c.b16 %v2254, %v2250
        %v2887 = vpack.c.b16 %v2255, %v2251
        %v2888 = vpack.c.b16 %v2256, %v2252
        %v2889 = vpack.c.b16 %v2257, %v2253
        %v2890 = vpack.c.b16 %v2262, %v2258
        %v2891 = vpack.c.b16 %v2263, %v2259
        %v2892 = vpack.c.b16 %v2264, %v2260
        %v2893 = vpack.c.b16 %v2265, %v2261
        %v2894 = vpack.c.b16 %v2270, %v2266
        %v2895 = vpack.c.b16 %v2271, %v2267
        %v2896 = vpack.c.b16 %v2272, %v2268
        %v2897 = vpack.c.b16 %v2273, %v2269
        %v2898 = vpack.c.b16 %v2278, %v2274
        %v2899 = vpack.c.b16 %v2279, %v2275
        %v2900 = vpack.c.b16 %v2280, %v2276
        %v2901 = vpack.c.b16 %v2281, %v2277
        %v2902 = vpack.c.b16 %v2286, %v2282
        %v2903 = vpack.c.b16 %v2287, %v2283
        %v2904 = vpack.c.b16 %v2288, %v2284
        %v2905 = vpack.c.b16 %v2289, %v2285
        %v2906 = vpack.c.b16 %v2294, %v2290
        %v2907 = vpack.c.b16 %v2295, %v2291
        %v2908 = vpack.c.b16 %v2296, %v2292
        %v2909 = vpack.c.b16 %v2297, %v2293
        %v2910 = vpack.c.b16 %v2302, %v2298
        %v2911 = vpack.c.b16 %v2303, %v2299
        %v2912 = vpack.c.b16 %v2304, %v2300
        %v2913 = vpack.c.b16 %v2305, %v2301
        %v2914 = vpack.c.b16 %v2310, %v2306
        %v2915 = vpack.c.b16 %v2311, %v2307
        %v2916 = vpack.c.b16 %v2312, %v2308
        %v2917 = vpack.c.b16 %v2313, %v2309
        %v2918 = vpack.c.b16 %v2318, %v2314
        %v2919 = vpack.c.b16 %v2319, %v2315
        %v2920 = vpack.c.b16 %v2320, %v2316
        %v2921 = vpack.c.b16 %v2321, %v2317
        %v2922 = vpack.c.b16 %v2326, %v2322
        %v2923 = vpack.c.b16 %v2327, %v2323
        %v2924 = vpack.c.b16 %v2328, %v2324
        %v2925 = vpack.c.b16 %v2329, %v2325
        %v2926 = vpack.c.b16 %v2334, %v2330
        %v2927 = vpack.c.b16 %v2335, %v2331
        %v2928 = vpack.c.b16 %v2336, %v2332
        %v2929 = vpack.c.b16 %v2337, %v2333
        %v2930 = vpack.c.b16 %v2342, %v2338
        %v2931 = vpack.c.b16 %v2343, %v2339
        %v2932 = vpack.c.b16 %v2344, %v2340
        %v2933 = vpack.c.b16 %v2345, %v2341
        %v2934 = vpack.c.b16 %v2350, %v2346
        %v2935 = vpack.c.b16 %v2351, %v2347
        %v2936 = vpack.c.b16 %v2352, %v2348
        %v2937 = vpack.c.b16 %v2353, %v2349
        %v2938 = vpack.c.b16 %v2358, %v2354
        %v2939 = vpack.c.b16 %v2359, %v2355
        %v2940 = vpack.c.b16 %v2360, %v2356
        %v2941 = vpack.c.b16 %v2361, %v2357
        %v2942 = vpack.c.b16 %v2366, %v2362
        %v2943 = vpack.c.b16 %v2367, %v2363
        %v2944 = vpack.c.b16 %v2368, %v2364
        %v2945 = vpack.c.b16 %v2369, %v2365
        %v2946 = vpack.c.b16 %v2374, %v2370
        %v2947 = vpack.c.b16 %v2375, %v2371
        %v2948 = vpack.c.b16 %v2376, %v2372
        %v2949 = vpack.c.b16 %v2377, %v2373
        %v2950 = vpack.c.b16 %v2382, %v2378
        %v2951 = vpack.c.b16 %v2383, %v2379
        %v2952 = vpack.c.b16 %v2384, %v2380
        %v2953 = vpack.c.b16 %v2385, %v2381
        %v2954 = vpack.c.b16 %v2390, %v2386
        %v2955 = vpack.c.b16 %v2391, %v2387
        %v2956 = vpack.c.b16 %v2392, %v2388
        %v2957 = vpack.c.b16 %v2393, %v2389
        %v2958 = vpack.c.b16 %v2398, %v2394
        %v2959 = vpack.c.b16 %v2399, %v2395
        %v2960 = vpack.c.b16 %v2400, %v2396
        %v2961 = vpack.c.b16 %v2401, %v2397
        %v2962 = vpack.c.b16 %v2406, %v2402
        %v2963 = vpack.c.b16 %v2407, %v2403
        %v2964 = vpack.c.b16 %v2408, %v2404
        %v2965 = vpack.c.b16 %v2409, %v2405
        %v2966 = vpack.c.b16 %v2414, %v2410
        %v2967 = vpack.c.b16 %v2415, %v2411
        %v2968 = vpack.c.b16 %v2416, %v2412
        %v2969 = vpack.c.b16 %v2417, %v2413
        %v2970 = vpack.c.b16 %v2422, %v2418
        %v2971 = vpack.c.b16 %v2423, %v2419
        %v2972 = vpack.c.b16 %v2424, %v2420
        %v2973 = vpack.c.b16 %v2425, %v2421
        %v2974 = vpack.c.b16 %v2430, %v2426
        %v2975 = vpack.c.b16 %v2431, %v2427
        %v2976 = vpack.c.b16 %v2432, %v2428
        %v2977 = vpack.c.b16 %v2433, %v2429
        %v2978 = vpack.c.b16 %v2438, %v2434
        %v2979 = vpack.c.b16 %v2439, %v2435
        %v2980 = vpack.c.b16 %v2440, %v2436
        %v2981 = vpack.c.b16 %v2441, %v2437
        %v2982 = vpack.c.b16 %v2446, %v2442
        %v2983 = vpack.c.b16 %v2447, %v2443
        %v2984 = vpack.c.b16 %v2448, %v2444
        %v2985 = vpack.c.b16 %v2449, %v2445
        %v2986 = vpack.c.b16 %v2454, %v2450
        %v2987 = vpack.c.b16 %v2455, %v2451
        %v2988 = vpack.c.b16 %v2456, %v2452
        %v2989 = vpack.c.b16 %v2457, %v2453
        %v2990 = vpack.c.b16 %v2462, %v2458
        %v2991 = vpack.c.b16 %v2463, %v2459
        %v2992 = vpack.c.b16 %v2464, %v2460
        %v2993 = vpack.c.b16 %v2465, %v2461
        %v2994 = vpack.c.b16 %v2470, %v2466
        %v2995 = vpack.c.b16 %v2471, %v2467
        %v2996 = vpack.c.b16 %v2472, %v2468
        %v2997 = vpack.c.b16 %v2473, %v2469
        %v2998 = vpack.c.b16 %v2478, %v2474
        %v2999 = vpack.c.b16 %v2479, %v2475
        %v3000 = vpack.c.b16 %v2480, %v2476
        %v3001 = vpack.c.b16 %v2481, %v2477
        %v3002 = vpack.c.b16 %v2486, %v2482
        %v3003 = vpack.c.b16 %v2487, %v2483
        %v3004 = vpack.c.b16 %v2488, %v2484
        %v3005 = vpack.c.b16 %v2489, %v2485
        %v3006 = vpack.c.b16 %v2494, %v2490
        %v3007 = vpack.c.b16 %v2495, %v2491
        %v3008 = vpack.c.b16 %v2496, %v2492
        %v3009 = vpack.c.b16 %v2497, %v2493
        %3522 = vmatpush.bf16.msra.mxu0 %v2526
        %3523 = vmatpush.bf16.msra.mxu0 %v2522
        %3524 = vmatpush.bf16.msra.mxu0 %v2518
        %3525 = vmatpush.bf16.msra.mxu0 %v2514
        %3526 = vmatpush.bf16.msra.mxu0 %v2510
        %3527 = vmatpush.bf16.msra.mxu0 %v2506
        %3528 = vmatpush.bf16.msra.mxu0 %v2502
        %3529 = vmatpush.bf16.msra.mxu0 %v2498
        %3530 = vmatmul.bf16.gmra.mxu0 %v930
        %v3531 = vpop.f32.mrf.mxu0
        %v3532 = vadd.f32 0.0, %v3531
        %v3533 = vpop.f32.mrf.mxu0
        %v3534 = vadd.f32 0.0, %v3533
        %3535 = vdwg.mxu0
        %3536 = vmatpush.bf16.msra.mxu0 %v2558
        %3537 = vmatpush.bf16.msra.mxu0 %v2554
        %3538 = vmatpush.bf16.msra.mxu0 %v2550
        %3539 = vmatpush.bf16.msra.mxu0 %v2546
        %3540 = vmatpush.bf16.msra.mxu0 %v2542
        %3541 = vmatpush.bf16.msra.mxu0 %v2538
        %3542 = vmatpush.bf16.msra.mxu0 %v2534
        %3543 = vmatpush.bf16.msra.mxu0 %v2530
        %3544 = vmatmul.bf16.gmra.mxu0 %v931
        %v3545 = vpop.f32.mrf.mxu0
        %v3546 = vadd.f32 %v3532, %v3545
        %v3547 = vpop.f32.mrf.mxu0
        %v3548 = vadd.f32 %v3534, %v3547
        %3549 = vdwg.mxu0
        %3550 = vmatpush.bf16.msra.mxu0 %v2590
        %3551 = vmatpush.bf16.msra.mxu0 %v2586
        %3552 = vmatpush.bf16.msra.mxu0 %v2582
        %3553 = vmatpush.bf16.msra.mxu0 %v2578
        %3554 = vmatpush.bf16.msra.mxu0 %v2574
        %3555 = vmatpush.bf16.msra.mxu0 %v2570
        %3556 = vmatpush.bf16.msra.mxu0 %v2566
        %3557 = vmatpush.bf16.msra.mxu0 %v2562
        %3558 = vmatmul.bf16.gmra.mxu0 %v932
        %v3559 = vpop.f32.mrf.mxu0
        %v3560 = vadd.f32 %v3546, %v3559
        %v3561 = vpop.f32.mrf.mxu0
        %v3562 = vadd.f32 %v3548, %v3561
        %3563 = vdwg.mxu0
        %3564 = vmatpush.bf16.msra.mxu0 %v2622
        %3565 = vmatpush.bf16.msra.mxu0 %v2618
        %3566 = vmatpush.bf16.msra.mxu0 %v2614
        %3567 = vmatpush.bf16.msra.mxu0 %v2610
        %3568 = vmatpush.bf16.msra.mxu0 %v2606
        %3569 = vmatpush.bf16.msra.mxu0 %v2602
        %3570 = vmatpush.bf16.msra.mxu0 %v2598
        %3571 = vmatpush.bf16.msra.mxu0 %v2594
        %3572 = vmatmul.bf16.gmra.mxu0 %v933
        %v3573 = vpop.f32.mrf.mxu0
        %v3574 = vadd.f32 %v3560, %v3573
        %v3575 = vpop.f32.mrf.mxu0
        %v3576 = vadd.f32 %v3562, %v3575
        %3577 = vdwg.mxu0
        %3578 = vmatpush.bf16.msra.mxu0 %v2654
        %3579 = vmatpush.bf16.msra.mxu0 %v2650
        %3580 = vmatpush.bf16.msra.mxu0 %v2646
        %3581 = vmatpush.bf16.msra.mxu0 %v2642
        %3582 = vmatpush.bf16.msra.mxu0 %v2638
        %3583 = vmatpush.bf16.msra.mxu0 %v2634
        %3584 = vmatpush.bf16.msra.mxu0 %v2630
        %3585 = vmatpush.bf16.msra.mxu0 %v2626
        %3586 = vmatmul.bf16.gmra.mxu0 %v934
        %v3587 = vpop.f32.mrf.mxu0
        %v3588 = vadd.f32 %v3574, %v3587
        %v3589 = vpop.f32.mrf.mxu0
        %v3590 = vadd.f32 %v3576, %v3589
        %3591 = vdwg.mxu0
        %3592 = vmatpush.bf16.msra.mxu0 %v2686
        %3593 = vmatpush.bf16.msra.mxu0 %v2682
        %3594 = vmatpush.bf16.msra.mxu0 %v2678
        %3595 = vmatpush.bf16.msra.mxu0 %v2674
        %3596 = vmatpush.bf16.msra.mxu0 %v2670
        %3597 = vmatpush.bf16.msra.mxu0 %v2666
        %3598 = vmatpush.bf16.msra.mxu0 %v2662
        %3599 = vmatpush.bf16.msra.mxu0 %v2658
        %3600 = vmatmul.bf16.gmra.mxu0 %v935
        %v3601 = vpop.f32.mrf.mxu0
        %v3602 = vadd.f32 %v3588, %v3601
        %v3603 = vpop.f32.mrf.mxu0
        %v3604 = vadd.f32 %v3590, %v3603
        %3605 = vdwg.mxu0
        %3606 = vmatpush.bf16.msra.mxu0 %v2718
        %3607 = vmatpush.bf16.msra.mxu0 %v2714
        %3608 = vmatpush.bf16.msra.mxu0 %v2710
        %3609 = vmatpush.bf16.msra.mxu0 %v2706
        %3610 = vmatpush.bf16.msra.mxu0 %v2702
        %3611 = vmatpush.bf16.msra.mxu0 %v2698
        %3612 = vmatpush.bf16.msra.mxu0 %v2694
        %3613 = vmatpush.bf16.msra.mxu0 %v2690
        %3614 = vmatmul.bf16.gmra.mxu0 %v936
        %v3615 = vpop.f32.mrf.mxu0
        %v3616 = vadd.f32 %v3602, %v3615
        %v3617 = vpop.f32.mrf.mxu0
        %v3618 = vadd.f32 %v3604, %v3617
        %3619 = vdwg.mxu0
        %3620 = vmatpush.bf16.msra.mxu0 %v2750
        %3621 = vmatpush.bf16.msra.mxu0 %v2746
        %3622 = vmatpush.bf16.msra.mxu0 %v2742
        %3623 = vmatpush.bf16.msra.mxu0 %v2738
        %3624 = vmatpush.bf16.msra.mxu0 %v2734
        %3625 = vmatpush.bf16.msra.mxu0 %v2730
        %3626 = vmatpush.bf16.msra.mxu0 %v2726
        %3627 = vmatpush.bf16.msra.mxu0 %v2722
        %3628 = vmatmul.bf16.gmra.mxu0 %v937
        %v3629 = vpop.f32.mrf.mxu0
        %v3630 = vadd.f32 %v3616, %v3629
        %v3631 = vpop.f32.mrf.mxu0
        %v3632 = vadd.f32 %v3618, %v3631
        %3633 = vdwg.mxu0
        %3634 = vmatpush.bf16.msra.mxu0 %v2782
        %3635 = vmatpush.bf16.msra.mxu0 %v2778
        %3636 = vmatpush.bf16.msra.mxu0 %v2774
        %3637 = vmatpush.bf16.msra.mxu0 %v2770
        %3638 = vmatpush.bf16.msra.mxu0 %v2766
        %3639 = vmatpush.bf16.msra.mxu0 %v2762
        %3640 = vmatpush.bf16.msra.mxu0 %v2758
        %3641 = vmatpush.bf16.msra.mxu0 %v2754
        %3642 = vmatmul.bf16.gmra.mxu0 %v938
        %v3643 = vpop.f32.mrf.mxu0
        %v3644 = vadd.f32 %v3630, %v3643
        %v3645 = vpop.f32.mrf.mxu0
        %v3646 = vadd.f32 %v3632, %v3645
        %3647 = vdwg.mxu0
        %3648 = vmatpush.bf16.msra.mxu0 %v2814
        %3649 = vmatpush.bf16.msra.mxu0 %v2810
        %3650 = vmatpush.bf16.msra.mxu0 %v2806
        %3651 = vmatpush.bf16.msra.mxu0 %v2802
        %3652 = vmatpush.bf16.msra.mxu0 %v2798
        %3653 = vmatpush.bf16.msra.mxu0 %v2794
        %3654 = vmatpush.bf16.msra.mxu0 %v2790
        %3655 = vmatpush.bf16.msra.mxu0 %v2786
        %3656 = vmatmul.bf16.gmra.mxu0 %v939
        %v3657 = vpop.f32.mrf.mxu0
        %v3658 = vadd.f32 %v3644, %v3657
        %v3659 = vpop.f32.mrf.mxu0
        %v3660 = vadd.f32 %v3646, %v3659
        %3661 = vdwg.mxu0
        %3662 = vmatpush.bf16.msra.mxu0 %v2846
        %3663 = vmatpush.bf16.msra.mxu0 %v2842
        %3664 = vmatpush.bf16.msra.mxu0 %v2838
        %3665 = vmatpush.bf16.msra.mxu0 %v2834
        %3666 = vmatpush.bf16.msra.mxu0 %v2830
        %3667 = vmatpush.bf16.msra.mxu0 %v2826
        %3668 = vmatpush.bf16.msra.mxu0 %v2822
        %3669 = vmatpush.bf16.msra.mxu0 %v2818
        %3670 = vmatmul.bf16.gmra.mxu0 %v940
        %v3671 = vpop.f32.mrf.mxu0
        %v3672 = vadd.f32 %v3658, %v3671
        %v3673 = vpop.f32.mrf.mxu0
        %v3674 = vadd.f32 %v3660, %v3673
        %3675 = vdwg.mxu0
        %3676 = vmatpush.bf16.msra.mxu0 %v2878
        %3677 = vmatpush.bf16.msra.mxu0 %v2874
        %3678 = vmatpush.bf16.msra.mxu0 %v2870
        %3679 = vmatpush.bf16.msra.mxu0 %v2866
        %3680 = vmatpush.bf16.msra.mxu0 %v2862
        %3681 = vmatpush.bf16.msra.mxu0 %v2858
        %3682 = vmatpush.bf16.msra.mxu0 %v2854
        %3683 = vmatpush.bf16.msra.mxu0 %v2850
        %3684 = vmatmul.bf16.gmra.mxu0 %v941
        %v3685 = vpop.f32.mrf.mxu0
        %v3686 = vadd.f32 %v3672, %v3685
        %v3687 = vpop.f32.mrf.mxu0
        %v3688 = vadd.f32 %v3674, %v3687
        %3689 = vdwg.mxu0
        %3690 = vmatpush.bf16.msra.mxu0 %v2910
        %3691 = vmatpush.bf16.msra.mxu0 %v2906
        %3692 = vmatpush.bf16.msra.mxu0 %v2902
        %3693 = vmatpush.bf16.msra.mxu0 %v2898
        %3694 = vmatpush.bf16.msra.mxu0 %v2894
        %3695 = vmatpush.bf16.msra.mxu0 %v2890
        %3696 = vmatpush.bf16.msra.mxu0 %v2886
        %3697 = vmatpush.bf16.msra.mxu0 %v2882
        %3698 = vmatmul.bf16.gmra.mxu0 %v942
        %v3699 = vpop.f32.mrf.mxu0
        %v3700 = vadd.f32 %v3686, %v3699
        %v3701 = vpop.f32.mrf.mxu0
        %v3702 = vadd.f32 %v3688, %v3701
        %3703 = vdwg.mxu0
        %3704 = vmatpush.bf16.msra.mxu0 %v2942
        %3705 = vmatpush.bf16.msra.mxu0 %v2938
        %3706 = vmatpush.bf16.msra.mxu0 %v2934
        %3707 = vmatpush.bf16.msra.mxu0 %v2930
        %3708 = vmatpush.bf16.msra.mxu0 %v2926
        %3709 = vmatpush.bf16.msra.mxu0 %v2922
        %3710 = vmatpush.bf16.msra.mxu0 %v2918
        %3711 = vmatpush.bf16.msra.mxu0 %v2914
        %3712 = vmatmul.bf16.gmra.mxu0 %v943
        %v3713 = vpop.f32.mrf.mxu0
        %v3714 = vadd.f32 %v3700, %v3713
        %v3715 = vpop.f32.mrf.mxu0
        %v3716 = vadd.f32 %v3702, %v3715
        %3717 = vdwg.mxu0
        %3718 = vmatpush.bf16.msra.mxu0 %v2974
        %3719 = vmatpush.bf16.msra.mxu0 %v2970
        %3720 = vmatpush.bf16.msra.mxu0 %v2966
        %3721 = vmatpush.bf16.msra.mxu0 %v2962
        %3722 = vmatpush.bf16.msra.mxu0 %v2958
        %3723 = vmatpush.bf16.msra.mxu0 %v2954
        %3724 = vmatpush.bf16.msra.mxu0 %v2950
        %3725 = vmatpush.bf16.msra.mxu0 %v2946
        %3726 = vmatmul.bf16.gmra.mxu0 %v944
        %v3727 = vpop.f32.mrf.mxu0
        %v3728 = vadd.f32 %v3714, %v3727
        %v3729 = vpop.f32.mrf.mxu0
        %v3730 = vadd.f32 %v3716, %v3729
        %3731 = vdwg.mxu0
        %3732 = vmatpush.bf16.msra.mxu0 %v3006
        %3733 = vmatpush.bf16.msra.mxu0 %v3002
        %3734 = vmatpush.bf16.msra.mxu0 %v2998
        %3735 = vmatpush.bf16.msra.mxu0 %v2994
        %3736 = vmatpush.bf16.msra.mxu0 %v2990
        %3737 = vmatpush.bf16.msra.mxu0 %v2986
        %3738 = vmatpush.bf16.msra.mxu0 %v2982
        %3739 = vmatpush.bf16.msra.mxu0 %v2978
        %3740 = vmatmul.bf16.gmra.mxu0 %v945
        %v3741 = vpop.f32.mrf.mxu0
        %v3742 = vadd.f32 %v3728, %v3741
        %v3743 = vpop.f32.mrf.mxu0
        %v3744 = vadd.f32 %v3730, %v3743
        %3745 = vdwg.mxu0
        %3746 = vmatpush.bf16.msra.mxu0 %v2527
        %3747 = vmatpush.bf16.msra.mxu0 %v2523
        %3748 = vmatpush.bf16.msra.mxu0 %v2519
        %3749 = vmatpush.bf16.msra.mxu0 %v2515
        %3750 = vmatpush.bf16.msra.mxu0 %v2511
        %3751 = vmatpush.bf16.msra.mxu0 %v2507
        %3752 = vmatpush.bf16.msra.mxu0 %v2503
        %3753 = vmatpush.bf16.msra.mxu0 %v2499
        %3754 = vmatmul.bf16.gmra.mxu0 %v930
        %v3755 = vpop.f32.mrf.mxu0
        %v3756 = vadd.f32 0.0, %v3755
        %v3757 = vpop.f32.mrf.mxu0
        %v3758 = vadd.f32 0.0, %v3757
        %3759 = vdwg.mxu0
        %3760 = vmatpush.bf16.msra.mxu0 %v2559
        %3761 = vmatpush.bf16.msra.mxu0 %v2555
        %3762 = vmatpush.bf16.msra.mxu0 %v2551
        %3763 = vmatpush.bf16.msra.mxu0 %v2547
        %3764 = vmatpush.bf16.msra.mxu0 %v2543
        %3765 = vmatpush.bf16.msra.mxu0 %v2539
        %3766 = vmatpush.bf16.msra.mxu0 %v2535
        %3767 = vmatpush.bf16.msra.mxu0 %v2531
        %3768 = vmatmul.bf16.gmra.mxu0 %v931
        %v3769 = vpop.f32.mrf.mxu0
        %v3770 = vadd.f32 %v3756, %v3769
        %v3771 = vpop.f32.mrf.mxu0
        %v3772 = vadd.f32 %v3758, %v3771
        %3773 = vdwg.mxu0
        %3774 = vmatpush.bf16.msra.mxu0 %v2591
        %3775 = vmatpush.bf16.msra.mxu0 %v2587
        %3776 = vmatpush.bf16.msra.mxu0 %v2583
        %3777 = vmatpush.bf16.msra.mxu0 %v2579
        %3778 = vmatpush.bf16.msra.mxu0 %v2575
        %3779 = vmatpush.bf16.msra.mxu0 %v2571
        %3780 = vmatpush.bf16.msra.mxu0 %v2567
        %3781 = vmatpush.bf16.msra.mxu0 %v2563
        %3782 = vmatmul.bf16.gmra.mxu0 %v932
        %v3783 = vpop.f32.mrf.mxu0
        %v3784 = vadd.f32 %v3770, %v3783
        %v3785 = vpop.f32.mrf.mxu0
        %v3786 = vadd.f32 %v3772, %v3785
        %3787 = vdwg.mxu0
        %3788 = vmatpush.bf16.msra.mxu0 %v2623
        %3789 = vmatpush.bf16.msra.mxu0 %v2619
        %3790 = vmatpush.bf16.msra.mxu0 %v2615
        %3791 = vmatpush.bf16.msra.mxu0 %v2611
        %3792 = vmatpush.bf16.msra.mxu0 %v2607
        %3793 = vmatpush.bf16.msra.mxu0 %v2603
        %3794 = vmatpush.bf16.msra.mxu0 %v2599
        %3795 = vmatpush.bf16.msra.mxu0 %v2595
        %3796 = vmatmul.bf16.gmra.mxu0 %v933
        %v3797 = vpop.f32.mrf.mxu0
        %v3798 = vadd.f32 %v3784, %v3797
        %v3799 = vpop.f32.mrf.mxu0
        %v3800 = vadd.f32 %v3786, %v3799
        %3801 = vdwg.mxu0
        %3802 = vmatpush.bf16.msra.mxu0 %v2655
        %3803 = vmatpush.bf16.msra.mxu0 %v2651
        %3804 = vmatpush.bf16.msra.mxu0 %v2647
        %3805 = vmatpush.bf16.msra.mxu0 %v2643
        %3806 = vmatpush.bf16.msra.mxu0 %v2639
        %3807 = vmatpush.bf16.msra.mxu0 %v2635
        %3808 = vmatpush.bf16.msra.mxu0 %v2631
        %3809 = vmatpush.bf16.msra.mxu0 %v2627
        %3810 = vmatmul.bf16.gmra.mxu0 %v934
        %v3811 = vpop.f32.mrf.mxu0
        %v3812 = vadd.f32 %v3798, %v3811
        %v3813 = vpop.f32.mrf.mxu0
        %v3814 = vadd.f32 %v3800, %v3813
        %3815 = vdwg.mxu0
        %3816 = vmatpush.bf16.msra.mxu0 %v2687
        %3817 = vmatpush.bf16.msra.mxu0 %v2683
        %3818 = vmatpush.bf16.msra.mxu0 %v2679
        %3819 = vmatpush.bf16.msra.mxu0 %v2675
        %3820 = vmatpush.bf16.msra.mxu0 %v2671
        %3821 = vmatpush.bf16.msra.mxu0 %v2667
        %3822 = vmatpush.bf16.msra.mxu0 %v2663
        %3823 = vmatpush.bf16.msra.mxu0 %v2659
        %3824 = vmatmul.bf16.gmra.mxu0 %v935
        %v3825 = vpop.f32.mrf.mxu0
        %v3826 = vadd.f32 %v3812, %v3825
        %v3827 = vpop.f32.mrf.mxu0
        %v3828 = vadd.f32 %v3814, %v3827
        %3829 = vdwg.mxu0
        %3830 = vmatpush.bf16.msra.mxu0 %v2719
        %3831 = vmatpush.bf16.msra.mxu0 %v2715
        %3832 = vmatpush.bf16.msra.mxu0 %v2711
        %3833 = vmatpush.bf16.msra.mxu0 %v2707
        %3834 = vmatpush.bf16.msra.mxu0 %v2703
        %3835 = vmatpush.bf16.msra.mxu0 %v2699
        %3836 = vmatpush.bf16.msra.mxu0 %v2695
        %3837 = vmatpush.bf16.msra.mxu0 %v2691
        %3838 = vmatmul.bf16.gmra.mxu0 %v936
        %v3839 = vpop.f32.mrf.mxu0
        %v3840 = vadd.f32 %v3826, %v3839
        %v3841 = vpop.f32.mrf.mxu0
        %v3842 = vadd.f32 %v3828, %v3841
        %3843 = vdwg.mxu0
        %3844 = vmatpush.bf16.msra.mxu0 %v2751
        %3845 = vmatpush.bf16.msra.mxu0 %v2747
        %3846 = vmatpush.bf16.msra.mxu0 %v2743
        %3847 = vmatpush.bf16.msra.mxu0 %v2739
        %3848 = vmatpush.bf16.msra.mxu0 %v2735
        %3849 = vmatpush.bf16.msra.mxu0 %v2731
        %3850 = vmatpush.bf16.msra.mxu0 %v2727
        %3851 = vmatpush.bf16.msra.mxu0 %v2723
        %3852 = vmatmul.bf16.gmra.mxu0 %v937
        %v3853 = vpop.f32.mrf.mxu0
        %v3854 = vadd.f32 %v3840, %v3853
        %v3855 = vpop.f32.mrf.mxu0
        %v3856 = vadd.f32 %v3842, %v3855
        %3857 = vdwg.mxu0
        %3858 = vmatpush.bf16.msra.mxu0 %v2783
        %3859 = vmatpush.bf16.msra.mxu0 %v2779
        %3860 = vmatpush.bf16.msra.mxu0 %v2775
        %3861 = vmatpush.bf16.msra.mxu0 %v2771
        %3862 = vmatpush.bf16.msra.mxu0 %v2767
        %3863 = vmatpush.bf16.msra.mxu0 %v2763
        %3864 = vmatpush.bf16.msra.mxu0 %v2759
        %3865 = vmatpush.bf16.msra.mxu0 %v2755
        %3866 = vmatmul.bf16.gmra.mxu0 %v938
        %v3867 = vpop.f32.mrf.mxu0
        %v3868 = vadd.f32 %v3854, %v3867
        %v3869 = vpop.f32.mrf.mxu0
        %v3870 = vadd.f32 %v3856, %v3869
        %3871 = vdwg.mxu0
        %3872 = vmatpush.bf16.msra.mxu0 %v2815
        %3873 = vmatpush.bf16.msra.mxu0 %v2811
        %3874 = vmatpush.bf16.msra.mxu0 %v2807
        %3875 = vmatpush.bf16.msra.mxu0 %v2803
        %3876 = vmatpush.bf16.msra.mxu0 %v2799
        %3877 = vmatpush.bf16.msra.mxu0 %v2795
        %3878 = vmatpush.bf16.msra.mxu0 %v2791
        %3879 = vmatpush.bf16.msra.mxu0 %v2787
        %3880 = vmatmul.bf16.gmra.mxu0 %v939
        %v3881 = vpop.f32.mrf.mxu0
        %v3882 = vadd.f32 %v3868, %v3881
        %v3883 = vpop.f32.mrf.mxu0
        %v3884 = vadd.f32 %v3870, %v3883
        %3885 = vdwg.mxu0
        %3886 = vmatpush.bf16.msra.mxu0 %v2847
        %3887 = vmatpush.bf16.msra.mxu0 %v2843
        %3888 = vmatpush.bf16.msra.mxu0 %v2839
        %3889 = vmatpush.bf16.msra.mxu0 %v2835
        %3890 = vmatpush.bf16.msra.mxu0 %v2831
        %3891 = vmatpush.bf16.msra.mxu0 %v2827
        %3892 = vmatpush.bf16.msra.mxu0 %v2823
        %3893 = vmatpush.bf16.msra.mxu0 %v2819
        %3894 = vmatmul.bf16.gmra.mxu0 %v940
        %v3895 = vpop.f32.mrf.mxu0
        %v3896 = vadd.f32 %v3882, %v3895
        %v3897 = vpop.f32.mrf.mxu0
        %v3898 = vadd.f32 %v3884, %v3897
        %3899 = vdwg.mxu0
        %3900 = vmatpush.bf16.msra.mxu0 %v2879
        %3901 = vmatpush.bf16.msra.mxu0 %v2875
        %3902 = vmatpush.bf16.msra.mxu0 %v2871
        %3903 = vmatpush.bf16.msra.mxu0 %v2867
        %3904 = vmatpush.bf16.msra.mxu0 %v2863
        %3905 = vmatpush.bf16.msra.mxu0 %v2859
        %3906 = vmatpush.bf16.msra.mxu0 %v2855
        %3907 = vmatpush.bf16.msra.mxu0 %v2851
        %3908 = vmatmul.bf16.gmra.mxu0 %v941
        %v3909 = vpop.f32.mrf.mxu0
        %v3910 = vadd.f32 %v3896, %v3909
        %v3911 = vpop.f32.mrf.mxu0
        %v3912 = vadd.f32 %v3898, %v3911
        %3913 = vdwg.mxu0
        %3914 = vmatpush.bf16.msra.mxu0 %v2911
        %3915 = vmatpush.bf16.msra.mxu0 %v2907
        %3916 = vmatpush.bf16.msra.mxu0 %v2903
        %3917 = vmatpush.bf16.msra.mxu0 %v2899
        %3918 = vmatpush.bf16.msra.mxu0 %v2895
        %3919 = vmatpush.bf16.msra.mxu0 %v2891
        %3920 = vmatpush.bf16.msra.mxu0 %v2887
        %3921 = vmatpush.bf16.msra.mxu0 %v2883
        %3922 = vmatmul.bf16.gmra.mxu0 %v942
        %v3923 = vpop.f32.mrf.mxu0
        %v3924 = vadd.f32 %v3910, %v3923
        %v3925 = vpop.f32.mrf.mxu0
        %v3926 = vadd.f32 %v3912, %v3925
        %3927 = vdwg.mxu0
        %3928 = vmatpush.bf16.msra.mxu0 %v2943
        %3929 = vmatpush.bf16.msra.mxu0 %v2939
        %3930 = vmatpush.bf16.msra.mxu0 %v2935
        %3931 = vmatpush.bf16.msra.mxu0 %v2931
        %3932 = vmatpush.bf16.msra.mxu0 %v2927
        %3933 = vmatpush.bf16.msra.mxu0 %v2923
        %3934 = vmatpush.bf16.msra.mxu0 %v2919
        %3935 = vmatpush.bf16.msra.mxu0 %v2915
        %3936 = vmatmul.bf16.gmra.mxu0 %v943
        %v3937 = vpop.f32.mrf.mxu0
        %v3938 = vadd.f32 %v3924, %v3937
        %v3939 = vpop.f32.mrf.mxu0
        %v3940 = vadd.f32 %v3926, %v3939
        %3941 = vdwg.mxu0
        %3942 = vmatpush.bf16.msra.mxu0 %v2975
        %3943 = vmatpush.bf16.msra.mxu0 %v2971
        %3944 = vmatpush.bf16.msra.mxu0 %v2967
        %3945 = vmatpush.bf16.msra.mxu0 %v2963
        %3946 = vmatpush.bf16.msra.mxu0 %v2959
        %3947 = vmatpush.bf16.msra.mxu0 %v2955
        %3948 = vmatpush.bf16.msra.mxu0 %v2951
        %3949 = vmatpush.bf16.msra.mxu0 %v2947
        %3950 = vmatmul.bf16.gmra.mxu0 %v944
        %v3951 = vpop.f32.mrf.mxu0
        %v3952 = vadd.f32 %v3938, %v3951
        %v3953 = vpop.f32.mrf.mxu0
        %v3954 = vadd.f32 %v3940, %v3953
        %3955 = vdwg.mxu0
        %3956 = vmatpush.bf16.msra.mxu0 %v3007
        %3957 = vmatpush.bf16.msra.mxu0 %v3003
        %3958 = vmatpush.bf16.msra.mxu0 %v2999
        %3959 = vmatpush.bf16.msra.mxu0 %v2995
        %3960 = vmatpush.bf16.msra.mxu0 %v2991
        %3961 = vmatpush.bf16.msra.mxu0 %v2987
        %3962 = vmatpush.bf16.msra.mxu0 %v2983
        %3963 = vmatpush.bf16.msra.mxu0 %v2979
        %3964 = vmatmul.bf16.gmra.mxu0 %v945
        %v3965 = vpop.f32.mrf.mxu0
        %v3966 = vadd.f32 %v3952, %v3965
        %v3967 = vpop.f32.mrf.mxu0
        %v3968 = vadd.f32 %v3954, %v3967
        %3969 = vdwg.mxu0
        %3970 = vmatpush.bf16.msra.mxu0 %v2528
        %3971 = vmatpush.bf16.msra.mxu0 %v2524
        %3972 = vmatpush.bf16.msra.mxu0 %v2520
        %3973 = vmatpush.bf16.msra.mxu0 %v2516
        %3974 = vmatpush.bf16.msra.mxu0 %v2512
        %3975 = vmatpush.bf16.msra.mxu0 %v2508
        %3976 = vmatpush.bf16.msra.mxu0 %v2504
        %3977 = vmatpush.bf16.msra.mxu0 %v2500
        %3978 = vmatmul.bf16.gmra.mxu0 %v930
        %v3979 = vpop.f32.mrf.mxu0
        %v3980 = vadd.f32 0.0, %v3979
        %v3981 = vpop.f32.mrf.mxu0
        %v3982 = vadd.f32 0.0, %v3981
        %3983 = vdwg.mxu0
        %3984 = vmatpush.bf16.msra.mxu0 %v2560
        %3985 = vmatpush.bf16.msra.mxu0 %v2556
        %3986 = vmatpush.bf16.msra.mxu0 %v2552
        %3987 = vmatpush.bf16.msra.mxu0 %v2548
        %3988 = vmatpush.bf16.msra.mxu0 %v2544
        %3989 = vmatpush.bf16.msra.mxu0 %v2540
        %3990 = vmatpush.bf16.msra.mxu0 %v2536
        %3991 = vmatpush.bf16.msra.mxu0 %v2532
        %3992 = vmatmul.bf16.gmra.mxu0 %v931
        %v3993 = vpop.f32.mrf.mxu0
        %v3994 = vadd.f32 %v3980, %v3993
        %v3995 = vpop.f32.mrf.mxu0
        %v3996 = vadd.f32 %v3982, %v3995
        %3997 = vdwg.mxu0
        %3998 = vmatpush.bf16.msra.mxu0 %v2592
        %3999 = vmatpush.bf16.msra.mxu0 %v2588
        %4000 = vmatpush.bf16.msra.mxu0 %v2584
        %4001 = vmatpush.bf16.msra.mxu0 %v2580
        %4002 = vmatpush.bf16.msra.mxu0 %v2576
        %4003 = vmatpush.bf16.msra.mxu0 %v2572
        %4004 = vmatpush.bf16.msra.mxu0 %v2568
        %4005 = vmatpush.bf16.msra.mxu0 %v2564
        %4006 = vmatmul.bf16.gmra.mxu0 %v932
        %v4007 = vpop.f32.mrf.mxu0
        %v4008 = vadd.f32 %v3994, %v4007
        %v4009 = vpop.f32.mrf.mxu0
        %v4010 = vadd.f32 %v3996, %v4009
        %4011 = vdwg.mxu0
        %4012 = vmatpush.bf16.msra.mxu0 %v2624
        %4013 = vmatpush.bf16.msra.mxu0 %v2620
        %4014 = vmatpush.bf16.msra.mxu0 %v2616
        %4015 = vmatpush.bf16.msra.mxu0 %v2612
        %4016 = vmatpush.bf16.msra.mxu0 %v2608
        %4017 = vmatpush.bf16.msra.mxu0 %v2604
        %4018 = vmatpush.bf16.msra.mxu0 %v2600
        %4019 = vmatpush.bf16.msra.mxu0 %v2596
        %4020 = vmatmul.bf16.gmra.mxu0 %v933
        %v4021 = vpop.f32.mrf.mxu0
        %v4022 = vadd.f32 %v4008, %v4021
        %v4023 = vpop.f32.mrf.mxu0
        %v4024 = vadd.f32 %v4010, %v4023
        %4025 = vdwg.mxu0
        %4026 = vmatpush.bf16.msra.mxu0 %v2656
        %4027 = vmatpush.bf16.msra.mxu0 %v2652
        %4028 = vmatpush.bf16.msra.mxu0 %v2648
        %4029 = vmatpush.bf16.msra.mxu0 %v2644
        %4030 = vmatpush.bf16.msra.mxu0 %v2640
        %4031 = vmatpush.bf16.msra.mxu0 %v2636
        %4032 = vmatpush.bf16.msra.mxu0 %v2632
        %4033 = vmatpush.bf16.msra.mxu0 %v2628
        %4034 = vmatmul.bf16.gmra.mxu0 %v934
        %v4035 = vpop.f32.mrf.mxu0
        %v4036 = vadd.f32 %v4022, %v4035
        %v4037 = vpop.f32.mrf.mxu0
        %v4038 = vadd.f32 %v4024, %v4037
        %4039 = vdwg.mxu0
        %4040 = vmatpush.bf16.msra.mxu0 %v2688
        %4041 = vmatpush.bf16.msra.mxu0 %v2684
        %4042 = vmatpush.bf16.msra.mxu0 %v2680
        %4043 = vmatpush.bf16.msra.mxu0 %v2676
        %4044 = vmatpush.bf16.msra.mxu0 %v2672
        %4045 = vmatpush.bf16.msra.mxu0 %v2668
        %4046 = vmatpush.bf16.msra.mxu0 %v2664
        %4047 = vmatpush.bf16.msra.mxu0 %v2660
        %4048 = vmatmul.bf16.gmra.mxu0 %v935
        %v4049 = vpop.f32.mrf.mxu0
        %v4050 = vadd.f32 %v4036, %v4049
        %v4051 = vpop.f32.mrf.mxu0
        %v4052 = vadd.f32 %v4038, %v4051
        %4053 = vdwg.mxu0
        %4054 = vmatpush.bf16.msra.mxu0 %v2720
        %4055 = vmatpush.bf16.msra.mxu0 %v2716
        %4056 = vmatpush.bf16.msra.mxu0 %v2712
        %4057 = vmatpush.bf16.msra.mxu0 %v2708
        %4058 = vmatpush.bf16.msra.mxu0 %v2704
        %4059 = vmatpush.bf16.msra.mxu0 %v2700
        %4060 = vmatpush.bf16.msra.mxu0 %v2696
        %4061 = vmatpush.bf16.msra.mxu0 %v2692
        %4062 = vmatmul.bf16.gmra.mxu0 %v936
        %v4063 = vpop.f32.mrf.mxu0
        %v4064 = vadd.f32 %v4050, %v4063
        %v4065 = vpop.f32.mrf.mxu0
        %v4066 = vadd.f32 %v4052, %v4065
        %4067 = vdwg.mxu0
        %4068 = vmatpush.bf16.msra.mxu0 %v2752
        %4069 = vmatpush.bf16.msra.mxu0 %v2748
        %4070 = vmatpush.bf16.msra.mxu0 %v2744
        %4071 = vmatpush.bf16.msra.mxu0 %v2740
        %4072 = vmatpush.bf16.msra.mxu0 %v2736
        %4073 = vmatpush.bf16.msra.mxu0 %v2732
        %4074 = vmatpush.bf16.msra.mxu0 %v2728
        %4075 = vmatpush.bf16.msra.mxu0 %v2724
        %4076 = vmatmul.bf16.gmra.mxu0 %v937
        %v4077 = vpop.f32.mrf.mxu0
        %v4078 = vadd.f32 %v4064, %v4077
        %v4079 = vpop.f32.mrf.mxu0
        %v4080 = vadd.f32 %v4066, %v4079
        %4081 = vdwg.mxu0
        %4082 = vmatpush.bf16.msra.mxu0 %v2784
        %4083 = vmatpush.bf16.msra.mxu0 %v2780
        %4084 = vmatpush.bf16.msra.mxu0 %v2776
        %4085 = vmatpush.bf16.msra.mxu0 %v2772
        %4086 = vmatpush.bf16.msra.mxu0 %v2768
        %4087 = vmatpush.bf16.msra.mxu0 %v2764
        %4088 = vmatpush.bf16.msra.mxu0 %v2760
        %4089 = vmatpush.bf16.msra.mxu0 %v2756
        %4090 = vmatmul.bf16.gmra.mxu0 %v938
        %v4091 = vpop.f32.mrf.mxu0
        %v4092 = vadd.f32 %v4078, %v4091
        %v4093 = vpop.f32.mrf.mxu0
        %v4094 = vadd.f32 %v4080, %v4093
        %4095 = vdwg.mxu0
        %4096 = vmatpush.bf16.msra.mxu0 %v2816
        %4097 = vmatpush.bf16.msra.mxu0 %v2812
        %4098 = vmatpush.bf16.msra.mxu0 %v2808
        %4099 = vmatpush.bf16.msra.mxu0 %v2804
        %4100 = vmatpush.bf16.msra.mxu0 %v2800
        %4101 = vmatpush.bf16.msra.mxu0 %v2796
        %4102 = vmatpush.bf16.msra.mxu0 %v2792
        %4103 = vmatpush.bf16.msra.mxu0 %v2788
        %4104 = vmatmul.bf16.gmra.mxu0 %v939
        %v4105 = vpop.f32.mrf.mxu0
        %v4106 = vadd.f32 %v4092, %v4105
        %v4107 = vpop.f32.mrf.mxu0
        %v4108 = vadd.f32 %v4094, %v4107
        %4109 = vdwg.mxu0
        %4110 = vmatpush.bf16.msra.mxu0 %v2848
        %4111 = vmatpush.bf16.msra.mxu0 %v2844
        %4112 = vmatpush.bf16.msra.mxu0 %v2840
        %4113 = vmatpush.bf16.msra.mxu0 %v2836
        %4114 = vmatpush.bf16.msra.mxu0 %v2832
        %4115 = vmatpush.bf16.msra.mxu0 %v2828
        %4116 = vmatpush.bf16.msra.mxu0 %v2824
        %4117 = vmatpush.bf16.msra.mxu0 %v2820
        %4118 = vmatmul.bf16.gmra.mxu0 %v940
        %v4119 = vpop.f32.mrf.mxu0
        %v4120 = vadd.f32 %v4106, %v4119
        %v4121 = vpop.f32.mrf.mxu0
        %v4122 = vadd.f32 %v4108, %v4121
        %4123 = vdwg.mxu0
        %4124 = vmatpush.bf16.msra.mxu0 %v2880
        %4125 = vmatpush.bf16.msra.mxu0 %v2876
        %4126 = vmatpush.bf16.msra.mxu0 %v2872
        %4127 = vmatpush.bf16.msra.mxu0 %v2868
        %4128 = vmatpush.bf16.msra.mxu0 %v2864
        %4129 = vmatpush.bf16.msra.mxu0 %v2860
        %4130 = vmatpush.bf16.msra.mxu0 %v2856
        %4131 = vmatpush.bf16.msra.mxu0 %v2852
        %4132 = vmatmul.bf16.gmra.mxu0 %v941
        %v4133 = vpop.f32.mrf.mxu0
        %v4134 = vadd.f32 %v4120, %v4133
        %v4135 = vpop.f32.mrf.mxu0
        %v4136 = vadd.f32 %v4122, %v4135
        %4137 = vdwg.mxu0
        %4138 = vmatpush.bf16.msra.mxu0 %v2912
        %4139 = vmatpush.bf16.msra.mxu0 %v2908
        %4140 = vmatpush.bf16.msra.mxu0 %v2904
        %4141 = vmatpush.bf16.msra.mxu0 %v2900
        %4142 = vmatpush.bf16.msra.mxu0 %v2896
        %4143 = vmatpush.bf16.msra.mxu0 %v2892
        %4144 = vmatpush.bf16.msra.mxu0 %v2888
        %4145 = vmatpush.bf16.msra.mxu0 %v2884
        %4146 = vmatmul.bf16.gmra.mxu0 %v942
        %v4147 = vpop.f32.mrf.mxu0
        %v4148 = vadd.f32 %v4134, %v4147
        %v4149 = vpop.f32.mrf.mxu0
        %v4150 = vadd.f32 %v4136, %v4149
        %4151 = vdwg.mxu0
        %4152 = vmatpush.bf16.msra.mxu0 %v2944
        %4153 = vmatpush.bf16.msra.mxu0 %v2940
        %4154 = vmatpush.bf16.msra.mxu0 %v2936
        %4155 = vmatpush.bf16.msra.mxu0 %v2932
        %4156 = vmatpush.bf16.msra.mxu0 %v2928
        %4157 = vmatpush.bf16.msra.mxu0 %v2924
        %4158 = vmatpush.bf16.msra.mxu0 %v2920
        %4159 = vmatpush.bf16.msra.mxu0 %v2916
        %4160 = vmatmul.bf16.gmra.mxu0 %v943
        %v4161 = vpop.f32.mrf.mxu0
        %v4162 = vadd.f32 %v4148, %v4161
        %v4163 = vpop.f32.mrf.mxu0
        %v4164 = vadd.f32 %v4150, %v4163
        %4165 = vdwg.mxu0
        %4166 = vmatpush.bf16.msra.mxu0 %v2976
        %4167 = vmatpush.bf16.msra.mxu0 %v2972
        %4168 = vmatpush.bf16.msra.mxu0 %v2968
        %4169 = vmatpush.bf16.msra.mxu0 %v2964
        %4170 = vmatpush.bf16.msra.mxu0 %v2960
        %4171 = vmatpush.bf16.msra.mxu0 %v2956
        %4172 = vmatpush.bf16.msra.mxu0 %v2952
        %4173 = vmatpush.bf16.msra.mxu0 %v2948
        %4174 = vmatmul.bf16.gmra.mxu0 %v944
        %v4175 = vpop.f32.mrf.mxu0
        %v4176 = vadd.f32 %v4162, %v4175
        %v4177 = vpop.f32.mrf.mxu0
        %v4178 = vadd.f32 %v4164, %v4177
        %4179 = vdwg.mxu0
        %4180 = vmatpush.bf16.msra.mxu0 %v3008
        %4181 = vmatpush.bf16.msra.mxu0 %v3004
        %4182 = vmatpush.bf16.msra.mxu0 %v3000
        %4183 = vmatpush.bf16.msra.mxu0 %v2996
        %4184 = vmatpush.bf16.msra.mxu0 %v2992
        %4185 = vmatpush.bf16.msra.mxu0 %v2988
        %4186 = vmatpush.bf16.msra.mxu0 %v2984
        %4187 = vmatpush.bf16.msra.mxu0 %v2980
        %4188 = vmatmul.bf16.gmra.mxu0 %v945
        %v4189 = vpop.f32.mrf.mxu0
        %v4190 = vadd.f32 %v4176, %v4189
        %v4191 = vpop.f32.mrf.mxu0
        %v4192 = vadd.f32 %v4178, %v4191
        %4193 = vdwg.mxu0
        %4194 = vmatpush.bf16.msra.mxu0 %v2529
        %4195 = vmatpush.bf16.msra.mxu0 %v2525
        %4196 = vmatpush.bf16.msra.mxu0 %v2521
        %4197 = vmatpush.bf16.msra.mxu0 %v2517
        %4198 = vmatpush.bf16.msra.mxu0 %v2513
        %4199 = vmatpush.bf16.msra.mxu0 %v2509
        %4200 = vmatpush.bf16.msra.mxu0 %v2505
        %4201 = vmatpush.bf16.msra.mxu0 %v2501
        %4202 = vmatmul.bf16.gmra.mxu0 %v930
        %v4203 = vpop.f32.mrf.mxu0
        %v4204 = vadd.f32 0.0, %v4203
        %v4205 = vpop.f32.mrf.mxu0
        %v4206 = vadd.f32 0.0, %v4205
        %4207 = vdwg.mxu0
        %4208 = vmatpush.bf16.msra.mxu0 %v2561
        %4209 = vmatpush.bf16.msra.mxu0 %v2557
        %4210 = vmatpush.bf16.msra.mxu0 %v2553
        %4211 = vmatpush.bf16.msra.mxu0 %v2549
        %4212 = vmatpush.bf16.msra.mxu0 %v2545
        %4213 = vmatpush.bf16.msra.mxu0 %v2541
        %4214 = vmatpush.bf16.msra.mxu0 %v2537
        %4215 = vmatpush.bf16.msra.mxu0 %v2533
        %4216 = vmatmul.bf16.gmra.mxu0 %v931
        %v4217 = vpop.f32.mrf.mxu0
        %v4218 = vadd.f32 %v4204, %v4217
        %v4219 = vpop.f32.mrf.mxu0
        %v4220 = vadd.f32 %v4206, %v4219
        %4221 = vdwg.mxu0
        %4222 = vmatpush.bf16.msra.mxu0 %v2593
        %4223 = vmatpush.bf16.msra.mxu0 %v2589
        %4224 = vmatpush.bf16.msra.mxu0 %v2585
        %4225 = vmatpush.bf16.msra.mxu0 %v2581
        %4226 = vmatpush.bf16.msra.mxu0 %v2577
        %4227 = vmatpush.bf16.msra.mxu0 %v2573
        %4228 = vmatpush.bf16.msra.mxu0 %v2569
        %4229 = vmatpush.bf16.msra.mxu0 %v2565
        %4230 = vmatmul.bf16.gmra.mxu0 %v932
        %v4231 = vpop.f32.mrf.mxu0
        %v4232 = vadd.f32 %v4218, %v4231
        %v4233 = vpop.f32.mrf.mxu0
        %v4234 = vadd.f32 %v4220, %v4233
        %4235 = vdwg.mxu0
        %4236 = vmatpush.bf16.msra.mxu0 %v2625
        %4237 = vmatpush.bf16.msra.mxu0 %v2621
        %4238 = vmatpush.bf16.msra.mxu0 %v2617
        %4239 = vmatpush.bf16.msra.mxu0 %v2613
        %4240 = vmatpush.bf16.msra.mxu0 %v2609
        %4241 = vmatpush.bf16.msra.mxu0 %v2605
        %4242 = vmatpush.bf16.msra.mxu0 %v2601
        %4243 = vmatpush.bf16.msra.mxu0 %v2597
        %4244 = vmatmul.bf16.gmra.mxu0 %v933
        %v4245 = vpop.f32.mrf.mxu0
        %v4246 = vadd.f32 %v4232, %v4245
        %v4247 = vpop.f32.mrf.mxu0
        %v4248 = vadd.f32 %v4234, %v4247
        %4249 = vdwg.mxu0
        %4250 = vmatpush.bf16.msra.mxu0 %v2657
        %4251 = vmatpush.bf16.msra.mxu0 %v2653
        %4252 = vmatpush.bf16.msra.mxu0 %v2649
        %4253 = vmatpush.bf16.msra.mxu0 %v2645
        %4254 = vmatpush.bf16.msra.mxu0 %v2641
        %4255 = vmatpush.bf16.msra.mxu0 %v2637
        %4256 = vmatpush.bf16.msra.mxu0 %v2633
        %4257 = vmatpush.bf16.msra.mxu0 %v2629
        %4258 = vmatmul.bf16.gmra.mxu0 %v934
        %v4259 = vpop.f32.mrf.mxu0
        %v4260 = vadd.f32 %v4246, %v4259
        %v4261 = vpop.f32.mrf.mxu0
        %v4262 = vadd.f32 %v4248, %v4261
        %4263 = vdwg.mxu0
        %4264 = vmatpush.bf16.msra.mxu0 %v2689
        %4265 = vmatpush.bf16.msra.mxu0 %v2685
        %4266 = vmatpush.bf16.msra.mxu0 %v2681
        %4267 = vmatpush.bf16.msra.mxu0 %v2677
        %4268 = vmatpush.bf16.msra.mxu0 %v2673
        %4269 = vmatpush.bf16.msra.mxu0 %v2669
        %4270 = vmatpush.bf16.msra.mxu0 %v2665
        %4271 = vmatpush.bf16.msra.mxu0 %v2661
        %4272 = vmatmul.bf16.gmra.mxu0 %v935
        %v4273 = vpop.f32.mrf.mxu0
        %v4274 = vadd.f32 %v4260, %v4273
        %v4275 = vpop.f32.mrf.mxu0
        %v4276 = vadd.f32 %v4262, %v4275
        %4277 = vdwg.mxu0
        %4278 = vmatpush.bf16.msra.mxu0 %v2721
        %4279 = vmatpush.bf16.msra.mxu0 %v2717
        %4280 = vmatpush.bf16.msra.mxu0 %v2713
        %4281 = vmatpush.bf16.msra.mxu0 %v2709
        %4282 = vmatpush.bf16.msra.mxu0 %v2705
        %4283 = vmatpush.bf16.msra.mxu0 %v2701
        %4284 = vmatpush.bf16.msra.mxu0 %v2697
        %4285 = vmatpush.bf16.msra.mxu0 %v2693
        %4286 = vmatmul.bf16.gmra.mxu0 %v936
        %v4287 = vpop.f32.mrf.mxu0
        %v4288 = vadd.f32 %v4274, %v4287
        %v4289 = vpop.f32.mrf.mxu0
        %v4290 = vadd.f32 %v4276, %v4289
        %4291 = vdwg.mxu0
        %4292 = vmatpush.bf16.msra.mxu0 %v2753
        %4293 = vmatpush.bf16.msra.mxu0 %v2749
        %4294 = vmatpush.bf16.msra.mxu0 %v2745
        %4295 = vmatpush.bf16.msra.mxu0 %v2741
        %4296 = vmatpush.bf16.msra.mxu0 %v2737
        %4297 = vmatpush.bf16.msra.mxu0 %v2733
        %4298 = vmatpush.bf16.msra.mxu0 %v2729
        %4299 = vmatpush.bf16.msra.mxu0 %v2725
        %4300 = vmatmul.bf16.gmra.mxu0 %v937
        %v4301 = vpop.f32.mrf.mxu0
        %v4302 = vadd.f32 %v4288, %v4301
        %v4303 = vpop.f32.mrf.mxu0
        %v4304 = vadd.f32 %v4290, %v4303
        %4305 = vdwg.mxu0
        %4306 = vmatpush.bf16.msra.mxu0 %v2785
        %4307 = vmatpush.bf16.msra.mxu0 %v2781
        %4308 = vmatpush.bf16.msra.mxu0 %v2777
        %4309 = vmatpush.bf16.msra.mxu0 %v2773
        %4310 = vmatpush.bf16.msra.mxu0 %v2769
        %4311 = vmatpush.bf16.msra.mxu0 %v2765
        %4312 = vmatpush.bf16.msra.mxu0 %v2761
        %4313 = vmatpush.bf16.msra.mxu0 %v2757
        %4314 = vmatmul.bf16.gmra.mxu0 %v938
        %v4315 = vpop.f32.mrf.mxu0
        %v4316 = vadd.f32 %v4302, %v4315
        %v4317 = vpop.f32.mrf.mxu0
        %v4318 = vadd.f32 %v4304, %v4317
        %4319 = vdwg.mxu0
        %4320 = vmatpush.bf16.msra.mxu0 %v2817
        %4321 = vmatpush.bf16.msra.mxu0 %v2813
        %4322 = vmatpush.bf16.msra.mxu0 %v2809
        %4323 = vmatpush.bf16.msra.mxu0 %v2805
        %4324 = vmatpush.bf16.msra.mxu0 %v2801
        %4325 = vmatpush.bf16.msra.mxu0 %v2797
        %4326 = vmatpush.bf16.msra.mxu0 %v2793
        %4327 = vmatpush.bf16.msra.mxu0 %v2789
        %4328 = vmatmul.bf16.gmra.mxu0 %v939
        %v4329 = vpop.f32.mrf.mxu0
        %v4330 = vadd.f32 %v4316, %v4329
        %v4331 = vpop.f32.mrf.mxu0
        %v4332 = vadd.f32 %v4318, %v4331
        %4333 = vdwg.mxu0
        %4334 = vmatpush.bf16.msra.mxu0 %v2849
        %4335 = vmatpush.bf16.msra.mxu0 %v2845
        %4336 = vmatpush.bf16.msra.mxu0 %v2841
        %4337 = vmatpush.bf16.msra.mxu0 %v2837
        %4338 = vmatpush.bf16.msra.mxu0 %v2833
        %4339 = vmatpush.bf16.msra.mxu0 %v2829
        %4340 = vmatpush.bf16.msra.mxu0 %v2825
        %4341 = vmatpush.bf16.msra.mxu0 %v2821
        %4342 = vmatmul.bf16.gmra.mxu0 %v940
        %v4343 = vpop.f32.mrf.mxu0
        %v4344 = vadd.f32 %v4330, %v4343
        %v4345 = vpop.f32.mrf.mxu0
        %v4346 = vadd.f32 %v4332, %v4345
        %4347 = vdwg.mxu0
        %4348 = vmatpush.bf16.msra.mxu0 %v2881
        %4349 = vmatpush.bf16.msra.mxu0 %v2877
        %4350 = vmatpush.bf16.msra.mxu0 %v2873
        %4351 = vmatpush.bf16.msra.mxu0 %v2869
        %4352 = vmatpush.bf16.msra.mxu0 %v2865
        %4353 = vmatpush.bf16.msra.mxu0 %v2861
        %4354 = vmatpush.bf16.msra.mxu0 %v2857
        %4355 = vmatpush.bf16.msra.mxu0 %v2853
        %4356 = vmatmul.bf16.gmra.mxu0 %v941
        %v4357 = vpop.f32.mrf.mxu0
        %v4358 = vadd.f32 %v4344, %v4357
        %v4359 = vpop.f32.mrf.mxu0
        %v4360 = vadd.f32 %v4346, %v4359
        %4361 = vdwg.mxu0
        %4362 = vmatpush.bf16.msra.mxu0 %v2913
        %4363 = vmatpush.bf16.msra.mxu0 %v2909
        %4364 = vmatpush.bf16.msra.mxu0 %v2905
        %4365 = vmatpush.bf16.msra.mxu0 %v2901
        %4366 = vmatpush.bf16.msra.mxu0 %v2897
        %4367 = vmatpush.bf16.msra.mxu0 %v2893
        %4368 = vmatpush.bf16.msra.mxu0 %v2889
        %4369 = vmatpush.bf16.msra.mxu0 %v2885
        %4370 = vmatmul.bf16.gmra.mxu0 %v942
        %v4371 = vpop.f32.mrf.mxu0
        %v4372 = vadd.f32 %v4358, %v4371
        %v4373 = vpop.f32.mrf.mxu0
        %v4374 = vadd.f32 %v4360, %v4373
        %4375 = vdwg.mxu0
        %4376 = vmatpush.bf16.msra.mxu0 %v2945
        %4377 = vmatpush.bf16.msra.mxu0 %v2941
        %4378 = vmatpush.bf16.msra.mxu0 %v2937
        %4379 = vmatpush.bf16.msra.mxu0 %v2933
        %4380 = vmatpush.bf16.msra.mxu0 %v2929
        %4381 = vmatpush.bf16.msra.mxu0 %v2925
        %4382 = vmatpush.bf16.msra.mxu0 %v2921
        %4383 = vmatpush.bf16.msra.mxu0 %v2917
        %4384 = vmatmul.bf16.gmra.mxu0 %v943
        %v4385 = vpop.f32.mrf.mxu0
        %v4386 = vadd.f32 %v4372, %v4385
        %v4387 = vpop.f32.mrf.mxu0
        %v4388 = vadd.f32 %v4374, %v4387
        %4389 = vdwg.mxu0
        %4390 = vmatpush.bf16.msra.mxu0 %v2977
        %4391 = vmatpush.bf16.msra.mxu0 %v2973
        %4392 = vmatpush.bf16.msra.mxu0 %v2969
        %4393 = vmatpush.bf16.msra.mxu0 %v2965
        %4394 = vmatpush.bf16.msra.mxu0 %v2961
        %4395 = vmatpush.bf16.msra.mxu0 %v2957
        %4396 = vmatpush.bf16.msra.mxu0 %v2953
        %4397 = vmatpush.bf16.msra.mxu0 %v2949
        %4398 = vmatmul.bf16.gmra.mxu0 %v944
        %v4399 = vpop.f32.mrf.mxu0
        %v4400 = vadd.f32 %v4386, %v4399
        %v4401 = vpop.f32.mrf.mxu0
        %v4402 = vadd.f32 %v4388, %v4401
        %4403 = vdwg.mxu0
        %4404 = vmatpush.bf16.msra.mxu0 %v3009
        %4405 = vmatpush.bf16.msra.mxu0 %v3005
        %4406 = vmatpush.bf16.msra.mxu0 %v3001
        %4407 = vmatpush.bf16.msra.mxu0 %v2997
        %4408 = vmatpush.bf16.msra.mxu0 %v2993
        %4409 = vmatpush.bf16.msra.mxu0 %v2989
        %4410 = vmatpush.bf16.msra.mxu0 %v2985
        %4411 = vmatpush.bf16.msra.mxu0 %v2981
        %4412 = vmatmul.bf16.gmra.mxu0 %v945
        %v4413 = vpop.f32.mrf.mxu0
        %v4414 = vadd.f32 %v4400, %v4413
        %v4415 = vpop.f32.mrf.mxu0
        %v4416 = vadd.f32 %v4402, %v4415
        %4417 = vdwg.mxu0
        %v4418 = vadd.f32 %v346, %v3742
        %v4419 = vadd.f32 %v347, %v3966
        %v4420 = vadd.f32 %v348, %v4190
        %v4421 = vadd.f32 %v349, %v4414
        %v4422 = vadd.f32 %v350, %v3744
        %v4423 = vadd.f32 %v351, %v3968
        %v4424 = vadd.f32 %v352, %v4192
        %v4425 = vadd.f32 %v353, %v4416
        %4426 = vst [vmem:[#allocation2] sm:$0xff] %v4418
        %4427 = vst [vmem:[#allocation2 + $0x8] sm:$0xff] %v4419
        %4428 = vst [vmem:[#allocation2 + $0x10] sm:$0xff] %v4420
        %4429 = vst [vmem:[#allocation2 + $0x18] sm:$0xff] %v4421
        %4430 = vst [vmem:[#allocation2 + $0x20] sm:$0xff] %v4422
        %4431 = vst [vmem:[#allocation2 + $0x28] sm:$0xff] %v4423
        %4432 = vst [vmem:[#allocation2 + $0x30] sm:$0xff] %v4424
        %4433 = vst [vmem:[#allocation2 + $0x38] sm:$0xff] %v4425
        %p4434 = scmp.eq.s32.totalorder %s27, 1
        // Predicated region
        $region68: #{cnn_classifier_forward.6} parent=50 // pred_check
          %p4435 = pneg %p4434
        $region69: #{cnn_classifier_forward.6} parent=50 // pred_check_branch
          %4437 = sbr.rel (%p4435) target = $region71
        $region70: #{cnn_classifier_forward.6} parent=50 // pred_region
          %v4438 = vld [vmem:[#allocation2] sm:$0xff]
          %v4439 = vld [vmem:[#allocation2 + $0x8] sm:$0xff]
          %v4440 = vld [vmem:[#allocation2 + $0x10] sm:$0xff]
          %v4441 = vld [vmem:[#allocation2 + $0x18] sm:$0xff]
          %v4442 = vld [vmem:[#allocation2 + $0x20] sm:$0xff]
          %v4443 = vld [vmem:[#allocation2 + $0x28] sm:$0xff]
          %v4444 = vld [vmem:[#allocation2 + $0x30] sm:$0xff]
          %v4445 = vld [vmem:[#allocation2 + $0x38] sm:$0xff]
          %v4446 = vld [vmem:[%s295] sm:$0xf]
          %v4448 = vperm.slane %v4446, 0
          %v4449 = vperm.slane %v4446, 1
          %v4450 = vperm.slane %v4446, 2
          %v4451 = vperm.slane %v4446, 3
          %v4456 = vadd.f32 %v4438, %v4448
          %v4457 = vadd.f32 %v4439, %v4449
          %v4458 = vadd.f32 %v4440, %v4450
          %v4459 = vadd.f32 %v4441, %v4451
          %v4460 = vadd.f32 %v4442, %v4448
          %v4461 = vadd.f32 %v4443, %v4449
          %v4462 = vadd.f32 %v4444, %v4450
          %v4463 = vadd.f32 %v4445, %v4451
          %v4464 = vpack.c.bf16 %v4457, %v4456
          %v4465 = vpack.c.bf16 %v4459, %v4458
          %v4466 = vpack.c.bf16 %v4461, %v4460
          %v4467 = vpack.c.bf16 %v4463, %v4462
          %4468 = vst [vmem:[%s326] sm:$0xff] %v4464
          %4469 = vst [vmem:[%s326 + $0x8] sm:$0xff] %v4465
          %4470 = vst [vmem:[%s326 + $0x10] sm:$0xff] %v4466
          %4471 = vst [vmem:[%s326 + $0x18] sm:$0xff] %v4467
        $region71: #{cnn_classifier_forward.6} parent=50 // pred_fallthru
          _
        %s4472 = sand.u32 %s131, 1
        %s4473 = sand.u32 %s131, 1
        %s4474 = smul.addr %s4473, 32
        %s4475 = scalar_lea.vmem [#allocation8], %s4474
        // Predicated region
        $region72: #{cnn_classifier_forward.6} parent=50 // pred_check
          %p4476 = pneg %p141
        $region73: #{cnn_classifier_forward.6} parent=50 // pred_check_branch
          %4478 = sbr.rel (%p4476) target = $region75
        $region74: #{cnn_classifier_forward.6} parent=50 // pred_region
          %s4479 = smul.u32 2, %s25
          %s4480 = smul.u32 4, %s26
          %s4481 = smul.addr %s4479, 8
          %s4482 = sadd.s32 %s4480, %s4481
          %s4483 = smul.addr %s4482, 4
          %s4484 = scalar_lea.vmem %s3, %s4483
          // Predicated region
          $region76: #{cnn_classifier_forward.6} parent=74 // pred_check
            _
          $region77: #{cnn_classifier_forward.6} parent=74 // pred_check_branch
            %4486 = sbr.rel (0) target = $region79
          $region78: #{cnn_classifier_forward.6} parent=74 // pred_region
            // Predicated region
            $region80: #{cnn_classifier_forward.6} parent=78 // pred_check
              _
            $region81: #{cnn_classifier_forward.6} parent=78 // pred_check_branch
              %4488 = sbr.rel (0) target = $region83
            $region82: #{cnn_classifier_forward.6} parent=78 // pred_region
              loop: start=0, step=1, limit=1
              $region84: #{cnn_classifier_forward.6} parent=82 // loop_pre_header
                _
              $region85: #{cnn_classifier_forward.6} parent=82 // loop_header
                %s4490 = sphi 0, %s4494
                %p4491 = scmp.ge.s32.totalorder %s4490, 1
                %s4495 = sphi %s4475, %s4475
                %s4496 = sphi %s4484, %s4484
              $region86: #{cnn_classifier_forward.6} parent=82 // loop_header_branch
                %4493 = sbr.rel (%p4491) target = $region90
              $region87: #{cnn_classifier_forward.6} parent=82 // loop_body
                %v4497 = vld [vmem:[%s4495] sm:$0xff]
                %4498 = vst [vmem:[%s4496] sm:$0xff] %v4497
                %v4499 = vld [vmem:[%s4495 + $0x8] sm:$0xff]
                %4500 = vst [vmem:[%s4496 + $0x8] sm:$0xff] %v4499
                %v4501 = vld [vmem:[%s4495 + $0x10] sm:$0xff]
                %4502 = vst [vmem:[%s4496 + $0x20] sm:$0xff] %v4501
                %v4503 = vld [vmem:[%s4495 + $0x18] sm:$0xff]
                %4504 = vst [vmem:[%s4496 + $0x28] sm:$0xff] %v4503
              $region88: #{cnn_classifier_forward.6} parent=82 // loop_footer
                %s4494 = sadd.s32 1, %s4490
              $region89: #{cnn_classifier_forward.6} parent=82 // loop_footer_branch
                %4489 = sbr.rel target = $region85
              $region90: #{cnn_classifier_forward.6} parent=82 // loop_exit
                _
            $region83: #{cnn_classifier_forward.6} parent=78 // pred_fallthru
              _
            // Predicated region
            $region91: #{cnn_classifier_forward.6} parent=78 // pred_check
              _
            $region92: #{cnn_classifier_forward.6} parent=78 // pred_check_branch
              %4506 = sbr.rel target = $region94
            $region93: #{cnn_classifier_forward.6} parent=78 // pred_region
              _
            $region94: #{cnn_classifier_forward.6} parent=78 // pred_fallthru
              _
          $region79: #{cnn_classifier_forward.6} parent=74 // pred_fallthru
            _
          %4507 = vnop
        $region75: #{cnn_classifier_forward.6} parent=50 // pred_fallthru
          _
      $region51: #{cnn_classifier_forward.6} parent=5 // pred_fallthru
        _
      %p4508 = scmp.le.s32.totalorder 2, %s15
      // Predicated region
      $region95: #{cnn_classifier_forward.6} parent=5 // pred_check
        %p4509 = pneg %p4508
      $region96: #{cnn_classifier_forward.6} parent=5 // pred_check_branch
        %4511 = sbr.rel (%p4509) target = $region98
      $region97: #{cnn_classifier_forward.6} parent=5 // pred_region
        %s4512 = ssub.s32 %s15, 2
        // Predicated region
        $region99: #{cnn_classifier_forward.6} parent=97 // pred_check
          %p4513 = pneg %p147
        $region100: #{cnn_classifier_forward.6} parent=97 // pred_check_branch
          %4515 = sbr.rel (%p4513) target = $region102
        $region101: #{cnn_classifier_forward.6} parent=97 // pred_region
          %s4516 = sand.u32 %s132, 1
          %s4517 = sand.u32 %s132, 1
          %s4518 = smul.addr %s4517, 32
          %s4519 = scalar_lea.vmem [#allocation8], %s4518
        $region102: #{cnn_classifier_forward.6} parent=97 // pred_fallthru
          _
      $region98: #{cnn_classifier_forward.6} parent=5 // pred_fallthru
        _
    $region6: #{cnn_classifier_forward.6} parent=1 // loop_footer
      %s19 = sadd.s32 1, %s15
    $region7: #{cnn_classifier_forward.6} parent=1 // loop_footer_branch
      %14 = sbr.rel target = $region3
    $region8: #{cnn_classifier_forward.6} parent=1 // loop_exit
      _
    %4520 = vsyncpa [#allocation5], 1
    %s4521 = scalar_lea.sflag [#allocation5], 1
    %4522 = vsyncpa %s4521, 1
    %4523 = vsyncpa [#allocation7], 1
    %s4524 = scalar_lea.sflag [#allocation7], 1
    %4525 = vsyncpa %s4524, 1

</llo_original>
